<compile_context>
chip_gen: v6e
topology: v6e:2x2x1
jax: 0.10.0
libtpu: 0.0.40
codegen_flags: <defaults>
</compile_context>

<pallas_src>
import jax
import jax.numpy as jnp
from jax import lax
from jax.experimental import pallas as pl
from jax.experimental.pallas import tpu as pltpu

_HI = lax.Precision.HIGHEST  # used only by the pure-JAX reference


# ----------------------------- Pallas kernels -----------------------------

def _upconv2x2_kernel(x_ref, w_ref, b_ref, o_ref):
    # x_ref: (1, H, W, Cin) bf16
    # w_ref: (Cin, 4*Ch) bf16, columns ordered (di, dj, oc)
    # b_ref: (1, 4*Ch) f32
    # o_ref: (1, H, W, 4*Ch) bf16
    _, H, W, Cin = x_ref.shape
    C4 = w_ref.shape[1]
    x = x_ref[0].reshape(H * W, Cin)
    y = jnp.dot(x, w_ref[...], preferred_element_type=jnp.float32) + b_ref[...]
    o_ref[0] = y.reshape(H, W, C4).astype(o_ref.dtype)


def _fused_concat_double_conv_kernel(x2_ref, u_ref, w1a_ref, w1b_ref, b1_ref,
                                     w2_ref, b2_ref, o_ref,
                                     s_x2, s_u, s_mid):
    # x2_ref, u_ref: (1, Hq, Wq, Ch) bf16  (Hq=2H, Wq=2W; u = upsampled x1)
    # w1a_ref: (9*Ch, Cout) bf16  conv1 weights for the x2 half of the concat
    # w1b_ref: (9*Ch, Cout) bf16  conv1 weights for the upsampled half
    # b1_ref : (1, Cout) f32      conv1 bias with BN folded
    # w2_ref : (9*Cout, Cout) bf16, b2_ref: (1, Cout) f32
    # o_ref  : (1, Hq, Wq, Cout) f32
    # s_x2/s_u: (Hq+2, Wq+2, Ch) f32 scratch; s_mid: (Hq+2, Wq+2, Cout) f32
    _, Hq, Wq, Ch = x2_ref.shape
    Cout = o_ref.shape[3]

    # Zero-padded halo buffers in VMEM (replaces wrapper-side jnp.pad / concat).
    s_x2[...] = jnp.zeros_like(s_x2)
    s_u[...] = jnp.zeros_like(s_u)
    s_mid[...] = jnp.zeros_like(s_mid)
    s_x2[1:Hq + 1, 1:Wq + 1, :] = x2_ref[0].astype(jnp.float32)
    s_u[1:Hq + 1, 1:Wq + 1, :] = u_ref[0].astype(jnp.float32)

    def im2col(s, c):
        # (Hq*Wq, 9*c) patch matrix: 9 shifted windows concatenated on channels,
        # so each conv is a single dense-K MXU matmul.
        cols = [s[ky:ky + Hq, kx:kx + Wq, :]
                for ky in range(3) for kx in range(3)]
        return (jnp.concatenate(cols, axis=-1)
                .reshape(Hq * Wq, 9 * c).astype(jnp.bfloat16))

    # conv1 (+ folded BN) + ReLU; the channel concat is fused as two matmuls.
    acc = jnp.dot(im2col(s_x2, Ch), w1a_ref[...],
                  preferred_element_type=jnp.float32)
    acc = acc + jnp.dot(im2col(s_u, Ch), w1b_ref[...],
                        preferred_element_type=jnp.float32)
    mid = jnp.maximum(acc + b1_ref[...], 0.0)
    s_mid[1:Hq + 1, 1:Wq + 1, :] = mid.reshape(Hq, Wq, Cout)

    # conv2 (+ folded BN) + ReLU; the intermediate never leaves VMEM.
    acc2 = jnp.dot(im2col(s_mid, Cout), w2_ref[...],
                   preferred_element_type=jnp.float32)
    out = jnp.maximum(acc2 + b2_ref[...], 0.0)
    o_ref[0] = out.reshape(Hq, Wq, Cout).astype(o_ref.dtype)


# ----------------------------- Pallas wrappers -----------------------------

def upconv2x2_pallas(x1_bf16, w_mat, b_row):
    N, H, W, Cin = x1_bf16.shape
    C4 = w_mat.shape[1]
    flops = 2 * N * H * W * Cin * C4
    bytes_accessed = (2 * (x1_bf16.size + w_mat.size + N * H * W * C4)
                      + 4 * b_row.size)
    return pl.pallas_call(
        _upconv2x2_kernel,
        out_shape=jax.ShapeDtypeStruct((N, H, W, C4), jnp.bfloat16),
        grid=(N,),
        in_specs=[
            pl.BlockSpec((1, H, W, Cin), lambda n: (n, 0, 0, 0)),
            pl.BlockSpec((Cin, C4), lambda n: (0, 0)),
            pl.BlockSpec((1, C4), lambda n: (0, 0)),
        ],
        out_specs=pl.BlockSpec((1, H, W, C4), lambda n: (n, 0, 0, 0)),
        compiler_params=pltpu.CompilerParams(
            dimension_semantics=("parallel",),
            vmem_limit_bytes=32 * 1024 * 1024),
        cost_estimate=pl.CostEstimate(flops=flops, transcendentals=0,
                                      bytes_accessed=bytes_accessed),
    )(x1_bf16, w_mat, b_row)


def fused_concat_double_conv_pallas(x2_bf16, u_bf16, w1a, w1b, b1, w2, b2):
    N, Hq, Wq, Ch = x2_bf16.shape
    Cout = w2.shape[1]
    flops = 2 * N * Hq * Wq * Cout * 9 * (2 * Ch + Cout)
    bytes_accessed = (2 * (x2_bf16.size + u_bf16.size + w1a.size + w1b.size
                           + w2.size)
                      + 4 * (b1.size + b2.size + N * Hq * Wq * Cout))
    return pl.pallas_call(
        _fused_concat_double_conv_kernel,
        out_shape=jax.ShapeDtypeStruct((N, Hq, Wq, Cout), jnp.float32),
        grid=(N,),
        in_specs=[
            pl.BlockSpec((1, Hq, Wq, Ch), lambda n: (n, 0, 0, 0)),
            pl.BlockSpec((1, Hq, Wq, Ch), lambda n: (n, 0, 0, 0)),
            pl.BlockSpec((9 * Ch, Cout), lambda n: (0, 0)),
            pl.BlockSpec((9 * Ch, Cout), lambda n: (0, 0)),
            pl.BlockSpec((1, Cout), lambda n: (0, 0)),
            pl.BlockSpec((9 * Cout, Cout), lambda n: (0, 0)),
            pl.BlockSpec((1, Cout), lambda n: (0, 0)),
        ],
        out_specs=pl.BlockSpec((1, Hq, Wq, Cout), lambda n: (n, 0, 0, 0)),
        scratch_shapes=[
            pltpu.VMEM((Hq + 2, Wq + 2, Ch), jnp.float32),
            pltpu.VMEM((Hq + 2, Wq + 2, Ch), jnp.float32),
            pltpu.VMEM((Hq + 2, Wq + 2, Cout), jnp.float32),
        ],
        compiler_params=pltpu.CompilerParams(
            dimension_semantics=("parallel",),
            vmem_limit_bytes=32 * 1024 * 1024),
        cost_estimate=pl.CostEstimate(flops=flops, transcendentals=0,
                                      bytes_accessed=bytes_accessed),
    )(x2_bf16, u_bf16, w1a, w1b, b1, w2, b2)


# ----------------------------- weight preparation -----------------------------

def _prepare_weights(params):
    Cin = params["up_w"].shape[0]
    Ch = Cin // 2
    Cout = params["conv1_w"].shape[0]

    # ConvTranspose2d(in_ch, in_ch//2, 2, 2): (Cin, Ch, 2, 2) -> (Cin, (di,dj,oc))
    w_up = jnp.transpose(params["up_w"], (0, 2, 3, 1)).reshape(Cin, 4 * Ch)
    b_up = jnp.tile(params["up_b"], 4).reshape(1, 4 * Ch).astype(jnp.float32)

    def fold(i):
        w, b = params[f"conv{i}_w"], params[f"conv{i}_b"]
        g, be = params[f"bn{i}_gamma"], params[f"bn{i}_beta"]
        mu, var = params[f"bn{i}_mean"], params[f"bn{i}_var"]
        s = g / jnp.sqrt(var + 1e-5)                     # per-out-channel scale
        w_f = jnp.transpose(w, (2, 3, 1, 0)) * s         # (3, 3, cin, Cout)
        b_f = ((b - mu) * s + be).reshape(1, -1).astype(jnp.float32)
        return w_f, b_f

    w1_f, b1 = fold(1)
    w1a = w1_f[:, :, :Ch, :].reshape(9 * Ch, Cout)       # x2 channel half
    w1b = w1_f[:, :, Ch:, :].reshape(9 * Ch, Cout)       # upsampled-x1 half
    w2_f, b2 = fold(2)
    w2 = w2_f.reshape(9 * Cout, Cout)

    bf = jnp.bfloat16
    return dict(w_up=w_up.astype(bf), b_up=b_up,
                w1a=w1a.astype(bf), w1b=w1b.astype(bf), b1=b1,
                w2=w2.astype(bf), b2=b2)


# ----------------------------- up_layers forward -----------------------------

@jax.jit
def up_layers_forward(params, x1_nchw, x2_nchw):
    p = _prepare_weights(params)
    x1 = jnp.transpose(x1_nchw, (0, 2, 3, 1)).astype(jnp.bfloat16)   # NHWC
    x2 = jnp.transpose(x2_nchw, (0, 2, 3, 1)).astype(jnp.bfloat16)
    N, H, W, Cin = x1.shape
    Ch = Cin // 2

    # --- self.up: ConvTranspose2d(in_ch, in_ch//2, 2, stride=2) ---
    y4 = upconv2x2_pallas(x1, p["w_up"], p["b_up"])      # (N, H, W, 4*Ch) bf16
    # interleave the 2x2 output positions -> (N, 2H, 2W, Ch)  (cheap bf16 op)
    # TODO(synk): fold the interleave into the kernel's output layout to save
    # one HBM round trip of the upsampled tensor.
    u = y4.reshape(N, H, W, 2, 2, Ch)
    u = jnp.transpose(u, (0, 1, 3, 2, 4, 5)).reshape(N, 2 * H, 2 * W, Ch)

    # --- F.pad(x1, ...) to match x2 spatial dims (no-op when already equal) ---
    diffY = x2.shape[1] - u.shape[1]
    diffX = x2.shape[2] - u.shape[2]
    u = jnp.pad(u, ((0, 0),
                    (diffY // 2, diffY - diffY // 2),
                    (diffX // 2, diffX - diffX // 2),
                    (0, 0)))

    # --- concat + double_conv, fused in a single Pallas kernel ---
    out = fused_concat_double_conv_pallas(x2, u, p["w1a"], p["w1b"], p["b1"],
                                          p["w2"], p["b2"])
    return jnp.transpose(out, (0, 3, 1, 2))              # back to NCHW (f32)


# ----------------------------- pure-JAX reference -----------------------------

def up_layers_reference(params, x1, x2):
    x1 = x1.astype(jnp.float32)
    x2 = x2.astype(jnp.float32)
    N, Cin, H, W = x1.shape
    Ch = Cin // 2
    wt, bt = params["up_w"], params["up_b"]
    y = jnp.einsum("ncij,codk->noidjk", x1, wt, precision=_HI)
    y = y.reshape(N, Ch, 2 * H, 2 * W) + bt[None, :, None, None]
    diffY = x2.shape[2] - y.shape[2]
    diffX = x2.shape[3] - y.shape[3]
    y = jnp.pad(y, ((0, 0), (0, 0),
                    (diffY // 2, diffY - diffY // 2),
                    (diffX // 2, diffX - diffX // 2)))
    x = jnp.concatenate([x2, y], axis=1)
    for i in (1, 2):
        w, b = params[f"conv{i}_w"], params[f"conv{i}_b"]
        g, be = params[f"bn{i}_gamma"], params[f"bn{i}_beta"]
        mu, var = params[f"bn{i}_mean"], params[f"bn{i}_var"]
        x = lax.conv_general_dilated(
            x, w, window_strides=(1, 1), padding=((1, 1), (1, 1)),
            dimension_numbers=("NCHW", "OIHW", "NCHW"), precision=_HI)
        x = x + b[None, :, None, None]
        s = g / jnp.sqrt(var + 1e-5)
        x = x * s[None, :, None, None] + (be - mu * s)[None, :, None, None]
        x = jnp.maximum(x, 0.0)
    return x


# ----------------------------- main -----------------------------

def init_params(key, in_ch, out_ch):
    ks = jax.random.split(key, 6)
    half = in_ch // 2
    p = {
        "up_w": 0.1 * jax.random.normal(ks[0], (in_ch, half, 2, 2), jnp.float32),
        "up_b": 0.1 * jax.random.normal(ks[1], (half,), jnp.float32),
        "conv1_w": 0.1 * jax.random.normal(ks[2], (out_ch, in_ch, 3, 3), jnp.float32),
        "conv1_b": 0.1 * jax.random.normal(ks[3], (out_ch,), jnp.float32),
        "conv2_w": 0.1 * jax.random.normal(ks[4], (out_ch, out_ch, 3, 3), jnp.float32),
        "conv2_b": 0.1 * jax.random.normal(ks[5], (out_ch,), jnp.float32),
    }
    for i in (1, 2):  # BatchNorm2d defaults (eval mode)
        p[f"bn{i}_gamma"] = jnp.ones((out_ch,), jnp.float32)
        p[f"bn{i}_beta"] = jnp.zeros((out_ch,), jnp.float32)
        p[f"bn{i}_mean"] = jnp.zeros((out_ch,), jnp.float32)
        p[f"bn{i}_var"] = jnp.ones((out_ch,), jnp.float32)
    return p


if __name__ == "__main__":
    in_ch, out_ch = 8, 4
    N, H, W = 2, 8, 8                      # x1 spatial; x2 is 2x larger

    key = jax.random.PRNGKey(0)
    k1, k2, kp = jax.random.split(key, 3)
    x1 = jax.random.normal(k1, (N, in_ch, H, W), jnp.float32)          # NCHW
    x2 = jax.random.normal(k2, (N, in_ch // 2, 2 * H, 2 * W), jnp.float32)
    params = init_params(kp, in_ch, out_ch)

    out = jax.block_until_ready(up_layers_forward(params, x1, x2))
    ref = jax.block_until_ready(up_layers_reference(params, x1, x2))

    assert out.shape == (N, out_ch, 2 * H, 2 * W), out.shape
    # bf16 MXU operands (f32 accumulation) -> compare at bf16-level tolerance.
    assert jnp.allclose(out, ref, rtol=2e-2, atol=2e-2), float(
        jnp.max(jnp.abs(out - ref)))
    print("KERNEL_OK")
</pallas_src>

<mosaic_0001>
module attributes {stable_mosaic.version = 11 : i64} {
  func.func @_upconv2x2_kernel(%arg0: i32, %arg1: memref<1x8x8x8xbf16, #tpu.memory_space<vmem>>, %arg2: memref<8x16xbf16, #tpu.memory_space<vmem>>, %arg3: memref<1x16xf32, #tpu.memory_space<vmem>>, %arg4: memref<1x8x8x16xbf16, #tpu.memory_space<vmem>>) attributes {dimension_semantics = [#tpu.dimension_semantics<parallel>], iteration_bounds = array<i64: 2>, scalar_prefetch = 0 : i64, scratch_operands = 0 : i64, tpu.core_type = #tpu.core_type<tc>, window_params = [{transform_indices = @transform_0, window_bounds = array<i64: 1, 8, 8, 8>}, {pipeline_mode = #tpu.pipeline_mode<synchronous>, transform_indices = @transform_1, window_bounds = array<i64: 8, 16>}, {pipeline_mode = #tpu.pipeline_mode<synchronous>, transform_indices = @transform_2, window_bounds = array<i64: 1, 16>}, {transform_indices = @transform_3, window_bounds = array<i64: 1, 8, 8, 16>}]} {
    %c0 = arith.constant 0 : index
    %c0_0 = arith.constant 0 : index
    %c0_1 = arith.constant 0 : index
    %c0_2 = arith.constant 0 : index
    %0 = vector.load %arg1[%c0, %c0_0, %c0_1, %c0_2] : memref<1x8x8x8xbf16, #tpu.memory_space<vmem>>, vector<1x8x8x8xbf16>
    %1 = vector.shape_cast %0 : vector<1x8x8x8xbf16> to vector<8x8x8xbf16>
    %2 = vector.shape_cast %1 : vector<8x8x8xbf16> to vector<64x8xbf16>
    %c0_3 = arith.constant 0 : index
    %c0_4 = arith.constant 0 : index
    %3 = vector.load %arg2[%c0_3, %c0_4] : memref<8x16xbf16, #tpu.memory_space<vmem>>, vector<8x16xbf16>
    %cst = arith.constant dense<0.000000e+00> : vector<64x16xf32>
    %4 = tpu.matmul %2, %3, %cst {dimension_numbers = #tpu.dot_dimension_numbers<[1], [0], [0], [1], [0, 0, 1, 1], [], []>} : vector<64x8xbf16>, vector<8x16xbf16>, vector<64x16xf32> -> vector<64x16xf32>
    %c0_5 = arith.constant 0 : index
    %c0_6 = arith.constant 0 : index
    %5 = vector.load %arg3[%c0_5, %c0_6] : memref<1x16xf32, #tpu.memory_space<vmem>>, vector<1x16xf32>
    %6 = vector.broadcast %5 : vector<1x16xf32> to vector<64x16xf32>
    %7 = arith.addf %4, %6 : vector<64x16xf32>
    %8 = vector.shape_cast %7 : vector<64x16xf32> to vector<8x8x16xf32>
    %9 = arith.truncf %8 : vector<8x8x16xf32> to vector<8x8x16xbf16>
    %c0_7 = arith.constant 0 : index
    %c0_8 = arith.constant 0 : index
    %c0_9 = arith.constant 0 : index
    %c0_10 = arith.constant 0 : index
    %10 = vector.load %arg4[%c0_7, %c0_8, %c0_9, %c0_10] : memref<1x8x8x16xbf16, #tpu.memory_space<vmem>>, vector<1x8x8x16xbf16>
    %11 = vector.shape_cast %10 : vector<1x8x8x16xbf16> to vector<8x8x16xbf16>
    %12 = vector.shape_cast %9 : vector<8x8x16xbf16> to vector<1x8x8x16xbf16>
    tpu.vector_store %arg4[%c0_7, %c0_8, %c0_9, %c0_10], %12 {strides = array<i32>} : memref<1x8x8x16xbf16, #tpu.memory_space<vmem>>, vector<1x8x8x16xbf16>,
    return
  }
  func.func @transform_0(%arg0: i32) -> (i32, i32, i32, i32) {
    %c0_i32 = arith.constant 0 : i32
    %c0_i32_0 = arith.constant 0 : i32
    %c0_i32_1 = arith.constant 0 : i32
    %c0_i32_2 = arith.constant 0 : i32
    return %arg0, %c0_i32, %c0_i32_0, %c0_i32_1 : i32, i32, i32, i32
  }
  func.func @transform_1(%arg0: i32) -> (i32, i32) {
    %c0_i32 = arith.constant 0 : i32
    %c0_i32_0 = arith.constant 0 : i32
    %c0_i32_1 = arith.constant 0 : i32
    return %c0_i32, %c0_i32_0 : i32, i32
  }
  func.func @transform_2(%arg0: i32) -> (i32, i32) {
    %c0_i32 = arith.constant 0 : i32
    %c0_i32_0 = arith.constant 0 : i32
    %c0_i32_1 = arith.constant 0 : i32
    return %c0_i32, %c0_i32_0 : i32, i32
  }
  func.func @transform_3(%arg0: i32) -> (i32, i32, i32, i32) {
    %c0_i32 = arith.constant 0 : i32
    %c0_i32_0 = arith.constant 0 : i32
    %c0_i32_1 = arith.constant 0 : i32
    %c0_i32_2 = arith.constant 0 : i32
    return %arg0, %c0_i32, %c0_i32_0, %c0_i32_1 : i32, i32, i32, i32
  }
}

module attributes {stable_mosaic.version = 11 : i64} {
  func.func @_fused_concat_double_conv_kernel(%arg0: i32, %arg1: memref<1x16x16x4xbf16, #tpu.memory_space<vmem>>, %arg2: memref<1x16x16x4xbf16, #tpu.memory_space<vmem>>, %arg3: memref<36x4xbf16, #tpu.memory_space<vmem>>, %arg4: memref<36x4xbf16, #tpu.memory_space<vmem>>, %arg5: memref<1x4xf32, #tpu.memory_space<vmem>>, %arg6: memref<36x4xbf16, #tpu.memory_space<vmem>>, %arg7: memref<1x4xf32, #tpu.memory_space<vmem>>, %arg8: memref<1x16x16x4xf32, #tpu.memory_space<vmem>>, %arg9: memref<18x18x4xf32, #tpu.memory_space<vmem>>, %arg10: memref<18x18x4xf32, #tpu.memory_space<vmem>>, %arg11: memref<18x18x4xf32, #tpu.memory_space<vmem>>) attributes {dimension_semantics = [#tpu.dimension_semantics<parallel>], iteration_bounds = array<i64: 2>, scalar_prefetch = 0 : i64, scratch_operands = 3 : i64, tpu.core_type = #tpu.core_type<tc>, window_params = [{transform_indices = @transform_0, window_bounds = array<i64: 1, 16, 16, 4>}, {transform_indices = @transform_1, window_bounds = array<i64: 1, 16, 16, 4>}, {pipeline_mode = #tpu.pipeline_mode<synchronous>, transform_indices = @transform_2, window_bounds = array<i64: 36, 4>}, {pipeline_mode = #tpu.pipeline_mode<synchronous>, transform_indices = @transform_3, window_bounds = array<i64: 36, 4>}, {pipeline_mode = #tpu.pipeline_mode<synchronous>, transform_indices = @transform_4, window_bounds = array<i64: 1, 4>}, {pipeline_mode = #tpu.pipeline_mode<synchronous>, transform_indices = @transform_5, window_bounds = array<i64: 36, 4>}, {pipeline_mode = #tpu.pipeline_mode<synchronous>, transform_indices = @transform_6, window_bounds = array<i64: 1, 4>}, {transform_indices = @transform_7, window_bounds = array<i64: 1, 16, 16, 4>}]} {
    %cst = arith.constant 0.000000e+00 : f32
    %0 = vector.broadcast %cst : f32 to vector<18x18x4xf32>
    %c0 = arith.constant 0 : index
    %c0_0 = arith.constant 0 : index
    %c0_1 = arith.constant 0 : index
    %1 = vector.load %arg9[%c0, %c0_0, %c0_1] : memref<18x18x4xf32, #tpu.memory_space<vmem>>, vector<18x18x4xf32>
    tpu.vector_store %arg9[%c0, %c0_0, %c0_1], %0 {strides = array<i32>} : memref<18x18x4xf32, #tpu.memory_space<vmem>>, vector<18x18x4xf32>,
    %cst_2 = arith.constant 0.000000e+00 : f32
    %2 = vector.broadcast %cst_2 : f32 to vector<18x18x4xf32>
    %c0_3 = arith.constant 0 : index
    %c0_4 = arith.constant 0 : index
    %c0_5 = arith.constant 0 : index
    %3 = vector.load %arg10[%c0_3, %c0_4, %c0_5] : memref<18x18x4xf32, #tpu.memory_space<vmem>>, vector<18x18x4xf32>
    tpu.vector_store %arg10[%c0_3, %c0_4, %c0_5], %2 {strides = array<i32>} : memref<18x18x4xf32, #tpu.memory_space<vmem>>, vector<18x18x4xf32>,
    %cst_6 = arith.constant 0.000000e+00 : f32
    %4 = vector.broadcast %cst_6 : f32 to vector<18x18x4xf32>
    %c0_7 = arith.constant 0 : index
    %c0_8 = arith.constant 0 : index
    %c0_9 = arith.constant 0 : index
    %5 = vector.load %arg11[%c0_7, %c0_8, %c0_9] : memref<18x18x4xf32, #tpu.memory_space<vmem>>, vector<18x18x4xf32>
    tpu.vector_store %arg11[%c0_7, %c0_8, %c0_9], %4 {strides = array<i32>} : memref<18x18x4xf32, #tpu.memory_space<vmem>>, vector<18x18x4xf32>,
    %c0_10 = arith.constant 0 : index
    %c0_11 = arith.constant 0 : index
    %c0_12 = arith.constant 0 : index
    %c0_13 = arith.constant 0 : index
    %6 = vector.load %arg1[%c0_10, %c0_11, %c0_12, %c0_13] : memref<1x16x16x4xbf16, #tpu.memory_space<vmem>>, vector<1x16x16x4xbf16>
    %7 = vector.shape_cast %6 : vector<1x16x16x4xbf16> to vector<16x16x4xbf16>
    %8 = arith.extf %7 : vector<16x16x4xbf16> to vector<16x16x4xf32>
    %c1 = arith.constant 1 : index
    %c1_14 = arith.constant 1 : index
    %c0_15 = arith.constant 0 : index
    %9 = vector.load %arg9[%c1, %c1_14, %c0_15] : memref<18x18x4xf32, #tpu.memory_space<vmem>>, vector<16x16x4xf32>
    tpu.vector_store %arg9[%c1, %c1_14, %c0_15], %8 {strides = array<i32>} : memref<18x18x4xf32, #tpu.memory_space<vmem>>, vector<16x16x4xf32>,
    %c0_16 = arith.constant 0 : index
    %c0_17 = arith.constant 0 : index
    %c0_18 = arith.constant 0 : index
    %c0_19 = arith.constant 0 : index
    %10 = vector.load %arg2[%c0_16, %c0_17, %c0_18, %c0_19] : memref<1x16x16x4xbf16, #tpu.memory_space<vmem>>, vector<1x16x16x4xbf16>
    %11 = vector.shape_cast %10 : vector<1x16x16x4xbf16> to vector<16x16x4xbf16>
    %12 = arith.extf %11 : vector<16x16x4xbf16> to vector<16x16x4xf32>
    %c1_20 = arith.constant 1 : index
    %c1_21 = arith.constant 1 : index
    %c0_22 = arith.constant 0 : index
    %13 = vector.load %arg10[%c1_20, %c1_21, %c0_22] : memref<18x18x4xf32, #tpu.memory_space<vmem>>, vector<16x16x4xf32>
    tpu.vector_store %arg10[%c1_20, %c1_21, %c0_22], %12 {strides = array<i32>} : memref<18x18x4xf32, #tpu.memory_space<vmem>>, vector<16x16x4xf32>,
    %c0_23 = arith.constant 0 : index
    %c0_24 = arith.constant 0 : index
    %c0_25 = arith.constant 0 : index
    %14 = vector.load %arg9[%c0_23, %c0_24, %c0_25] : memref<18x18x4xf32, #tpu.memory_space<vmem>>, vector<16x16x4xf32>
    %c0_26 = arith.constant 0 : index
    %c1_27 = arith.constant 1 : index
    %c0_28 = arith.constant 0 : index
    %15 = vector.load %arg9[%c0_26, %c1_27, %c0_28] : memref<18x18x4xf32, #tpu.memory_space<vmem>>, vector<16x16x4xf32>
    %c0_29 = arith.constant 0 : index
    %c2 = arith.constant 2 : index
    %c0_30 = arith.constant 0 : index
    %16 = vector.load %arg9[%c0_29, %c2, %c0_30] : memref<18x18x4xf32, #tpu.memory_space<vmem>>, vector<16x16x4xf32>
    %c1_31 = arith.constant 1 : index
    %c0_32 = arith.constant 0 : index
    %c0_33 = arith.constant 0 : index
    %17 = vector.load %arg9[%c1_31, %c0_32, %c0_33] : memref<18x18x4xf32, #tpu.memory_space<vmem>>, vector<16x16x4xf32>
    %c1_34 = arith.constant 1 : index
    %c1_35 = arith.constant 1 : index
    %c0_36 = arith.constant 0 : index
    %18 = vector.load %arg9[%c1_34, %c1_35, %c0_36] : memref<18x18x4xf32, #tpu.memory_space<vmem>>, vector<16x16x4xf32>
    %c1_37 = arith.constant 1 : index
    %c2_38 = arith.constant 2 : index
    %c0_39 = arith.constant 0 : index
    %19 = vector.load %arg9[%c1_37, %c2_38, %c0_39] : memref<18x18x4xf32, #tpu.memory_space<vmem>>, vector<16x16x4xf32>
    %c2_40 = arith.constant 2 : index
    %c0_41 = arith.constant 0 : index
    %c0_42 = arith.constant 0 : index
    %20 = vector.load %arg9[%c2_40, %c0_41, %c0_42] : memref<18x18x4xf32, #tpu.memory_space<vmem>>, vector<16x16x4xf32>
    %c2_43 = arith.constant 2 : index
    %c1_44 = arith.constant 1 : index
    %c0_45 = arith.constant 0 : index
    %21 = vector.load %arg9[%c2_43, %c1_44, %c0_45] : memref<18x18x4xf32, #tpu.memory_space<vmem>>, vector<16x16x4xf32>
    %c2_46 = arith.constant 2 : index
    %c2_47 = arith.constant 2 : index
    %c0_48 = arith.constant 0 : index
    %22 = vector.load %arg9[%c2_46, %c2_47, %c0_48] : memref<18x18x4xf32, #tpu.memory_space<vmem>>, vector<16x16x4xf32>
    %23 = tpu.concatenate %14, %15, %16, %17, %18, %19, %20, %21, %22 in 2 : vector<16x16x4xf32>, vector<16x16x4xf32>, vector<16x16x4xf32>, vector<16x16x4xf32>, vector<16x16x4xf32>, vector<16x16x4xf32>, vector<16x16x4xf32>, vector<16x16x4xf32>, vector<16x16x4xf32> -> vector<16x16x36xf32>
    %24 = vector.shape_cast %23 : vector<16x16x36xf32> to vector<256x36xf32>
    %25 = arith.truncf %24 : vector<256x36xf32> to vector<256x36xbf16>
    %c0_49 = arith.constant 0 : index
    %c0_50 = arith.constant 0 : index
    %26 = vector.load %arg3[%c0_49, %c0_50] : memref<36x4xbf16, #tpu.memory_space<vmem>>, vector<36x4xbf16>
    %cst_51 = arith.constant dense<0.000000e+00> : vector<256x4xf32>
    %27 = tpu.matmul %25, %26, %cst_51 {dimension_numbers = #tpu.dot_dimension_numbers<[1], [0], [0], [1], [0, 0, 1, 1], [], []>} : vector<256x36xbf16>, vector<36x4xbf16>, vector<256x4xf32> -> vector<256x4xf32>
    %c0_52 = arith.constant 0 : index
    %c0_53 = arith.constant 0 : index
    %c0_54 = arith.constant 0 : index
    %28 = vector.load %arg10[%c0_52, %c0_53, %c0_54] : memref<18x18x4xf32, #tpu.memory_space<vmem>>, vector<16x16x4xf32>
    %c0_55 = arith.constant 0 : index
    %c1_56 = arith.constant 1 : index
    %c0_57 = arith.constant 0 : index
    %29 = vector.load %arg10[%c0_55, %c1_56, %c0_57] : memref<18x18x4xf32, #tpu.memory_space<vmem>>, vector<16x16x4xf32>
    %c0_58 = arith.constant 0 : index
    %c2_59 = arith.constant 2 : index
    %c0_60 = arith.constant 0 : index
    %30 = vector.load %arg10[%c0_58, %c2_59, %c0_60] : memref<18x18x4xf32, #tpu.memory_space<vmem>>, vector<16x16x4xf32>
    %c1_61 = arith.constant 1 : index
    %c0_62 = arith.constant 0 : index
    %c0_63 = arith.constant 0 : index
    %31 = vector.load %arg10[%c1_61, %c0_62, %c0_63] : memref<18x18x4xf32, #tpu.memory_space<vmem>>, vector<16x16x4xf32>
    %c1_64 = arith.constant 1 : index
    %c1_65 = arith.constant 1 : index
    %c0_66 = arith.constant 0 : index
    %32 = vector.load %arg10[%c1_64, %c1_65, %c0_66] : memref<18x18x4xf32, #tpu.memory_space<vmem>>, vector<16x16x4xf32>
    %c1_67 = arith.constant 1 : index
    %c2_68 = arith.constant 2 : index
    %c0_69 = arith.constant 0 : index
    %33 = vector.load %arg10[%c1_67, %c2_68, %c0_69] : memref<18x18x4xf32, #tpu.memory_space<vmem>>, vector<16x16x4xf32>
    %c2_70 = arith.constant 2 : index
    %c0_71 = arith.constant 0 : index
    %c0_72 = arith.constant 0 : index
    %34 = vector.load %arg10[%c2_70, %c0_71, %c0_72] : memref<18x18x4xf32, #tpu.memory_space<vmem>>, vector<16x16x4xf32>
    %c2_73 = arith.constant 2 : index
    %c1_74 = arith.constant 1 : index
    %c0_75 = arith.constant 0 : index
    %35 = vector.load %arg10[%c2_73, %c1_74, %c0_75] : memref<18x18x4xf32, #tpu.memory_space<vmem>>, vector<16x16x4xf32>
    %c2_76 = arith.constant 2 : index
    %c2_77 = arith.constant 2 : index
    %c0_78 = arith.constant 0 : index
    %36 = vector.load %arg10[%c2_76, %c2_77, %c0_78] : memref<18x18x4xf32, #tpu.memory_space<vmem>>, vector<16x16x4xf32>
    %37 = tpu.concatenate %28, %29, %30, %31, %32, %33, %34, %35, %36 in 2 : vector<16x16x4xf32>, vector<16x16x4xf32>, vector<16x16x4xf32>, vector<16x16x4xf32>, vector<16x16x4xf32>, vector<16x16x4xf32>, vector<16x16x4xf32>, vector<16x16x4xf32>, vector<16x16x4xf32> -> vector<16x16x36xf32>
    %38 = vector.shape_cast %37 : vector<16x16x36xf32> to vector<256x36xf32>
    %39 = arith.truncf %38 : vector<256x36xf32> to vector<256x36xbf16>
    %c0_79 = arith.constant 0 : index
    %c0_80 = arith.constant 0 : index
    %40 = vector.load %arg4[%c0_79, %c0_80] : memref<36x4xbf16, #tpu.memory_space<vmem>>, vector<36x4xbf16>
    %cst_81 = arith.constant dense<0.000000e+00> : vector<256x4xf32>
    %41 = tpu.matmul %39, %40, %cst_81 {dimension_numbers = #tpu.dot_dimension_numbers<[1], [0], [0], [1], [0, 0, 1, 1], [], []>} : vector<256x36xbf16>, vector<36x4xbf16>, vector<256x4xf32> -> vector<256x4xf32>
    %42 = arith.addf %27, %41 : vector<256x4xf32>
    %c0_82 = arith.constant 0 : index
    %c0_83 = arith.constant 0 : index
    %43 = vector.load %arg5[%c0_82, %c0_83] : memref<1x4xf32, #tpu.memory_space<vmem>>, vector<1x4xf32>
    %44 = vector.broadcast %43 : vector<1x4xf32> to vector<256x4xf32>
    %45 = arith.addf %42, %44 : vector<256x4xf32>
    %cst_84 = arith.constant 0.000000e+00 : f32
    %46 = vector.broadcast %cst_84 : f32 to vector<256x4xf32>
    %47 = arith.maximumf %45, %46 : vector<256x4xf32>
    %48 = vector.shape_cast %47 : vector<256x4xf32> to vector<16x16x4xf32>
    %c1_85 = arith.constant 1 : index
    %c1_86 = arith.constant 1 : index
    %c0_87 = arith.constant 0 : index
    %49 = vector.load %arg11[%c1_85, %c1_86, %c0_87] : memref<18x18x4xf32, #tpu.memory_space<vmem>>, vector<16x16x4xf32>
    tpu.vector_store %arg11[%c1_85, %c1_86, %c0_87], %48 {strides = array<i32>} : memref<18x18x4xf32, #tpu.memory_space<vmem>>, vector<16x16x4xf32>,
    %c0_88 = arith.constant 0 : index
    %c0_89 = arith.constant 0 : index
    %c0_90 = arith.constant 0 : index
    %50 = vector.load %arg11[%c0_88, %c0_89, %c0_90] : memref<18x18x4xf32, #tpu.memory_space<vmem>>, vector<16x16x4xf32>
    %c0_91 = arith.constant 0 : index
    %c1_92 = arith.constant 1 : index
    %c0_93 = arith.constant 0 : index
    %51 = vector.load %arg11[%c0_91, %c1_92, %c0_93] : memref<18x18x4xf32, #tpu.memory_space<vmem>>, vector<16x16x4xf32>
    %c0_94 = arith.constant 0 : index
    %c2_95 = arith.constant 2 : index
    %c0_96 = arith.constant 0 : index
    %52 = vector.load %arg11[%c0_94, %c2_95, %c0_96] : memref<18x18x4xf32, #tpu.memory_space<vmem>>, vector<16x16x4xf32>
    %c1_97 = arith.constant 1 : index
    %c0_98 = arith.constant 0 : index
    %c0_99 = arith.constant 0 : index
    %53 = vector.load %arg11[%c1_97, %c0_98, %c0_99] : memref<18x18x4xf32, #tpu.memory_space<vmem>>, vector<16x16x4xf32>
    %c1_100 = arith.constant 1 : index
    %c1_101 = arith.constant 1 : index
    %c0_102 = arith.constant 0 : index
    %54 = vector.load %arg11[%c1_100, %c1_101, %c0_102] : memref<18x18x4xf32, #tpu.memory_space<vmem>>, vector<16x16x4xf32>
    %c1_103 = arith.constant 1 : index
    %c2_104 = arith.constant 2 : index
    %c0_105 = arith.constant 0 : index
    %55 = vector.load %arg11[%c1_103, %c2_104, %c0_105] : memref<18x18x4xf32, #tpu.memory_space<vmem>>, vector<16x16x4xf32>
    %c2_106 = arith.constant 2 : index
    %c0_107 = arith.constant 0 : index
    %c0_108 = arith.constant 0 : index
    %56 = vector.load %arg11[%c2_106, %c0_107, %c0_108] : memref<18x18x4xf32, #tpu.memory_space<vmem>>, vector<16x16x4xf32>
    %c2_109 = arith.constant 2 : index
    %c1_110 = arith.constant 1 : index
    %c0_111 = arith.constant 0 : index
    %57 = vector.load %arg11[%c2_109, %c1_110, %c0_111] : memref<18x18x4xf32, #tpu.memory_space<vmem>>, vector<16x16x4xf32>
    %c2_112 = arith.constant 2 : index
    %c2_113 = arith.constant 2 : index
    %c0_114 = arith.constant 0 : index
    %58 = vector.load %arg11[%c2_112, %c2_113, %c0_114] : memref<18x18x4xf32, #tpu.memory_space<vmem>>, vector<16x16x4xf32>
    %59 = tpu.concatenate %50, %51, %52, %53, %54, %55, %56, %57, %58 in 2 : vector<16x16x4xf32>, vector<16x16x4xf32>, vector<16x16x4xf32>, vector<16x16x4xf32>, vector<16x16x4xf32>, vector<16x16x4xf32>, vector<16x16x4xf32>, vector<16x16x4xf32>, vector<16x16x4xf32> -> vector<16x16x36xf32>
    %60 = vector.shape_cast %59 : vector<16x16x36xf32> to vector<256x36xf32>
    %61 = arith.truncf %60 : vector<256x36xf32> to vector<256x36xbf16>
    %c0_115 = arith.constant 0 : index
    %c0_116 = arith.constant 0 : index
    %62 = vector.load %arg6[%c0_115, %c0_116] : memref<36x4xbf16, #tpu.memory_space<vmem>>, vector<36x4xbf16>
    %cst_117 = arith.constant dense<0.000000e+00> : vector<256x4xf32>
    %63 = tpu.matmul %61, %62, %cst_117 {dimension_numbers = #tpu.dot_dimension_numbers<[1], [0], [0], [1], [0, 0, 1, 1], [], []>} : vector<256x36xbf16>, vector<36x4xbf16>, vector<256x4xf32> -> vector<256x4xf32>
    %c0_118 = arith.constant 0 : index
    %c0_119 = arith.constant 0 : index
    %64 = vector.load %arg7[%c0_118, %c0_119] : memref<1x4xf32, #tpu.memory_space<vmem>>, vector<1x4xf32>
    %65 = vector.broadcast %64 : vector<1x4xf32> to vector<256x4xf32>
    %66 = arith.addf %63, %65 : vector<256x4xf32>
    %cst_120 = arith.constant 0.000000e+00 : f32
    %67 = vector.broadcast %cst_120 : f32 to vector<256x4xf32>
    %68 = arith.maximumf %66, %67 : vector<256x4xf32>
    %69 = vector.shape_cast %68 : vector<256x4xf32> to vector<16x16x4xf32>
    %c0_121 = arith.constant 0 : index
    %c0_122 = arith.constant 0 : index
    %c0_123 = arith.constant 0 : index
    %c0_124 = arith.constant 0 : index
    %70 = vector.load %arg8[%c0_121, %c0_122, %c0_123, %c0_124] : memref<1x16x16x4xf32, #tpu.memory_space<vmem>>, vector<1x16x16x4xf32>
    %71 = vector.shape_cast %70 : vector<1x16x16x4xf32> to vector<16x16x4xf32>
    %72 = vector.shape_cast %69 : vector<16x16x4xf32> to vector<1x16x16x4xf32>
    tpu.vector_store %arg8[%c0_121, %c0_122, %c0_123, %c0_124], %72 {strides = array<i32>} : memref<1x16x16x4xf32, #tpu.memory_space<vmem>>, vector<1x16x16x4xf32>,
    return
  }
  func.func @transform_0(%arg0: i32) -> (i32, i32, i32, i32) {
    %c0_i32 = arith.constant 0 : i32
    %c0_i32_0 = arith.constant 0 : i32
    %c0_i32_1 = arith.constant 0 : i32
    %c0_i32_2 = arith.constant 0 : i32
    return %arg0, %c0_i32, %c0_i32_0, %c0_i32_1 : i32, i32, i32, i32
  }
  func.func @transform_1(%arg0: i32) -> (i32, i32, i32, i32) {
    %c0_i32 = arith.constant 0 : i32
    %c0_i32_0 = arith.constant 0 : i32
    %c0_i32_1 = arith.constant 0 : i32
    %c0_i32_2 = arith.constant 0 : i32
    return %arg0, %c0_i32, %c0_i32_0, %c0_i32_1 : i32, i32, i32, i32
  }
  func.func @transform_2(%arg0: i32) -> (i32, i32) {
    %c0_i32 = arith.constant 0 : i32
    %c0_i32_0 = arith.constant 0 : i32
    %c0_i32_1 = arith.constant 0 : i32
    return %c0_i32, %c0_i32_0 : i32, i32
  }
  func.func @transform_3(%arg0: i32) -> (i32, i32) {
    %c0_i32 = arith.constant 0 : i32
    %c0_i32_0 = arith.constant 0 : i32
    %c0_i32_1 = arith.constant 0 : i32
    return %c0_i32, %c0_i32_0 : i32, i32
  }
  func.func @transform_4(%arg0: i32) -> (i32, i32) {
    %c0_i32 = arith.constant 0 : i32
    %c0_i32_0 = arith.constant 0 : i32
    %c0_i32_1 = arith.constant 0 : i32
    return %c0_i32, %c0_i32_0 : i32, i32
  }
  func.func @transform_5(%arg0: i32) -> (i32, i32) {
    %c0_i32 = arith.constant 0 : i32
    %c0_i32_0 = arith.constant 0 : i32
    %c0_i32_1 = arith.constant 0 : i32
    return %c0_i32, %c0_i32_0 : i32, i32
  }
  func.func @transform_6(%arg0: i32) -> (i32, i32) {
    %c0_i32 = arith.constant 0 : i32
    %c0_i32_0 = arith.constant 0 : i32
    %c0_i32_1 = arith.constant 0 : i32
    return %c0_i32, %c0_i32_0 : i32, i32
  }
  func.func @transform_7(%arg0: i32) -> (i32, i32, i32, i32) {
    %c0_i32 = arith.constant 0 : i32
    %c0_i32_0 = arith.constant 0 : i32
    %c0_i32_1 = arith.constant 0 : i32
    %c0_i32_2 = arith.constant 0 : i32
    return %arg0, %c0_i32, %c0_i32_0, %c0_i32_1 : i32, i32, i32, i32
  }
}

</mosaic_0001>

<llo_original>
// kernel: tile.8
$region0: #{tile.8}
  #allocation0 [shape = 's32[1]{0}', space=sflag, size = 0x4, scoped, tag = 'scoped memory for tile.8']
  %s0 = inlined_call_operand.vmem [shape: f32[4], index: 0, kind: input, shape index: {}]
  %s1 = inlined_call_operand.vmem [shape: f32[4,4], index: 1, kind: output, shape index: {}]
  // Predicated region
  $region2: #{tile.8} parent=0 // pred_check
    _
  $region3: #{tile.8} parent=0 // pred_check_branch
    %3 = sbr.rel (0) target = $region5
  $region4: #{tile.8} parent=0 // pred_region
    _
  $region5: #{tile.8} parent=0 // pred_fallthru
    _
  %v4 = vld [vmem:[%s0] ss:$0 sm:$0xff]
  %5 = vst [vmem:[%s1] sm:$0xf] %v4

// kernel: tile.9
$region0: #{tile.9}
  %s0 = inlined_call_operand.vmem [shape: f32[4,4], index: 0, kind: input, shape index: {}]
  %s1 = inlined_call_operand.vmem [shape: f32[1,16], index: 1, kind: output, shape index: {}]
  $region1: #{tile.9} parent=0
    #allocation0 [shape = 'u8[4096]{0}', space=vmem, size = 0x1000, scoped, tag = 'scoped mem for output reshape']
    #allocation1 [shape = 'u8[4096]{0}', space=vmem, size = 0x1000, scoped, tag = 'scoped mem for input reshape']
    %s3 = sshll.u32 1, 4
    %s4 = ssub.s32 %s3, 1
    %v5 = vld [vmem:[%s0] sm:%s4]
    %6 = vst [vmem:[#allocation1] sm:%s4] %v5
    %v7 = vld [vmem:[#allocation1] sm:$0x1]
    %vm8 = vcmask 31744
    %9 = vst.msk [vmem:[#allocation0] sm:$0x1] %vm8, %v7
    %s10 = scalar_lea.vmem [#allocation1], 3
    %v11 = vld [vmem:[%s10] sm:$0x1]
    %12 = vrot.lane.b32.xlu0 %v11, 12
    %v13 = vpop.permute.xlu0 %12
    %vm14 = vcmask 130144
    %15 = vst.msk [vmem:[#allocation0] sm:$0x1] %vm14, %v13
    %s16 = scalar_lea.vmem [#allocation1], 2
    %v17 = vld [vmem:[%s16] sm:$0x1]
    %18 = vrot.lane.b32.xlu0 %v17, 8
    %v19 = vpop.permute.xlu0 %18
    %vm20 = vcmask 97344
    %21 = vst.msk [vmem:[#allocation0] sm:$0x1] %vm20, %v19
    %s22 = scalar_lea.vmem [#allocation1], 1
    %v23 = vld [vmem:[%s22] sm:$0x1]
    %24 = vrot.lane.b32.xlu0 %v23, 4
    %v25 = vpop.permute.xlu0 %24
    %vm26 = vcmask 64544
    %27 = vst.msk [vmem:[#allocation0] sm:$0x1] %vm26, %v25
    %s29 = sshll.u32 1, 1
    %s30 = ssub.s32 %s29, 1
    %v32 = vld [vmem:[#allocation0] sm:%s30]
    %s33 = sshll.u32 1, 1
    %s34 = ssub.s32 %s33, 1
    %35 = vst [vmem:[%s1] sm:%s34] %v32

// kernel: up_layers_forward.2
$region0: #{up_layers_forward.2}
  #allocation0 [shape = 'u32[]', space=smem, size = 0x4, offset = 0x4, fixed_abs, tag = 'smem constant byte address 0x4 - core index']
  #allocation1 [shape = 'u32[144,128]{1,0:T(1,128)}', space=vmem, size = 0x12000, scoped, tag = 'internal scratch']
  %s0 = inlined_call_operand.vmem [shape: bf16[2,8,8,8], index: 0, kind: input, shape index: {}]
  %s1 = inlined_call_operand.vmem [shape: bf16[8,16], index: 1, kind: input, shape index: {}]
  %s2 = inlined_call_operand.vmem [shape: f32[1,16], index: 2, kind: input, shape index: {}]
  %s3 = inlined_call_operand.vmem [shape: bf16[2,8,8,16], index: 3, kind: output, shape index: {}]
  %s4 = sld [smem:[#allocation0]]
  $region45: #{up_layers_forward.2} parent=0
    _
  %s6 = ssub.s32 1, %s4
  %s7 = scalar_select 0, %s6, %s4
  loop: start=0, step=1, limit=4
  $region2: #{up_layers_forward.2} parent=0 // loop_pre_header
    _
  $region3: #{up_layers_forward.2} parent=0 // loop_header
    %s9 = sphi 0, %s13
    %p10 = scmp.ge.s32.totalorder %s9, 4
    %s19 = sphi 0, %s21
    %s22 = sphi 0, %s19
    %s23 = sphi 0, %s22
    %s39 = sphi 0, %s23
    %s43 = sphi 0, %s43
    %s45 = sphi 0, %s43
    %s46 = sphi 0, %s45
    %s60 = sphi 0, %s46
    %s64 = sphi 0, %s64
    %s66 = sphi 0, %s64
    %s67 = sphi 0, %s66
    %s81 = sphi 0, %s67
    %s87 = sphi 0, %s89
    %s90 = sphi 0, %s87
    %s91 = sphi 0, %s90
    %s107 = sphi 0, %s91
  $region4: #{up_layers_forward.2} parent=0 // loop_header_branch
    %12 = sbr.rel (%p10) target = $region8
  $region5: #{up_layers_forward.2} parent=0 // loop_body
    %s14 = ssub.s32 %s9, 1
    %s15 = ssub.s32 %s9, 2
    %s16 = sadd.s32 %s9, 1
    %s17 = ssub.s32 %s9, %s16
    %p18 = scmp.eq.s32.totalorder %s17, 0
    %s20 = sadd.s32 %s19, 1
    %s21 = scalar_select %p18, %s19, %s20
    %p24 = pneg %p18
    %p25 = scmp.eq.s32.totalorder %s9, 1
    %p26 = por %p24, %p25
    %p27 = scmp.ne.s32.totalorder %s19, %s22
    %p28 = scmp.eq.s32.totalorder %s9, 0
    %p29 = por %p27, %p28
    %p30 = scmp.ne.s32.totalorder %s19, %s22
    %p31 = scmp.eq.s32.totalorder %s14, 1
    %p32 = por %p30, %p31
    %p33 = scmp.ne.s32.totalorder %s22, %s23
    %p34 = scmp.eq.s32.totalorder %s14, 0
    %p35 = por %p33, %p34
    %p36 = scmp.ne.s32.totalorder %s22, %s23
    %p37 = scmp.eq.s32.totalorder %s15, 1
    %p38 = por %p36, %p37
    %p40 = scmp.ne.s32.totalorder %s23, %s39
    %p41 = scmp.eq.s32.totalorder %s15, 0
    %p42 = por %p40, %p41
    %s44 = sadd.s32 %s43, 1
    %p47 = scmp.eq.s32.totalorder %s9, 1
    %p48 = scmp.ne.s32.totalorder %s43, %s45
    %p49 = scmp.eq.s32.totalorder %s9, 0
    %p50 = por %p48, %p49
    %p51 = scmp.ne.s32.totalorder %s43, %s45
    %p52 = scmp.eq.s32.totalorder %s14, 1
    %p53 = por %p51, %p52
    %p54 = scmp.ne.s32.totalorder %s45, %s46
    %p55 = scmp.eq.s32.totalorder %s14, 0
    %p56 = por %p54, %p55
    %p57 = scmp.ne.s32.totalorder %s45, %s46
    %p58 = scmp.eq.s32.totalorder %s15, 1
    %p59 = por %p57, %p58
    %p61 = scmp.ne.s32.totalorder %s46, %s60
    %p62 = scmp.eq.s32.totalorder %s15, 0
    %p63 = por %p61, %p62
    %s65 = sadd.s32 %s64, 1
    %p68 = scmp.eq.s32.totalorder %s9, 1
    %p69 = scmp.ne.s32.totalorder %s64, %s66
    %p70 = scmp.eq.s32.totalorder %s9, 0
    %p71 = por %p69, %p70
    %p72 = scmp.ne.s32.totalorder %s64, %s66
    %p73 = scmp.eq.s32.totalorder %s14, 1
    %p74 = por %p72, %p73
    %p75 = scmp.ne.s32.totalorder %s66, %s67
    %p76 = scmp.eq.s32.totalorder %s14, 0
    %p77 = por %p75, %p76
    %p78 = scmp.ne.s32.totalorder %s66, %s67
    %p79 = scmp.eq.s32.totalorder %s15, 1
    %p80 = por %p78, %p79
    %p82 = scmp.ne.s32.totalorder %s67, %s81
    %p83 = scmp.eq.s32.totalorder %s15, 0
    %p84 = por %p82, %p83
    %s85 = ssub.s32 %s9, %s16
    %p86 = scmp.eq.s32.totalorder %s85, 0
    %s88 = sadd.s32 %s87, 1
    %s89 = scalar_select %p86, %s87, %s88
    %p92 = pneg %p86
    %p93 = scmp.eq.s32.totalorder %s9, 1
    %p94 = por %p92, %p93
    %p95 = scmp.ne.s32.totalorder %s87, %s90
    %p96 = scmp.eq.s32.totalorder %s9, 0
    %p97 = por %p95, %p96
    %p98 = scmp.ne.s32.totalorder %s87, %s90
    %p99 = scmp.eq.s32.totalorder %s14, 1
    %p100 = por %p98, %p99
    %p101 = scmp.ne.s32.totalorder %s90, %s91
    %p102 = scmp.eq.s32.totalorder %s14, 0
    %p103 = por %p101, %p102
    %p104 = scmp.ne.s32.totalorder %s90, %s91
    %p105 = scmp.eq.s32.totalorder %s15, 1
    %p106 = por %p104, %p105
    %p108 = scmp.ne.s32.totalorder %s91, %s107
    %p109 = scmp.eq.s32.totalorder %s15, 0
    %p110 = por %p108, %p109
    %p111 = scmp.le.s32.totalorder 1, %s9
    %p112 = scmp.lt.s32.totalorder %s9, 3
    %p113 = pnand %p111, %p112
    %p114 = pneg %p113
    // Predicated region
    $region9: #{up_layers_forward.2} parent=5 // pred_check
      _
    $region10: #{up_layers_forward.2} parent=5 // pred_check_branch
      %116 = sbr.rel (%p113) target = $region12
    $region11: #{up_layers_forward.2} parent=5 // pred_region
      %s117 = ssub.s32 %s9, 1
      // Predicated region
      $region13: #{up_layers_forward.2} parent=11 // pred_check
        %p118 = pneg %p56
      $region14: #{up_layers_forward.2} parent=11 // pred_check_branch
        %120 = sbr.rel (%p118) target = $region16
      $region15: #{up_layers_forward.2} parent=11 // pred_region
        _
      $region16: #{up_layers_forward.2} parent=11 // pred_fallthru
        _
      // Predicated region
      $region17: #{up_layers_forward.2} parent=11 // pred_check
        %p121 = pneg %p77
      $region18: #{up_layers_forward.2} parent=11 // pred_check_branch
        %123 = sbr.rel (%p121) target = $region20
      $region19: #{up_layers_forward.2} parent=11 // pred_region
        _
      $region20: #{up_layers_forward.2} parent=11 // pred_fallthru
        _
    $region12: #{up_layers_forward.2} parent=5 // pred_fallthru
      _
    %p124 = scmp.lt.s32.totalorder %s9, 2
    // Predicated region
    $region21: #{up_layers_forward.2} parent=5 // pred_check
      %p125 = pneg %p124
    $region22: #{up_layers_forward.2} parent=5 // pred_check_branch
      %127 = sbr.rel (%p125) target = $region24
    $region23: #{up_layers_forward.2} parent=5 // pred_region
      // Predicated region
      $region25: #{up_layers_forward.2} parent=23 // pred_check
        %p128 = pneg %p29
      $region26: #{up_layers_forward.2} parent=23 // pred_check_branch
        %130 = sbr.rel (%p128) target = $region28
      $region27: #{up_layers_forward.2} parent=23 // pred_region
        %p131 = scmp.lt.s32.totalorder %s9, 1
        %s132 = scalar_select %p131, %s9, 1
        %s133 = smul.addr %s132, 8
        %s134 = smul.addr %s133, 4
        %s135 = scalar_lea.vmem %s0, %s134
      $region28: #{up_layers_forward.2} parent=23 // pred_fallthru
        _
    $region24: #{up_layers_forward.2} parent=5 // pred_fallthru
      _
    %p136 = scmp.le.s32.totalorder 1, %s9
    %p137 = scmp.lt.s32.totalorder %s9, 3
    %p138 = pnand %p136, %p137
    %p139 = pneg %p138
    // Predicated region
    $region29: #{up_layers_forward.2} parent=5 // pred_check
      _
    $region30: #{up_layers_forward.2} parent=5 // pred_check_branch
      %141 = sbr.rel (%p138) target = $region32
    $region31: #{up_layers_forward.2} parent=5 // pred_region
      %s142 = ssub.s32 %s9, 1
      %p143 = scmp.lt.s32.totalorder %s14, 1
      %s144 = scalar_select %p143, %s14, 1
      %s145 = smul.addr %s144, 8
      %s146 = smul.addr %s145, 4
      %s147 = scalar_lea.vmem %s0, %s146
      %p148 = pneg %p35
      %p149 = pneg %p32
      %p150 = pneg %p56
      %p151 = pneg %p53
      %p152 = pneg %p77
      %p153 = pneg %p74
      %p154 = pneg %p103
      %p155 = pneg %p100
      %p156 = scmp.lt.s32.totalorder %s14, 1
      %s157 = scalar_select %p156, %s14, 1
      %s158 = smul.addr %s157, 8
      %s159 = smul.addr %s158, 4
      %s160 = scalar_lea.vmem %s3, %s159
      %p161 = scmp.lt.s32.totalorder %s14, 1
      %s162 = scalar_select %p161, %s14, 1
      %s163 = smul.addr %s162, 8
      %s164 = smul.addr %s163, 4
      %s165 = scalar_lea.vmem %s0, %s164
      %p166 = scmp.lt.s32.totalorder %s14, 1
      %s167 = scalar_select %p166, %s14, 1
      %s168 = smul.addr %s167, 8
      %s169 = smul.addr %s168, 4
      %s170 = scalar_lea.vmem %s3, %s169
      %v172 = vld [vmem:[%s165] sm:$0xf]
      %v173 = vld [vmem:[%s165 + $0x4] sm:$0xf]
      %v174 = vld [vmem:[%s165 + $0x8] sm:$0xf]
      %v175 = vld [vmem:[%s165 + $0xc] sm:$0xf]
      %v176 = vld [vmem:[%s165 + $0x10] sm:$0xf]
      %v177 = vld [vmem:[%s165 + $0x14] sm:$0xf]
      %v178 = vld [vmem:[%s165 + $0x18] sm:$0xf]
      %v179 = vld [vmem:[%s165 + $0x1c] sm:$0xf]
      %v180 = vld [vmem:[%s1] sm:$0xf]
      %v181 = vld [vmem:[%s2] sm:$0x1]
      %v183 = vlaneseq
      %v184 = vshrl.u32 %v183, 7
      %v185 = vsub.s32 0, %v184
      %v186 = vrot.slane %v181, %v185
      %v196 = vunpack.c.l.b16 %v172
      %v197 = vunpack.c.l.b16 %v173
      %v198 = vunpack.c.l.b16 %v174
      %v199 = vunpack.c.l.b16 %v175
      %v200 = vunpack.c.l.b16 %v176
      %v201 = vunpack.c.l.b16 %v177
      %v202 = vunpack.c.l.b16 %v178
      %v203 = vunpack.c.l.b16 %v179
      %v204 = vpack.c.b16 %v197, %v196
      %v205 = vpack.c.b16 %v199, %v198
      %v206 = vpack.c.b16 %v201, %v200
      %v207 = vpack.c.b16 %v203, %v202
      %vm208 = vcmask 64512
      %v210 = vsel %vm208, %v204, 0
      %v213 = vsel %vm208, %v205, 0
      %v216 = vsel %vm208, %v206, 0
      %v219 = vsel %vm208, %v207, 0
      %vm221 = vcmask 1043456
      %v223 = vsel %vm221, %v180, 0
      %225 = vmatprep.subr.bf16.mxu0 0
      %226 = vmatpush1.bf16.msra.mxu0 0
      %227 = vmatprep.subr.bf16.mxu0 0
      %228 = vmatpush1.bf16.msra.mxu0 0
      %229 = vmatprep.subr.bf16.mxu0 0
      %230 = vmatpush1.bf16.msra.mxu0 0
      %231 = vmatprep.subr.bf16.mxu0 0
      %232 = vmatpush1.bf16.msra.mxu0 0
      %233 = vmatprep.subr.bf16.mxu0 0
      %234 = vmatpush1.bf16.msra.mxu0 0
      %235 = vmatprep.subr.bf16.mxu0 0
      %236 = vmatpush1.bf16.msra.mxu0 0
      %237 = vmatprep.subr.bf16.mxu0 0
      %238 = vmatpush1.bf16.msra.mxu0 0
      %239 = vmatprep.subr.bf16.mxu0 0
      %240 = vmatpush1.bf16.msra.mxu0 %v223
      %241 = vmatprep.subr.bf16.mxu0 0
      %242 = vmatpush2.bf16.msra.mxu0 0
      %243 = vmatprep.subr.bf16.mxu0 0
      %244 = vmatpush2.bf16.msra.mxu0 0
      %245 = vmatprep.subr.bf16.mxu0 0
      %246 = vmatpush2.bf16.msra.mxu0 0
      %247 = vmatprep.subr.bf16.mxu0 0
      %248 = vmatpush2.bf16.msra.mxu0 0
      %249 = vmatprep.subr.bf16.mxu0 0
      %250 = vmatpush2.bf16.msra.mxu0 0
      %251 = vmatprep.subr.bf16.mxu0 0
      %252 = vmatpush2.bf16.msra.mxu0 0
      %253 = vmatprep.subr.bf16.mxu0 0
      %254 = vmatpush2.bf16.msra.mxu0 0
      %255 = vmatprep.subr.bf16.mxu0 0
      %256 = vmatpush2.bf16.msra.mxu0 0
      %257 = vmatprep.mubr.bf16.mxu0 0
      %258 = vmatmul.mubr.bf16.gmra.mxu0 %v210
      %v259 = vpop.f32.mrf.mxu0
      %v260 = vadd.f32 %v186, %v259
      %v261 = vpop.f32.mrf.mxu0
      %v262 = vpop.f32.mrf.mxu0
      %v263 = vadd.f32 %v186, %v262
      %v264 = vpop.f32.mrf.mxu0
      %265 = vmatprep.mubr.bf16.mxu0 0
      %266 = vmatmul.mubr.bf16.gmra.mxu0 %v213
      %v267 = vpop.f32.mrf.mxu0
      %v268 = vadd.f32 %v186, %v267
      %v269 = vpop.f32.mrf.mxu0
      %v270 = vpop.f32.mrf.mxu0
      %v271 = vadd.f32 %v186, %v270
      %v272 = vpop.f32.mrf.mxu0
      %273 = vmatprep.mubr.bf16.mxu0 0
      %274 = vmatmul.mubr.bf16.gmra.mxu0 %v216
      %v275 = vpop.f32.mrf.mxu0
      %v276 = vadd.f32 %v186, %v275
      %v277 = vpop.f32.mrf.mxu0
      %v278 = vpop.f32.mrf.mxu0
      %v279 = vadd.f32 %v186, %v278
      %v280 = vpop.f32.mrf.mxu0
      %281 = vmatprep.mubr.bf16.mxu0 0
      %282 = vmatmul.mubr.bf16.gmra.mxu0 %v219
      %v283 = vpop.f32.mrf.mxu0
      %v284 = vadd.f32 %v186, %v283
      %v285 = vpop.f32.mrf.mxu0
      %v286 = vpop.f32.mrf.mxu0
      %v287 = vadd.f32 %v186, %v286
      %v288 = vpop.f32.mrf.mxu0
      %289 = vdwg.mxu0
      %v290 = vpack.c.bf16 %v260, %v260
      %v291 = vpack.c.bf16 %v263, %v263
      %v292 = vpack.c.bf16 %v268, %v268
      %v293 = vpack.c.bf16 %v271, %v271
      %v294 = vpack.c.bf16 %v276, %v276
      %v295 = vpack.c.bf16 %v279, %v279
      %v296 = vpack.c.bf16 %v284, %v284
      %v297 = vpack.c.bf16 %v287, %v287
      %vm298 = vcmask 125952
      %299 = vst.msk [vmem:[%s170] sm:$0xf] %vm298, %v290
      %300 = vst.msk [vmem:[%s170 + $0x4] sm:$0xf] %vm298, %v291
      %301 = vst.msk [vmem:[%s170 + $0x8] sm:$0xf] %vm298, %v292
      %302 = vst.msk [vmem:[%s170 + $0xc] sm:$0xf] %vm298, %v293
      %303 = vst.msk [vmem:[%s170 + $0x10] sm:$0xf] %vm298, %v294
      %304 = vst.msk [vmem:[%s170 + $0x14] sm:$0xf] %vm298, %v295
      %305 = vst.msk [vmem:[%s170 + $0x18] sm:$0xf] %vm298, %v296
      %306 = vst.msk [vmem:[%s170 + $0x1c] sm:$0xf] %vm298, %v297
      %p307 = scmp.lt.s32.totalorder %s14, 1
      %s308 = scalar_select %p307, %s14, 1
      %s309 = smul.addr %s308, 8
      %s310 = smul.addr %s309, 4
      %s311 = scalar_lea.vmem %s3, %s310
      // Predicated region
      $region33: #{up_layers_forward.2} parent=31 // pred_check
        %p312 = pneg %p100
      $region34: #{up_layers_forward.2} parent=31 // pred_check_branch
        %314 = sbr.rel (%p312) target = $region36
      $region35: #{up_layers_forward.2} parent=31 // pred_region
        _
      $region36: #{up_layers_forward.2} parent=31 // pred_fallthru
        _
    $region32: #{up_layers_forward.2} parent=5 // pred_fallthru
      _
    %p315 = scmp.le.s32.totalorder 2, %s9
    // Predicated region
    $region37: #{up_layers_forward.2} parent=5 // pred_check
      %p316 = pneg %p315
    $region38: #{up_layers_forward.2} parent=5 // pred_check_branch
      %318 = sbr.rel (%p316) target = $region40
    $region39: #{up_layers_forward.2} parent=5 // pred_region
      %s319 = ssub.s32 %s9, 2
      // Predicated region
      $region41: #{up_layers_forward.2} parent=39 // pred_check
        %p320 = pneg %p106
      $region42: #{up_layers_forward.2} parent=39 // pred_check_branch
        %322 = sbr.rel (%p320) target = $region44
      $region43: #{up_layers_forward.2} parent=39 // pred_region
        %p323 = scmp.lt.s32.totalorder %s15, 1
        %s324 = scalar_select %p323, %s15, 1
        %s325 = smul.addr %s324, 8
        %s326 = smul.addr %s325, 4
        %s327 = scalar_lea.vmem %s3, %s326
      $region44: #{up_layers_forward.2} parent=39 // pred_fallthru
        _
    $region40: #{up_layers_forward.2} parent=5 // pred_fallthru
      _
  $region6: #{up_layers_forward.2} parent=0 // loop_footer
    %s13 = sadd.s32 1, %s9
  $region7: #{up_layers_forward.2} parent=0 // loop_footer_branch
    %8 = sbr.rel target = $region3
  $region8: #{up_layers_forward.2} parent=0 // loop_exit
    _

// kernel: up_layers_forward.3
$region0: #{up_layers_forward.3}
  #allocation0 [shape = 'u32[]', space=smem, size = 0x4, offset = 0x4, fixed_abs, tag = 'smem constant byte address 0x4 - core index']
  #allocation1 [shape = 'u32[144,128]{1,0:T(1,128)}', space=vmem, size = 0x12000, scoped, tag = 'internal scratch']
  #allocation2 [shape = 'f32[18,18,4]{2,1,0:T(8,128)}', space=vmem, size = 0x36000, scoped, tag = 'scratch operand']
  #allocation3 [shape = 'f32[18,18,4]{2,1,0:T(8,128)}', space=vmem, size = 0x36000, scoped, tag = 'scratch operand']
  #allocation4 [shape = 'f32[18,18,4]{2,1,0:T(8,128)}', space=vmem, size = 0x36000, scoped, tag = 'scratch operand']
  %s0 = inlined_call_operand.vmem [shape: bf16[2,16,16,4], index: 0, kind: input, shape index: {}]
  %s1 = inlined_call_operand.vmem [shape: bf16[2,16,16,4], index: 1, kind: input, shape index: {}]
  %s2 = inlined_call_operand.vmem [shape: bf16[36,4], index: 2, kind: input, shape index: {}]
  %s3 = inlined_call_operand.vmem [shape: bf16[36,4], index: 3, kind: input, shape index: {}]
  %s4 = inlined_call_operand.vmem [shape: f32[1,4], index: 4, kind: input, shape index: {}]
  %s5 = inlined_call_operand.vmem [shape: bf16[36,4], index: 5, kind: input, shape index: {}]
  %s6 = inlined_call_operand.vmem [shape: f32[1,4], index: 6, kind: input, shape index: {}]
  %s7 = inlined_call_operand.vmem [shape: f32[2,16,16,4], index: 7, kind: output, shape index: {}]
  %s8 = sld [smem:[#allocation0]]
  $region61: #{up_layers_forward.3} parent=0
    _
  %s10 = ssub.s32 1, %s8
  %s11 = scalar_select 0, %s10, %s8
  loop: start=0, step=1, limit=4
  $region2: #{up_layers_forward.3} parent=0 // loop_pre_header
    _
  $region3: #{up_layers_forward.3} parent=0 // loop_header
    %s13 = sphi 0, %s17
    %p14 = scmp.ge.s32.totalorder %s13, 4
    %s23 = sphi 0, %s25
    %s26 = sphi 0, %s23
    %s27 = sphi 0, %s26
    %s43 = sphi 0, %s27
    %s49 = sphi 0, %s51
    %s52 = sphi 0, %s49
    %s53 = sphi 0, %s52
    %s69 = sphi 0, %s53
    %s73 = sphi 0, %s73
    %s75 = sphi 0, %s73
    %s76 = sphi 0, %s75
    %s90 = sphi 0, %s76
    %s94 = sphi 0, %s94
    %s96 = sphi 0, %s94
    %s97 = sphi 0, %s96
    %s111 = sphi 0, %s97
    %s115 = sphi 0, %s115
    %s117 = sphi 0, %s115
    %s118 = sphi 0, %s117
    %s132 = sphi 0, %s118
    %s136 = sphi 0, %s136
    %s138 = sphi 0, %s136
    %s139 = sphi 0, %s138
    %s153 = sphi 0, %s139
    %s157 = sphi 0, %s157
    %s159 = sphi 0, %s157
    %s160 = sphi 0, %s159
    %s174 = sphi 0, %s160
    %s180 = sphi 0, %s182
    %s183 = sphi 0, %s180
    %s184 = sphi 0, %s183
    %s200 = sphi 0, %s184
  $region4: #{up_layers_forward.3} parent=0 // loop_header_branch
    %16 = sbr.rel (%p14) target = $region8
  $region5: #{up_layers_forward.3} parent=0 // loop_body
    %s18 = ssub.s32 %s13, 1
    %s19 = ssub.s32 %s13, 2
    %s20 = sadd.s32 %s13, 1
    %s21 = ssub.s32 %s13, %s20
    %p22 = scmp.eq.s32.totalorder %s21, 0
    %s24 = sadd.s32 %s23, 1
    %s25 = scalar_select %p22, %s23, %s24
    %p28 = pneg %p22
    %p29 = scmp.eq.s32.totalorder %s13, 1
    %p30 = por %p28, %p29
    %p31 = scmp.ne.s32.totalorder %s23, %s26
    %p32 = scmp.eq.s32.totalorder %s13, 0
    %p33 = por %p31, %p32
    %p34 = scmp.ne.s32.totalorder %s23, %s26
    %p35 = scmp.eq.s32.totalorder %s18, 1
    %p36 = por %p34, %p35
    %p37 = scmp.ne.s32.totalorder %s26, %s27
    %p38 = scmp.eq.s32.totalorder %s18, 0
    %p39 = por %p37, %p38
    %p40 = scmp.ne.s32.totalorder %s26, %s27
    %p41 = scmp.eq.s32.totalorder %s19, 1
    %p42 = por %p40, %p41
    %p44 = scmp.ne.s32.totalorder %s27, %s43
    %p45 = scmp.eq.s32.totalorder %s19, 0
    %p46 = por %p44, %p45
    %s47 = ssub.s32 %s13, %s20
    %p48 = scmp.eq.s32.totalorder %s47, 0
    %s50 = sadd.s32 %s49, 1
    %s51 = scalar_select %p48, %s49, %s50
    %p54 = pneg %p48
    %p55 = scmp.eq.s32.totalorder %s13, 1
    %p56 = por %p54, %p55
    %p57 = scmp.ne.s32.totalorder %s49, %s52
    %p58 = scmp.eq.s32.totalorder %s13, 0
    %p59 = por %p57, %p58
    %p60 = scmp.ne.s32.totalorder %s49, %s52
    %p61 = scmp.eq.s32.totalorder %s18, 1
    %p62 = por %p60, %p61
    %p63 = scmp.ne.s32.totalorder %s52, %s53
    %p64 = scmp.eq.s32.totalorder %s18, 0
    %p65 = por %p63, %p64
    %p66 = scmp.ne.s32.totalorder %s52, %s53
    %p67 = scmp.eq.s32.totalorder %s19, 1
    %p68 = por %p66, %p67
    %p70 = scmp.ne.s32.totalorder %s53, %s69
    %p71 = scmp.eq.s32.totalorder %s19, 0
    %p72 = por %p70, %p71
    %s74 = sadd.s32 %s73, 1
    %p77 = scmp.eq.s32.totalorder %s13, 1
    %p78 = scmp.ne.s32.totalorder %s73, %s75
    %p79 = scmp.eq.s32.totalorder %s13, 0
    %p80 = por %p78, %p79
    %p81 = scmp.ne.s32.totalorder %s73, %s75
    %p82 = scmp.eq.s32.totalorder %s18, 1
    %p83 = por %p81, %p82
    %p84 = scmp.ne.s32.totalorder %s75, %s76
    %p85 = scmp.eq.s32.totalorder %s18, 0
    %p86 = por %p84, %p85
    %p87 = scmp.ne.s32.totalorder %s75, %s76
    %p88 = scmp.eq.s32.totalorder %s19, 1
    %p89 = por %p87, %p88
    %p91 = scmp.ne.s32.totalorder %s76, %s90
    %p92 = scmp.eq.s32.totalorder %s19, 0
    %p93 = por %p91, %p92
    %s95 = sadd.s32 %s94, 1
    %p98 = scmp.eq.s32.totalorder %s13, 1
    %p99 = scmp.ne.s32.totalorder %s94, %s96
    %p100 = scmp.eq.s32.totalorder %s13, 0
    %p101 = por %p99, %p100
    %p102 = scmp.ne.s32.totalorder %s94, %s96
    %p103 = scmp.eq.s32.totalorder %s18, 1
    %p104 = por %p102, %p103
    %p105 = scmp.ne.s32.totalorder %s96, %s97
    %p106 = scmp.eq.s32.totalorder %s18, 0
    %p107 = por %p105, %p106
    %p108 = scmp.ne.s32.totalorder %s96, %s97
    %p109 = scmp.eq.s32.totalorder %s19, 1
    %p110 = por %p108, %p109
    %p112 = scmp.ne.s32.totalorder %s97, %s111
    %p113 = scmp.eq.s32.totalorder %s19, 0
    %p114 = por %p112, %p113
    %s116 = sadd.s32 %s115, 1
    %p119 = scmp.eq.s32.totalorder %s13, 1
    %p120 = scmp.ne.s32.totalorder %s115, %s117
    %p121 = scmp.eq.s32.totalorder %s13, 0
    %p122 = por %p120, %p121
    %p123 = scmp.ne.s32.totalorder %s115, %s117
    %p124 = scmp.eq.s32.totalorder %s18, 1
    %p125 = por %p123, %p124
    %p126 = scmp.ne.s32.totalorder %s117, %s118
    %p127 = scmp.eq.s32.totalorder %s18, 0
    %p128 = por %p126, %p127
    %p129 = scmp.ne.s32.totalorder %s117, %s118
    %p130 = scmp.eq.s32.totalorder %s19, 1
    %p131 = por %p129, %p130
    %p133 = scmp.ne.s32.totalorder %s118, %s132
    %p134 = scmp.eq.s32.totalorder %s19, 0
    %p135 = por %p133, %p134
    %s137 = sadd.s32 %s136, 1
    %p140 = scmp.eq.s32.totalorder %s13, 1
    %p141 = scmp.ne.s32.totalorder %s136, %s138
    %p142 = scmp.eq.s32.totalorder %s13, 0
    %p143 = por %p141, %p142
    %p144 = scmp.ne.s32.totalorder %s136, %s138
    %p145 = scmp.eq.s32.totalorder %s18, 1
    %p146 = por %p144, %p145
    %p147 = scmp.ne.s32.totalorder %s138, %s139
    %p148 = scmp.eq.s32.totalorder %s18, 0
    %p149 = por %p147, %p148
    %p150 = scmp.ne.s32.totalorder %s138, %s139
    %p151 = scmp.eq.s32.totalorder %s19, 1
    %p152 = por %p150, %p151
    %p154 = scmp.ne.s32.totalorder %s139, %s153
    %p155 = scmp.eq.s32.totalorder %s19, 0
    %p156 = por %p154, %p155
    %s158 = sadd.s32 %s157, 1
    %p161 = scmp.eq.s32.totalorder %s13, 1
    %p162 = scmp.ne.s32.totalorder %s157, %s159
    %p163 = scmp.eq.s32.totalorder %s13, 0
    %p164 = por %p162, %p163
    %p165 = scmp.ne.s32.totalorder %s157, %s159
    %p166 = scmp.eq.s32.totalorder %s18, 1
    %p167 = por %p165, %p166
    %p168 = scmp.ne.s32.totalorder %s159, %s160
    %p169 = scmp.eq.s32.totalorder %s18, 0
    %p170 = por %p168, %p169
    %p171 = scmp.ne.s32.totalorder %s159, %s160
    %p172 = scmp.eq.s32.totalorder %s19, 1
    %p173 = por %p171, %p172
    %p175 = scmp.ne.s32.totalorder %s160, %s174
    %p176 = scmp.eq.s32.totalorder %s19, 0
    %p177 = por %p175, %p176
    %s178 = ssub.s32 %s13, %s20
    %p179 = scmp.eq.s32.totalorder %s178, 0
    %s181 = sadd.s32 %s180, 1
    %s182 = scalar_select %p179, %s180, %s181
    %p185 = pneg %p179
    %p186 = scmp.eq.s32.totalorder %s13, 1
    %p187 = por %p185, %p186
    %p188 = scmp.ne.s32.totalorder %s180, %s183
    %p189 = scmp.eq.s32.totalorder %s13, 0
    %p190 = por %p188, %p189
    %p191 = scmp.ne.s32.totalorder %s180, %s183
    %p192 = scmp.eq.s32.totalorder %s18, 1
    %p193 = por %p191, %p192
    %p194 = scmp.ne.s32.totalorder %s183, %s184
    %p195 = scmp.eq.s32.totalorder %s18, 0
    %p196 = por %p194, %p195
    %p197 = scmp.ne.s32.totalorder %s183, %s184
    %p198 = scmp.eq.s32.totalorder %s19, 1
    %p199 = por %p197, %p198
    %p201 = scmp.ne.s32.totalorder %s184, %s200
    %p202 = scmp.eq.s32.totalorder %s19, 0
    %p203 = por %p201, %p202
    %p204 = scmp.le.s32.totalorder 1, %s13
    %p205 = scmp.lt.s32.totalorder %s13, 3
    %p206 = pnand %p204, %p205
    %p207 = pneg %p206
    // Predicated region
    $region9: #{up_layers_forward.3} parent=5 // pred_check
      _
    $region10: #{up_layers_forward.3} parent=5 // pred_check_branch
      %209 = sbr.rel (%p206) target = $region12
    $region11: #{up_layers_forward.3} parent=5 // pred_region
      %s210 = ssub.s32 %s13, 1
      // Predicated region
      $region13: #{up_layers_forward.3} parent=11 // pred_check
        %p211 = pneg %p86
      $region14: #{up_layers_forward.3} parent=11 // pred_check_branch
        %213 = sbr.rel (%p211) target = $region16
      $region15: #{up_layers_forward.3} parent=11 // pred_region
        _
      $region16: #{up_layers_forward.3} parent=11 // pred_fallthru
        _
      // Predicated region
      $region17: #{up_layers_forward.3} parent=11 // pred_check
        %p214 = pneg %p107
      $region18: #{up_layers_forward.3} parent=11 // pred_check_branch
        %216 = sbr.rel (%p214) target = $region20
      $region19: #{up_layers_forward.3} parent=11 // pred_region
        _
      $region20: #{up_layers_forward.3} parent=11 // pred_fallthru
        _
      // Predicated region
      $region21: #{up_layers_forward.3} parent=11 // pred_check
        %p217 = pneg %p128
      $region22: #{up_layers_forward.3} parent=11 // pred_check_branch
        %219 = sbr.rel (%p217) target = $region24
      $region23: #{up_layers_forward.3} parent=11 // pred_region
        _
      $region24: #{up_layers_forward.3} parent=11 // pred_fallthru
        _
      // Predicated region
      $region25: #{up_layers_forward.3} parent=11 // pred_check
        %p220 = pneg %p149
      $region26: #{up_layers_forward.3} parent=11 // pred_check_branch
        %222 = sbr.rel (%p220) target = $region28
      $region27: #{up_layers_forward.3} parent=11 // pred_region
        _
      $region28: #{up_layers_forward.3} parent=11 // pred_fallthru
        _
      // Predicated region
      $region29: #{up_layers_forward.3} parent=11 // pred_check
        %p223 = pneg %p170
      $region30: #{up_layers_forward.3} parent=11 // pred_check_branch
        %225 = sbr.rel (%p223) target = $region32
      $region31: #{up_layers_forward.3} parent=11 // pred_region
        _
      $region32: #{up_layers_forward.3} parent=11 // pred_fallthru
        _
    $region12: #{up_layers_forward.3} parent=5 // pred_fallthru
      _
    %p226 = scmp.lt.s32.totalorder %s13, 2
    // Predicated region
    $region33: #{up_layers_forward.3} parent=5 // pred_check
      %p227 = pneg %p226
    $region34: #{up_layers_forward.3} parent=5 // pred_check_branch
      %229 = sbr.rel (%p227) target = $region36
    $region35: #{up_layers_forward.3} parent=5 // pred_region
      // Predicated region
      $region37: #{up_layers_forward.3} parent=35 // pred_check
        %p230 = pneg %p33
      $region38: #{up_layers_forward.3} parent=35 // pred_check_branch
        %232 = sbr.rel (%p230) target = $region40
      $region39: #{up_layers_forward.3} parent=35 // pred_region
        %p233 = scmp.lt.s32.totalorder %s13, 1
        %s234 = scalar_select %p233, %s13, 1
        %s235 = smul.addr %s234, 32
        %s236 = smul.addr %s235, 4
        %s237 = scalar_lea.vmem %s0, %s236
      $region40: #{up_layers_forward.3} parent=35 // pred_fallthru
        _
      // Predicated region
      $region41: #{up_layers_forward.3} parent=35 // pred_check
        %p238 = pneg %p59
      $region42: #{up_layers_forward.3} parent=35 // pred_check_branch
        %240 = sbr.rel (%p238) target = $region44
      $region43: #{up_layers_forward.3} parent=35 // pred_region
        %p241 = scmp.lt.s32.totalorder %s13, 1
        %s242 = scalar_select %p241, %s13, 1
        %s243 = smul.addr %s242, 32
        %s244 = smul.addr %s243, 4
        %s245 = scalar_lea.vmem %s1, %s244
      $region44: #{up_layers_forward.3} parent=35 // pred_fallthru
        _
    $region36: #{up_layers_forward.3} parent=5 // pred_fallthru
      _
    %p246 = scmp.le.s32.totalorder 1, %s13
    %p247 = scmp.lt.s32.totalorder %s13, 3
    %p248 = pnand %p246, %p247
    %p249 = pneg %p248
    // Predicated region
    $region45: #{up_layers_forward.3} parent=5 // pred_check
      _
    $region46: #{up_layers_forward.3} parent=5 // pred_check_branch
      %251 = sbr.rel (%p248) target = $region48
    $region47: #{up_layers_forward.3} parent=5 // pred_region
      %s252 = ssub.s32 %s13, 1
      %p253 = scmp.lt.s32.totalorder %s18, 1
      %s254 = scalar_select %p253, %s18, 1
      %s255 = smul.addr %s254, 32
      %s256 = smul.addr %s255, 4
      %s257 = scalar_lea.vmem %s0, %s256
      %p258 = pneg %p39
      %p259 = pneg %p36
      %p260 = scmp.lt.s32.totalorder %s18, 1
      %s261 = scalar_select %p260, %s18, 1
      %s262 = smul.addr %s261, 32
      %s263 = smul.addr %s262, 4
      %s264 = scalar_lea.vmem %s1, %s263
      %p265 = pneg %p65
      %p266 = pneg %p62
      %p267 = pneg %p86
      %p268 = pneg %p83
      %p269 = pneg %p107
      %p270 = pneg %p104
      %p271 = pneg %p128
      %p272 = pneg %p125
      %p273 = pneg %p149
      %p274 = pneg %p146
      %p275 = pneg %p170
      %p276 = pneg %p167
      %p277 = pneg %p196
      %p278 = pneg %p193
      %p279 = scmp.lt.s32.totalorder %s18, 1
      %s280 = scalar_select %p279, %s18, 1
      %s281 = smul.addr %s280, 32
      %s282 = smul.addr %s281, 8
      %s283 = scalar_lea.vmem %s7, %s282
      %p284 = scmp.lt.s32.totalorder %s18, 1
      %s285 = scalar_select %p284, %s18, 1
      %s286 = smul.addr %s285, 32
      %s287 = smul.addr %s286, 4
      %s288 = scalar_lea.vmem %s0, %s287
      %p289 = scmp.lt.s32.totalorder %s18, 1
      %s290 = scalar_select %p289, %s18, 1
      %s291 = smul.addr %s290, 32
      %s292 = smul.addr %s291, 4
      %s293 = scalar_lea.vmem %s1, %s292
      %p294 = scmp.lt.s32.totalorder %s18, 1
      %s295 = scalar_select %p294, %s18, 1
      %s296 = smul.addr %s295, 32
      %s297 = smul.addr %s296, 8
      %s298 = scalar_lea.vmem %s7, %s297
      %vm300 = vcmask 31744
      %301 = vst.msk [vmem:[#allocation2] sm:$0xff] %vm300, 0.0
      %302 = vst.msk [vmem:[#allocation2 + $0x8] sm:$0xff] %vm300, 0.0
      %vm303 = vcmask 25600
      %304 = vst.msk [vmem:[#allocation2 + $0x10] sm:$0x3] %vm303, 0.0
      %305 = vst.msk [vmem:[#allocation2 + $0x18] sm:$0xff] %vm300, 0.0
      %306 = vst.msk [vmem:[#allocation2 + $0x20] sm:$0xff] %vm300, 0.0
      %307 = vst.msk [vmem:[#allocation2 + $0x28] sm:$0x3] %vm303, 0.0
      %308 = vst.msk [vmem:[#allocation2 + $0x30] sm:$0xff] %vm300, 0.0
      %309 = vst.msk [vmem:[#allocation2 + $0x38] sm:$0xff] %vm300, 0.0
      %310 = vst.msk [vmem:[#allocation2 + $0x40] sm:$0x3] %vm303, 0.0
      %311 = vst.msk [vmem:[#allocation2 + $0x48] sm:$0xff] %vm300, 0.0
      %312 = vst.msk [vmem:[#allocation2 + $0x50] sm:$0xff] %vm300, 0.0
      %313 = vst.msk [vmem:[#allocation2 + $0x58] sm:$0x3] %vm303, 0.0
      %314 = vst.msk [vmem:[#allocation2 + $0x60] sm:$0xff] %vm300, 0.0
      %315 = vst.msk [vmem:[#allocation2 + $0x68] sm:$0xff] %vm300, 0.0
      %316 = vst.msk [vmem:[#allocation2 + $0x70] sm:$0x3] %vm303, 0.0
      %317 = vst.msk [vmem:[#allocation2 + $0x78] sm:$0xff] %vm300, 0.0
      %318 = vst.msk [vmem:[#allocation2 + $0x80] sm:$0xff] %vm300, 0.0
      %319 = vst.msk [vmem:[#allocation2 + $0x88] sm:$0x3] %vm303, 0.0
      %320 = vst.msk [vmem:[#allocation2 + $0x90] sm:$0xff] %vm300, 0.0
      %321 = vst.msk [vmem:[#allocation2 + $0x98] sm:$0xff] %vm300, 0.0
      %322 = vst.msk [vmem:[#allocation2 + $0xa0] sm:$0x3] %vm303, 0.0
      %323 = vst.msk [vmem:[#allocation2 + $0xa8] sm:$0xff] %vm300, 0.0
      %324 = vst.msk [vmem:[#allocation2 + $0xb0] sm:$0xff] %vm300, 0.0
      %325 = vst.msk [vmem:[#allocation2 + $0xb8] sm:$0x3] %vm303, 0.0
      %326 = vst.msk [vmem:[#allocation2 + $0xc0] sm:$0xff] %vm300, 0.0
      %327 = vst.msk [vmem:[#allocation2 + $0xc8] sm:$0xff] %vm300, 0.0
      %328 = vst.msk [vmem:[#allocation2 + $0xd0] sm:$0x3] %vm303, 0.0
      %329 = vst.msk [vmem:[#allocation2 + $0xd8] sm:$0xff] %vm300, 0.0
      %330 = vst.msk [vmem:[#allocation2 + $0xe0] sm:$0xff] %vm300, 0.0
      %331 = vst.msk [vmem:[#allocation2 + $0xe8] sm:$0x3] %vm303, 0.0
      %332 = vst.msk [vmem:[#allocation2 + $0xf0] sm:$0xff] %vm300, 0.0
      %333 = vst.msk [vmem:[#allocation2 + $0xf8] sm:$0xff] %vm300, 0.0
      %334 = vst.msk [vmem:[#allocation2 + $0x100] sm:$0x3] %vm303, 0.0
      %335 = vst.msk [vmem:[#allocation2 + $0x108] sm:$0xff] %vm300, 0.0
      %336 = vst.msk [vmem:[#allocation2 + $0x110] sm:$0xff] %vm300, 0.0
      %337 = vst.msk [vmem:[#allocation2 + $0x118] sm:$0x3] %vm303, 0.0
      %338 = vst.msk [vmem:[#allocation2 + $0x120] sm:$0xff] %vm300, 0.0
      %339 = vst.msk [vmem:[#allocation2 + $0x128] sm:$0xff] %vm300, 0.0
      %340 = vst.msk [vmem:[#allocation2 + $0x130] sm:$0x3] %vm303, 0.0
      %341 = vst.msk [vmem:[#allocation2 + $0x138] sm:$0xff] %vm300, 0.0
      %342 = vst.msk [vmem:[#allocation2 + $0x140] sm:$0xff] %vm300, 0.0
      %343 = vst.msk [vmem:[#allocation2 + $0x148] sm:$0x3] %vm303, 0.0
      %344 = vst.msk [vmem:[#allocation2 + $0x150] sm:$0xff] %vm300, 0.0
      %345 = vst.msk [vmem:[#allocation2 + $0x158] sm:$0xff] %vm300, 0.0
      %346 = vst.msk [vmem:[#allocation2 + $0x160] sm:$0x3] %vm303, 0.0
      %347 = vst.msk [vmem:[#allocation2 + $0x168] sm:$0xff] %vm300, 0.0
      %348 = vst.msk [vmem:[#allocation2 + $0x170] sm:$0xff] %vm300, 0.0
      %349 = vst.msk [vmem:[#allocation2 + $0x178] sm:$0x3] %vm303, 0.0
      %350 = vst.msk [vmem:[#allocation2 + $0x180] sm:$0xff] %vm300, 0.0
      %351 = vst.msk [vmem:[#allocation2 + $0x188] sm:$0xff] %vm300, 0.0
      %352 = vst.msk [vmem:[#allocation2 + $0x190] sm:$0x3] %vm303, 0.0
      %353 = vst.msk [vmem:[#allocation2 + $0x198] sm:$0xff] %vm300, 0.0
      %354 = vst.msk [vmem:[#allocation2 + $0x1a0] sm:$0xff] %vm300, 0.0
      %355 = vst.msk [vmem:[#allocation2 + $0x1a8] sm:$0x3] %vm303, 0.0
      %356 = vst.msk [vmem:[#allocation3] sm:$0xff] %vm300, 0.0
      %357 = vst.msk [vmem:[#allocation3 + $0x8] sm:$0xff] %vm300, 0.0
      %358 = vst.msk [vmem:[#allocation3 + $0x10] sm:$0x3] %vm303, 0.0
      %359 = vst.msk [vmem:[#allocation3 + $0x18] sm:$0xff] %vm300, 0.0
      %360 = vst.msk [vmem:[#allocation3 + $0x20] sm:$0xff] %vm300, 0.0
      %361 = vst.msk [vmem:[#allocation3 + $0x28] sm:$0x3] %vm303, 0.0
      %362 = vst.msk [vmem:[#allocation3 + $0x30] sm:$0xff] %vm300, 0.0
      %363 = vst.msk [vmem:[#allocation3 + $0x38] sm:$0xff] %vm300, 0.0
      %364 = vst.msk [vmem:[#allocation3 + $0x40] sm:$0x3] %vm303, 0.0
      %365 = vst.msk [vmem:[#allocation3 + $0x48] sm:$0xff] %vm300, 0.0
      %366 = vst.msk [vmem:[#allocation3 + $0x50] sm:$0xff] %vm300, 0.0
      %367 = vst.msk [vmem:[#allocation3 + $0x58] sm:$0x3] %vm303, 0.0
      %368 = vst.msk [vmem:[#allocation3 + $0x60] sm:$0xff] %vm300, 0.0
      %369 = vst.msk [vmem:[#allocation3 + $0x68] sm:$0xff] %vm300, 0.0
      %370 = vst.msk [vmem:[#allocation3 + $0x70] sm:$0x3] %vm303, 0.0
      %371 = vst.msk [vmem:[#allocation3 + $0x78] sm:$0xff] %vm300, 0.0
      %372 = vst.msk [vmem:[#allocation3 + $0x80] sm:$0xff] %vm300, 0.0
      %373 = vst.msk [vmem:[#allocation3 + $0x88] sm:$0x3] %vm303, 0.0
      %374 = vst.msk [vmem:[#allocation3 + $0x90] sm:$0xff] %vm300, 0.0
      %375 = vst.msk [vmem:[#allocation3 + $0x98] sm:$0xff] %vm300, 0.0
      %376 = vst.msk [vmem:[#allocation3 + $0xa0] sm:$0x3] %vm303, 0.0
      %377 = vst.msk [vmem:[#allocation3 + $0xa8] sm:$0xff] %vm300, 0.0
      %378 = vst.msk [vmem:[#allocation3 + $0xb0] sm:$0xff] %vm300, 0.0
      %379 = vst.msk [vmem:[#allocation3 + $0xb8] sm:$0x3] %vm303, 0.0
      %380 = vst.msk [vmem:[#allocation3 + $0xc0] sm:$0xff] %vm300, 0.0
      %381 = vst.msk [vmem:[#allocation3 + $0xc8] sm:$0xff] %vm300, 0.0
      %382 = vst.msk [vmem:[#allocation3 + $0xd0] sm:$0x3] %vm303, 0.0
      %383 = vst.msk [vmem:[#allocation3 + $0xd8] sm:$0xff] %vm300, 0.0
      %384 = vst.msk [vmem:[#allocation3 + $0xe0] sm:$0xff] %vm300, 0.0
      %385 = vst.msk [vmem:[#allocation3 + $0xe8] sm:$0x3] %vm303, 0.0
      %386 = vst.msk [vmem:[#allocation3 + $0xf0] sm:$0xff] %vm300, 0.0
      %387 = vst.msk [vmem:[#allocation3 + $0xf8] sm:$0xff] %vm300, 0.0
      %388 = vst.msk [vmem:[#allocation3 + $0x100] sm:$0x3] %vm303, 0.0
      %389 = vst.msk [vmem:[#allocation3 + $0x108] sm:$0xff] %vm300, 0.0
      %390 = vst.msk [vmem:[#allocation3 + $0x110] sm:$0xff] %vm300, 0.0
      %391 = vst.msk [vmem:[#allocation3 + $0x118] sm:$0x3] %vm303, 0.0
      %392 = vst.msk [vmem:[#allocation3 + $0x120] sm:$0xff] %vm300, 0.0
      %393 = vst.msk [vmem:[#allocation3 + $0x128] sm:$0xff] %vm300, 0.0
      %394 = vst.msk [vmem:[#allocation3 + $0x130] sm:$0x3] %vm303, 0.0
      %395 = vst.msk [vmem:[#allocation3 + $0x138] sm:$0xff] %vm300, 0.0
      %396 = vst.msk [vmem:[#allocation3 + $0x140] sm:$0xff] %vm300, 0.0
      %397 = vst.msk [vmem:[#allocation3 + $0x148] sm:$0x3] %vm303, 0.0
      %398 = vst.msk [vmem:[#allocation3 + $0x150] sm:$0xff] %vm300, 0.0
      %399 = vst.msk [vmem:[#allocation3 + $0x158] sm:$0xff] %vm300, 0.0
      %400 = vst.msk [vmem:[#allocation3 + $0x160] sm:$0x3] %vm303, 0.0
      %401 = vst.msk [vmem:[#allocation3 + $0x168] sm:$0xff] %vm300, 0.0
      %402 = vst.msk [vmem:[#allocation3 + $0x170] sm:$0xff] %vm300, 0.0
      %403 = vst.msk [vmem:[#allocation3 + $0x178] sm:$0x3] %vm303, 0.0
      %404 = vst.msk [vmem:[#allocation3 + $0x180] sm:$0xff] %vm300, 0.0
      %405 = vst.msk [vmem:[#allocation3 + $0x188] sm:$0xff] %vm300, 0.0
      %406 = vst.msk [vmem:[#allocation3 + $0x190] sm:$0x3] %vm303, 0.0
      %407 = vst.msk [vmem:[#allocation3 + $0x198] sm:$0xff] %vm300, 0.0
      %408 = vst.msk [vmem:[#allocation3 + $0x1a0] sm:$0xff] %vm300, 0.0
      %409 = vst.msk [vmem:[#allocation3 + $0x1a8] sm:$0x3] %vm303, 0.0
      %410 = vst.msk [vmem:[#allocation4] sm:$0xff] %vm300, 0.0
      %411 = vst.msk [vmem:[#allocation4 + $0x8] sm:$0xff] %vm300, 0.0
      %412 = vst.msk [vmem:[#allocation4 + $0x10] sm:$0x3] %vm303, 0.0
      %413 = vst.msk [vmem:[#allocation4 + $0x18] sm:$0xff] %vm300, 0.0
      %414 = vst.msk [vmem:[#allocation4 + $0x20] sm:$0xff] %vm300, 0.0
      %415 = vst.msk [vmem:[#allocation4 + $0x28] sm:$0x3] %vm303, 0.0
      %416 = vst.msk [vmem:[#allocation4 + $0x30] sm:$0xff] %vm300, 0.0
      %417 = vst.msk [vmem:[#allocation4 + $0x38] sm:$0xff] %vm300, 0.0
      %418 = vst.msk [vmem:[#allocation4 + $0x40] sm:$0x3] %vm303, 0.0
      %419 = vst.msk [vmem:[#allocation4 + $0x48] sm:$0xff] %vm300, 0.0
      %420 = vst.msk [vmem:[#allocation4 + $0x50] sm:$0xff] %vm300, 0.0
      %421 = vst.msk [vmem:[#allocation4 + $0x58] sm:$0x3] %vm303, 0.0
      %422 = vst.msk [vmem:[#allocation4 + $0x60] sm:$0xff] %vm300, 0.0
      %423 = vst.msk [vmem:[#allocation4 + $0x68] sm:$0xff] %vm300, 0.0
      %424 = vst.msk [vmem:[#allocation4 + $0x70] sm:$0x3] %vm303, 0.0
      %425 = vst.msk [vmem:[#allocation4 + $0x78] sm:$0xff] %vm300, 0.0
      %426 = vst.msk [vmem:[#allocation4 + $0x80] sm:$0xff] %vm300, 0.0
      %427 = vst.msk [vmem:[#allocation4 + $0x88] sm:$0x3] %vm303, 0.0
      %428 = vst.msk [vmem:[#allocation4 + $0x90] sm:$0xff] %vm300, 0.0
      %429 = vst.msk [vmem:[#allocation4 + $0x98] sm:$0xff] %vm300, 0.0
      %430 = vst.msk [vmem:[#allocation4 + $0xa0] sm:$0x3] %vm303, 0.0
      %431 = vst.msk [vmem:[#allocation4 + $0xa8] sm:$0xff] %vm300, 0.0
      %432 = vst.msk [vmem:[#allocation4 + $0xb0] sm:$0xff] %vm300, 0.0
      %433 = vst.msk [vmem:[#allocation4 + $0xb8] sm:$0x3] %vm303, 0.0
      %434 = vst.msk [vmem:[#allocation4 + $0xc0] sm:$0xff] %vm300, 0.0
      %435 = vst.msk [vmem:[#allocation4 + $0xc8] sm:$0xff] %vm300, 0.0
      %436 = vst.msk [vmem:[#allocation4 + $0xd0] sm:$0x3] %vm303, 0.0
      %437 = vst.msk [vmem:[#allocation4 + $0xd8] sm:$0xff] %vm300, 0.0
      %438 = vst.msk [vmem:[#allocation4 + $0xe0] sm:$0xff] %vm300, 0.0
      %439 = vst.msk [vmem:[#allocation4 + $0xe8] sm:$0x3] %vm303, 0.0
      %440 = vst.msk [vmem:[#allocation4 + $0xf0] sm:$0xff] %vm300, 0.0
      %441 = vst.msk [vmem:[#allocation4 + $0xf8] sm:$0xff] %vm300, 0.0
      %442 = vst.msk [vmem:[#allocation4 + $0x100] sm:$0x3] %vm303, 0.0
      %443 = vst.msk [vmem:[#allocation4 + $0x108] sm:$0xff] %vm300, 0.0
      %444 = vst.msk [vmem:[#allocation4 + $0x110] sm:$0xff] %vm300, 0.0
      %445 = vst.msk [vmem:[#allocation4 + $0x118] sm:$0x3] %vm303, 0.0
      %446 = vst.msk [vmem:[#allocation4 + $0x120] sm:$0xff] %vm300, 0.0
      %447 = vst.msk [vmem:[#allocation4 + $0x128] sm:$0xff] %vm300, 0.0
      %448 = vst.msk [vmem:[#allocation4 + $0x130] sm:$0x3] %vm303, 0.0
      %449 = vst.msk [vmem:[#allocation4 + $0x138] sm:$0xff] %vm300, 0.0
      %450 = vst.msk [vmem:[#allocation4 + $0x140] sm:$0xff] %vm300, 0.0
      %451 = vst.msk [vmem:[#allocation4 + $0x148] sm:$0x3] %vm303, 0.0
      %452 = vst.msk [vmem:[#allocation4 + $0x150] sm:$0xff] %vm300, 0.0
      %453 = vst.msk [vmem:[#allocation4 + $0x158] sm:$0xff] %vm300, 0.0
      %454 = vst.msk [vmem:[#allocation4 + $0x160] sm:$0x3] %vm303, 0.0
      %455 = vst.msk [vmem:[#allocation4 + $0x168] sm:$0xff] %vm300, 0.0
      %456 = vst.msk [vmem:[#allocation4 + $0x170] sm:$0xff] %vm300, 0.0
      %457 = vst.msk [vmem:[#allocation4 + $0x178] sm:$0x3] %vm303, 0.0
      %458 = vst.msk [vmem:[#allocation4 + $0x180] sm:$0xff] %vm300, 0.0
      %459 = vst.msk [vmem:[#allocation4 + $0x188] sm:$0xff] %vm300, 0.0
      %460 = vst.msk [vmem:[#allocation4 + $0x190] sm:$0x3] %vm303, 0.0
      %461 = vst.msk [vmem:[#allocation4 + $0x198] sm:$0xff] %vm300, 0.0
      %462 = vst.msk [vmem:[#allocation4 + $0x1a0] sm:$0xff] %vm300, 0.0
      %463 = vst.msk [vmem:[#allocation4 + $0x1a8] sm:$0x3] %vm303, 0.0
      %v464 = vld [vmem:[%s288] sm:$0xf]
      %v465 = vld [vmem:[%s288 + $0x4] sm:$0xf]
      %v466 = vld [vmem:[%s288 + $0x8] sm:$0xf]
      %v467 = vld [vmem:[%s288 + $0xc] sm:$0xf]
      %v468 = vld [vmem:[%s288 + $0x10] sm:$0xf]
      %v469 = vld [vmem:[%s288 + $0x14] sm:$0xf]
      %v470 = vld [vmem:[%s288 + $0x18] sm:$0xf]
      %v471 = vld [vmem:[%s288 + $0x1c] sm:$0xf]
      %v472 = vld [vmem:[%s288 + $0x20] sm:$0xf]
      %v473 = vld [vmem:[%s288 + $0x24] sm:$0xf]
      %v474 = vld [vmem:[%s288 + $0x28] sm:$0xf]
      %v475 = vld [vmem:[%s288 + $0x2c] sm:$0xf]
      %v476 = vld [vmem:[%s288 + $0x30] sm:$0xf]
      %v477 = vld [vmem:[%s288 + $0x34] sm:$0xf]
      %v478 = vld [vmem:[%s288 + $0x38] sm:$0xf]
      %v479 = vld [vmem:[%s288 + $0x3c] sm:$0xf]
      %v480 = vld [vmem:[%s288 + $0x40] sm:$0xf]
      %v481 = vld [vmem:[%s288 + $0x44] sm:$0xf]
      %v482 = vld [vmem:[%s288 + $0x48] sm:$0xf]
      %v483 = vld [vmem:[%s288 + $0x4c] sm:$0xf]
      %v484 = vld [vmem:[%s288 + $0x50] sm:$0xf]
      %v485 = vld [vmem:[%s288 + $0x54] sm:$0xf]
      %v486 = vld [vmem:[%s288 + $0x58] sm:$0xf]
      %v487 = vld [vmem:[%s288 + $0x5c] sm:$0xf]
      %v488 = vld [vmem:[%s288 + $0x60] sm:$0xf]
      %v489 = vld [vmem:[%s288 + $0x64] sm:$0xf]
      %v490 = vld [vmem:[%s288 + $0x68] sm:$0xf]
      %v491 = vld [vmem:[%s288 + $0x6c] sm:$0xf]
      %v492 = vld [vmem:[%s288 + $0x70] sm:$0xf]
      %v493 = vld [vmem:[%s288 + $0x74] sm:$0xf]
      %v494 = vld [vmem:[%s288 + $0x78] sm:$0xf]
      %v495 = vld [vmem:[%s288 + $0x7c] sm:$0xf]
      %v496 = vunpack.c.l.bf16 %v464
      %v497 = vunpack.c.l.bf16 %v465
      %v498 = vunpack.c.l.bf16 %v466
      %v499 = vunpack.c.l.bf16 %v467
      %v500 = vunpack.c.l.bf16 %v468
      %v501 = vunpack.c.l.bf16 %v469
      %v502 = vunpack.c.l.bf16 %v470
      %v503 = vunpack.c.l.bf16 %v471
      %v504 = vunpack.c.l.bf16 %v472
      %v505 = vunpack.c.l.bf16 %v473
      %v506 = vunpack.c.l.bf16 %v474
      %v507 = vunpack.c.l.bf16 %v475
      %v508 = vunpack.c.l.bf16 %v476
      %v509 = vunpack.c.l.bf16 %v477
      %v510 = vunpack.c.l.bf16 %v478
      %v511 = vunpack.c.l.bf16 %v479
      %v512 = vunpack.c.l.bf16 %v480
      %v513 = vunpack.c.l.bf16 %v481
      %v514 = vunpack.c.l.bf16 %v482
      %v515 = vunpack.c.l.bf16 %v483
      %v516 = vunpack.c.l.bf16 %v484
      %v517 = vunpack.c.l.bf16 %v485
      %v518 = vunpack.c.l.bf16 %v486
      %v519 = vunpack.c.l.bf16 %v487
      %v520 = vunpack.c.l.bf16 %v488
      %v521 = vunpack.c.l.bf16 %v489
      %v522 = vunpack.c.l.bf16 %v490
      %v523 = vunpack.c.l.bf16 %v491
      %v524 = vunpack.c.l.bf16 %v492
      %v525 = vunpack.c.l.bf16 %v493
      %v526 = vunpack.c.l.bf16 %v494
      %v527 = vunpack.c.l.bf16 %v495
      %s528 = scalar_lea.vmem [#allocation2], 24
      %529 = vst.msk [vmem:[%s528 + $0x1] sm:$0xff] %vm300, %v496
      %530 = vst.msk [vmem:[%s528 + $0x9] sm:$0xff] %vm300, %v497
      %531 = vst.msk [vmem:[%s528 + $0x19] sm:$0xff] %vm300, %v498
      %532 = vst.msk [vmem:[%s528 + $0x21] sm:$0xff] %vm300, %v499
      %533 = vst.msk [vmem:[%s528 + $0x31] sm:$0xff] %vm300, %v500
      %534 = vst.msk [vmem:[%s528 + $0x39] sm:$0xff] %vm300, %v501
      %535 = vst.msk [vmem:[%s528 + $0x49] sm:$0xff] %vm300, %v502
      %536 = vst.msk [vmem:[%s528 + $0x51] sm:$0xff] %vm300, %v503
      %537 = vst.msk [vmem:[%s528 + $0x61] sm:$0xff] %vm300, %v504
      %538 = vst.msk [vmem:[%s528 + $0x69] sm:$0xff] %vm300, %v505
      %539 = vst.msk [vmem:[%s528 + $0x79] sm:$0xff] %vm300, %v506
      %540 = vst.msk [vmem:[%s528 + $0x81] sm:$0xff] %vm300, %v507
      %541 = vst.msk [vmem:[%s528 + $0x91] sm:$0xff] %vm300, %v508
      %542 = vst.msk [vmem:[%s528 + $0x99] sm:$0xff] %vm300, %v509
      %543 = vst.msk [vmem:[%s528 + $0xa9] sm:$0xff] %vm300, %v510
      %544 = vst.msk [vmem:[%s528 + $0xb1] sm:$0xff] %vm300, %v511
      %545 = vst.msk [vmem:[%s528 + $0xc1] sm:$0xff] %vm300, %v512
      %546 = vst.msk [vmem:[%s528 + $0xc9] sm:$0xff] %vm300, %v513
      %547 = vst.msk [vmem:[%s528 + $0xd9] sm:$0xff] %vm300, %v514
      %548 = vst.msk [vmem:[%s528 + $0xe1] sm:$0xff] %vm300, %v515
      %549 = vst.msk [vmem:[%s528 + $0xf1] sm:$0xff] %vm300, %v516
      %550 = vst.msk [vmem:[%s528 + $0xf9] sm:$0xff] %vm300, %v517
      %551 = vst.msk [vmem:[%s528 + $0x109] sm:$0xff] %vm300, %v518
      %552 = vst.msk [vmem:[%s528 + $0x111] sm:$0xff] %vm300, %v519
      %553 = vst.msk [vmem:[%s528 + $0x121] sm:$0xff] %vm300, %v520
      %554 = vst.msk [vmem:[%s528 + $0x129] sm:$0xff] %vm300, %v521
      %555 = vst.msk [vmem:[%s528 + $0x139] sm:$0xff] %vm300, %v522
      %556 = vst.msk [vmem:[%s528 + $0x141] sm:$0xff] %vm300, %v523
      %557 = vst.msk [vmem:[%s528 + $0x151] sm:$0xff] %vm300, %v524
      %558 = vst.msk [vmem:[%s528 + $0x159] sm:$0xff] %vm300, %v525
      %559 = vst.msk [vmem:[%s528 + $0x169] sm:$0xff] %vm300, %v526
      %560 = vst.msk [vmem:[%s528 + $0x171] sm:$0xff] %vm300, %v527
      %v561 = vld [vmem:[%s293] sm:$0xf]
      %v562 = vld [vmem:[%s293 + $0x4] sm:$0xf]
      %v563 = vld [vmem:[%s293 + $0x8] sm:$0xf]
      %v564 = vld [vmem:[%s293 + $0xc] sm:$0xf]
      %v565 = vld [vmem:[%s293 + $0x10] sm:$0xf]
      %v566 = vld [vmem:[%s293 + $0x14] sm:$0xf]
      %v567 = vld [vmem:[%s293 + $0x18] sm:$0xf]
      %v568 = vld [vmem:[%s293 + $0x1c] sm:$0xf]
      %v569 = vld [vmem:[%s293 + $0x20] sm:$0xf]
      %v570 = vld [vmem:[%s293 + $0x24] sm:$0xf]
      %v571 = vld [vmem:[%s293 + $0x28] sm:$0xf]
      %v572 = vld [vmem:[%s293 + $0x2c] sm:$0xf]
      %v573 = vld [vmem:[%s293 + $0x30] sm:$0xf]
      %v574 = vld [vmem:[%s293 + $0x34] sm:$0xf]
      %v575 = vld [vmem:[%s293 + $0x38] sm:$0xf]
      %v576 = vld [vmem:[%s293 + $0x3c] sm:$0xf]
      %v577 = vld [vmem:[%s293 + $0x40] sm:$0xf]
      %v578 = vld [vmem:[%s293 + $0x44] sm:$0xf]
      %v579 = vld [vmem:[%s293 + $0x48] sm:$0xf]
      %v580 = vld [vmem:[%s293 + $0x4c] sm:$0xf]
      %v581 = vld [vmem:[%s293 + $0x50] sm:$0xf]
      %v582 = vld [vmem:[%s293 + $0x54] sm:$0xf]
      %v583 = vld [vmem:[%s293 + $0x58] sm:$0xf]
      %v584 = vld [vmem:[%s293 + $0x5c] sm:$0xf]
      %v585 = vld [vmem:[%s293 + $0x60] sm:$0xf]
      %v586 = vld [vmem:[%s293 + $0x64] sm:$0xf]
      %v587 = vld [vmem:[%s293 + $0x68] sm:$0xf]
      %v588 = vld [vmem:[%s293 + $0x6c] sm:$0xf]
      %v589 = vld [vmem:[%s293 + $0x70] sm:$0xf]
      %v590 = vld [vmem:[%s293 + $0x74] sm:$0xf]
      %v591 = vld [vmem:[%s293 + $0x78] sm:$0xf]
      %v592 = vld [vmem:[%s293 + $0x7c] sm:$0xf]
      %v593 = vunpack.c.l.bf16 %v561
      %v594 = vunpack.c.l.bf16 %v562
      %v595 = vunpack.c.l.bf16 %v563
      %v596 = vunpack.c.l.bf16 %v564
      %v597 = vunpack.c.l.bf16 %v565
      %v598 = vunpack.c.l.bf16 %v566
      %v599 = vunpack.c.l.bf16 %v567
      %v600 = vunpack.c.l.bf16 %v568
      %v601 = vunpack.c.l.bf16 %v569
      %v602 = vunpack.c.l.bf16 %v570
      %v603 = vunpack.c.l.bf16 %v571
      %v604 = vunpack.c.l.bf16 %v572
      %v605 = vunpack.c.l.bf16 %v573
      %v606 = vunpack.c.l.bf16 %v574
      %v607 = vunpack.c.l.bf16 %v575
      %v608 = vunpack.c.l.bf16 %v576
      %v609 = vunpack.c.l.bf16 %v577
      %v610 = vunpack.c.l.bf16 %v578
      %v611 = vunpack.c.l.bf16 %v579
      %v612 = vunpack.c.l.bf16 %v580
      %v613 = vunpack.c.l.bf16 %v581
      %v614 = vunpack.c.l.bf16 %v582
      %v615 = vunpack.c.l.bf16 %v583
      %v616 = vunpack.c.l.bf16 %v584
      %v617 = vunpack.c.l.bf16 %v585
      %v618 = vunpack.c.l.bf16 %v586
      %v619 = vunpack.c.l.bf16 %v587
      %v620 = vunpack.c.l.bf16 %v588
      %v621 = vunpack.c.l.bf16 %v589
      %v622 = vunpack.c.l.bf16 %v590
      %v623 = vunpack.c.l.bf16 %v591
      %v624 = vunpack.c.l.bf16 %v592
      %s625 = scalar_lea.vmem [#allocation3], 24
      %626 = vst.msk [vmem:[%s625 + $0x1] sm:$0xff] %vm300, %v593
      %627 = vst.msk [vmem:[%s625 + $0x9] sm:$0xff] %vm300, %v594
      %628 = vst.msk [vmem:[%s625 + $0x19] sm:$0xff] %vm300, %v595
      %629 = vst.msk [vmem:[%s625 + $0x21] sm:$0xff] %vm300, %v596
      %630 = vst.msk [vmem:[%s625 + $0x31] sm:$0xff] %vm300, %v597
      %631 = vst.msk [vmem:[%s625 + $0x39] sm:$0xff] %vm300, %v598
      %632 = vst.msk [vmem:[%s625 + $0x49] sm:$0xff] %vm300, %v599
      %633 = vst.msk [vmem:[%s625 + $0x51] sm:$0xff] %vm300, %v600
      %634 = vst.msk [vmem:[%s625 + $0x61] sm:$0xff] %vm300, %v601
      %635 = vst.msk [vmem:[%s625 + $0x69] sm:$0xff] %vm300, %v602
      %636 = vst.msk [vmem:[%s625 + $0x79] sm:$0xff] %vm300, %v603
      %637 = vst.msk [vmem:[%s625 + $0x81] sm:$0xff] %vm300, %v604
      %638 = vst.msk [vmem:[%s625 + $0x91] sm:$0xff] %vm300, %v605
      %639 = vst.msk [vmem:[%s625 + $0x99] sm:$0xff] %vm300, %v606
      %640 = vst.msk [vmem:[%s625 + $0xa9] sm:$0xff] %vm300, %v607
      %641 = vst.msk [vmem:[%s625 + $0xb1] sm:$0xff] %vm300, %v608
      %642 = vst.msk [vmem:[%s625 + $0xc1] sm:$0xff] %vm300, %v609
      %643 = vst.msk [vmem:[%s625 + $0xc9] sm:$0xff] %vm300, %v610
      %644 = vst.msk [vmem:[%s625 + $0xd9] sm:$0xff] %vm300, %v611
      %645 = vst.msk [vmem:[%s625 + $0xe1] sm:$0xff] %vm300, %v612
      %646 = vst.msk [vmem:[%s625 + $0xf1] sm:$0xff] %vm300, %v613
      %647 = vst.msk [vmem:[%s625 + $0xf9] sm:$0xff] %vm300, %v614
      %648 = vst.msk [vmem:[%s625 + $0x109] sm:$0xff] %vm300, %v615
      %649 = vst.msk [vmem:[%s625 + $0x111] sm:$0xff] %vm300, %v616
      %650 = vst.msk [vmem:[%s625 + $0x121] sm:$0xff] %vm300, %v617
      %651 = vst.msk [vmem:[%s625 + $0x129] sm:$0xff] %vm300, %v618
      %652 = vst.msk [vmem:[%s625 + $0x139] sm:$0xff] %vm300, %v619
      %653 = vst.msk [vmem:[%s625 + $0x141] sm:$0xff] %vm300, %v620
      %654 = vst.msk [vmem:[%s625 + $0x151] sm:$0xff] %vm300, %v621
      %655 = vst.msk [vmem:[%s625 + $0x159] sm:$0xff] %vm300, %v622
      %656 = vst.msk [vmem:[%s625 + $0x169] sm:$0xff] %vm300, %v623
      %657 = vst.msk [vmem:[%s625 + $0x171] sm:$0xff] %vm300, %v624
      %v658 = vld [vmem:[#allocation2] sm:$0xff]
      %v659 = vld [vmem:[#allocation2 + $0x8] sm:$0xff]
      %v660 = vld [vmem:[#allocation2 + $0x18] sm:$0xff]
      %v661 = vld [vmem:[#allocation2 + $0x20] sm:$0xff]
      %v662 = vld [vmem:[#allocation2 + $0x30] sm:$0xff]
      %v663 = vld [vmem:[#allocation2 + $0x38] sm:$0xff]
      %v664 = vld [vmem:[#allocation2 + $0x48] sm:$0xff]
      %v665 = vld [vmem:[#allocation2 + $0x50] sm:$0xff]
      %v666 = vld [vmem:[#allocation2 + $0x60] sm:$0xff]
      %v667 = vld [vmem:[#allocation2 + $0x68] sm:$0xff]
      %v668 = vld [vmem:[#allocation2 + $0x78] sm:$0xff]
      %v669 = vld [vmem:[#allocation2 + $0x80] sm:$0xff]
      %v670 = vld [vmem:[#allocation2 + $0x90] sm:$0xff]
      %v671 = vld [vmem:[#allocation2 + $0x98] sm:$0xff]
      %v672 = vld [vmem:[#allocation2 + $0xa8] sm:$0xff]
      %v673 = vld [vmem:[#allocation2 + $0xb0] sm:$0xff]
      %v674 = vld [vmem:[#allocation2 + $0xc0] sm:$0xff]
      %v675 = vld [vmem:[#allocation2 + $0xc8] sm:$0xff]
      %v676 = vld [vmem:[#allocation2 + $0xd8] sm:$0xff]
      %v677 = vld [vmem:[#allocation2 + $0xe0] sm:$0xff]
      %v678 = vld [vmem:[#allocation2 + $0xf0] sm:$0xff]
      %v679 = vld [vmem:[#allocation2 + $0xf8] sm:$0xff]
      %v680 = vld [vmem:[#allocation2 + $0x108] sm:$0xff]
      %v681 = vld [vmem:[#allocation2 + $0x110] sm:$0xff]
      %v682 = vld [vmem:[#allocation2 + $0x120] sm:$0xff]
      %v683 = vld [vmem:[#allocation2 + $0x128] sm:$0xff]
      %v684 = vld [vmem:[#allocation2 + $0x138] sm:$0xff]
      %v685 = vld [vmem:[#allocation2 + $0x140] sm:$0xff]
      %v686 = vld [vmem:[#allocation2 + $0x150] sm:$0xff]
      %v687 = vld [vmem:[#allocation2 + $0x158] sm:$0xff]
      %v688 = vld [vmem:[#allocation2 + $0x168] sm:$0xff]
      %v689 = vld [vmem:[#allocation2 + $0x170] sm:$0xff]
      %v690 = vld [vmem:[#allocation2 + $0x1] sm:$0xff]
      %v691 = vld [vmem:[#allocation2 + $0x9] sm:$0xff]
      %v692 = vld [vmem:[#allocation2 + $0x19] sm:$0xff]
      %v693 = vld [vmem:[#allocation2 + $0x21] sm:$0xff]
      %v694 = vld [vmem:[#allocation2 + $0x31] sm:$0xff]
      %v695 = vld [vmem:[#allocation2 + $0x39] sm:$0xff]
      %v696 = vld [vmem:[#allocation2 + $0x49] sm:$0xff]
      %v697 = vld [vmem:[#allocation2 + $0x51] sm:$0xff]
      %v698 = vld [vmem:[#allocation2 + $0x61] sm:$0xff]
      %v699 = vld [vmem:[#allocation2 + $0x69] sm:$0xff]
      %v700 = vld [vmem:[#allocation2 + $0x79] sm:$0xff]
      %v701 = vld [vmem:[#allocation2 + $0x81] sm:$0xff]
      %v702 = vld [vmem:[#allocation2 + $0x91] sm:$0xff]
      %v703 = vld [vmem:[#allocation2 + $0x99] sm:$0xff]
      %v704 = vld [vmem:[#allocation2 + $0xa9] sm:$0xff]
      %v705 = vld [vmem:[#allocation2 + $0xb1] sm:$0xff]
      %v706 = vld [vmem:[#allocation2 + $0xc1] sm:$0xff]
      %v707 = vld [vmem:[#allocation2 + $0xc9] sm:$0xff]
      %v708 = vld [vmem:[#allocation2 + $0xd9] sm:$0xff]
      %v709 = vld [vmem:[#allocation2 + $0xe1] sm:$0xff]
      %v710 = vld [vmem:[#allocation2 + $0xf1] sm:$0xff]
      %v711 = vld [vmem:[#allocation2 + $0xf9] sm:$0xff]
      %v712 = vld [vmem:[#allocation2 + $0x109] sm:$0xff]
      %v713 = vld [vmem:[#allocation2 + $0x111] sm:$0xff]
      %v714 = vld [vmem:[#allocation2 + $0x121] sm:$0xff]
      %v715 = vld [vmem:[#allocation2 + $0x129] sm:$0xff]
      %v716 = vld [vmem:[#allocation2 + $0x139] sm:$0xff]
      %v717 = vld [vmem:[#allocation2 + $0x141] sm:$0xff]
      %v718 = vld [vmem:[#allocation2 + $0x151] sm:$0xff]
      %v719 = vld [vmem:[#allocation2 + $0x159] sm:$0xff]
      %v720 = vld [vmem:[#allocation2 + $0x169] sm:$0xff]
      %v721 = vld [vmem:[#allocation2 + $0x171] sm:$0xff]
      %v722 = vld [vmem:[#allocation2 + $0x2] sm:$0xff]
      %v723 = vld [vmem:[#allocation2 + $0xa] sm:$0xff]
      %v724 = vld [vmem:[#allocation2 + $0x1a] sm:$0xff]
      %v725 = vld [vmem:[#allocation2 + $0x22] sm:$0xff]
      %v726 = vld [vmem:[#allocation2 + $0x32] sm:$0xff]
      %v727 = vld [vmem:[#allocation2 + $0x3a] sm:$0xff]
      %v728 = vld [vmem:[#allocation2 + $0x4a] sm:$0xff]
      %v729 = vld [vmem:[#allocation2 + $0x52] sm:$0xff]
      %v730 = vld [vmem:[#allocation2 + $0x62] sm:$0xff]
      %v731 = vld [vmem:[#allocation2 + $0x6a] sm:$0xff]
      %v732 = vld [vmem:[#allocation2 + $0x7a] sm:$0xff]
      %v733 = vld [vmem:[#allocation2 + $0x82] sm:$0xff]
      %v734 = vld [vmem:[#allocation2 + $0x92] sm:$0xff]
      %v735 = vld [vmem:[#allocation2 + $0x9a] sm:$0xff]
      %v736 = vld [vmem:[#allocation2 + $0xaa] sm:$0xff]
      %v737 = vld [vmem:[#allocation2 + $0xb2] sm:$0xff]
      %v738 = vld [vmem:[#allocation2 + $0xc2] sm:$0xff]
      %v739 = vld [vmem:[#allocation2 + $0xca] sm:$0xff]
      %v740 = vld [vmem:[#allocation2 + $0xda] sm:$0xff]
      %v741 = vld [vmem:[#allocation2 + $0xe2] sm:$0xff]
      %v742 = vld [vmem:[#allocation2 + $0xf2] sm:$0xff]
      %v743 = vld [vmem:[#allocation2 + $0xfa] sm:$0xff]
      %v744 = vld [vmem:[#allocation2 + $0x10a] sm:$0xff]
      %v745 = vld [vmem:[#allocation2 + $0x112] sm:$0xff]
      %v746 = vld [vmem:[#allocation2 + $0x122] sm:$0xff]
      %v747 = vld [vmem:[#allocation2 + $0x12a] sm:$0xff]
      %v748 = vld [vmem:[#allocation2 + $0x13a] sm:$0xff]
      %v749 = vld [vmem:[#allocation2 + $0x142] sm:$0xff]
      %v750 = vld [vmem:[#allocation2 + $0x152] sm:$0xff]
      %v751 = vld [vmem:[#allocation2 + $0x15a] sm:$0xff]
      %v752 = vld [vmem:[#allocation2 + $0x16a] sm:$0xff]
      %v753 = vld [vmem:[#allocation2 + $0x172] sm:$0xff]
      %v754 = vld [vmem:[%s528] sm:$0xff]
      %v755 = vld [vmem:[%s528 + $0x8] sm:$0xff]
      %v756 = vld [vmem:[%s528 + $0x18] sm:$0xff]
      %v757 = vld [vmem:[%s528 + $0x20] sm:$0xff]
      %v758 = vld [vmem:[%s528 + $0x30] sm:$0xff]
      %v759 = vld [vmem:[%s528 + $0x38] sm:$0xff]
      %v760 = vld [vmem:[%s528 + $0x48] sm:$0xff]
      %v761 = vld [vmem:[%s528 + $0x50] sm:$0xff]
      %v762 = vld [vmem:[%s528 + $0x60] sm:$0xff]
      %v763 = vld [vmem:[%s528 + $0x68] sm:$0xff]
      %v764 = vld [vmem:[%s528 + $0x78] sm:$0xff]
      %v765 = vld [vmem:[%s528 + $0x80] sm:$0xff]
      %v766 = vld [vmem:[%s528 + $0x90] sm:$0xff]
      %v767 = vld [vmem:[%s528 + $0x98] sm:$0xff]
      %v768 = vld [vmem:[%s528 + $0xa8] sm:$0xff]
      %v769 = vld [vmem:[%s528 + $0xb0] sm:$0xff]
      %v770 = vld [vmem:[%s528 + $0xc0] sm:$0xff]
      %v771 = vld [vmem:[%s528 + $0xc8] sm:$0xff]
      %v772 = vld [vmem:[%s528 + $0xd8] sm:$0xff]
      %v773 = vld [vmem:[%s528 + $0xe0] sm:$0xff]
      %v774 = vld [vmem:[%s528 + $0xf0] sm:$0xff]
      %v775 = vld [vmem:[%s528 + $0xf8] sm:$0xff]
      %v776 = vld [vmem:[%s528 + $0x108] sm:$0xff]
      %v777 = vld [vmem:[%s528 + $0x110] sm:$0xff]
      %v778 = vld [vmem:[%s528 + $0x120] sm:$0xff]
      %v779 = vld [vmem:[%s528 + $0x128] sm:$0xff]
      %v780 = vld [vmem:[%s528 + $0x138] sm:$0xff]
      %v781 = vld [vmem:[%s528 + $0x140] sm:$0xff]
      %v782 = vld [vmem:[%s528 + $0x150] sm:$0xff]
      %v783 = vld [vmem:[%s528 + $0x158] sm:$0xff]
      %v784 = vld [vmem:[%s528 + $0x168] sm:$0xff]
      %v785 = vld [vmem:[%s528 + $0x170] sm:$0xff]
      %v786 = vld [vmem:[%s528 + $0x1] sm:$0xff]
      %v787 = vld [vmem:[%s528 + $0x9] sm:$0xff]
      %v788 = vld [vmem:[%s528 + $0x19] sm:$0xff]
      %v789 = vld [vmem:[%s528 + $0x21] sm:$0xff]
      %v790 = vld [vmem:[%s528 + $0x31] sm:$0xff]
      %v791 = vld [vmem:[%s528 + $0x39] sm:$0xff]
      %v792 = vld [vmem:[%s528 + $0x49] sm:$0xff]
      %v793 = vld [vmem:[%s528 + $0x51] sm:$0xff]
      %v794 = vld [vmem:[%s528 + $0x61] sm:$0xff]
      %v795 = vld [vmem:[%s528 + $0x69] sm:$0xff]
      %v796 = vld [vmem:[%s528 + $0x79] sm:$0xff]
      %v797 = vld [vmem:[%s528 + $0x81] sm:$0xff]
      %v798 = vld [vmem:[%s528 + $0x91] sm:$0xff]
      %v799 = vld [vmem:[%s528 + $0x99] sm:$0xff]
      %v800 = vld [vmem:[%s528 + $0xa9] sm:$0xff]
      %v801 = vld [vmem:[%s528 + $0xb1] sm:$0xff]
      %v802 = vld [vmem:[%s528 + $0xc1] sm:$0xff]
      %v803 = vld [vmem:[%s528 + $0xc9] sm:$0xff]
      %v804 = vld [vmem:[%s528 + $0xd9] sm:$0xff]
      %v805 = vld [vmem:[%s528 + $0xe1] sm:$0xff]
      %v806 = vld [vmem:[%s528 + $0xf1] sm:$0xff]
      %v807 = vld [vmem:[%s528 + $0xf9] sm:$0xff]
      %v808 = vld [vmem:[%s528 + $0x109] sm:$0xff]
      %v809 = vld [vmem:[%s528 + $0x111] sm:$0xff]
      %v810 = vld [vmem:[%s528 + $0x121] sm:$0xff]
      %v811 = vld [vmem:[%s528 + $0x129] sm:$0xff]
      %v812 = vld [vmem:[%s528 + $0x139] sm:$0xff]
      %v813 = vld [vmem:[%s528 + $0x141] sm:$0xff]
      %v814 = vld [vmem:[%s528 + $0x151] sm:$0xff]
      %v815 = vld [vmem:[%s528 + $0x159] sm:$0xff]
      %v816 = vld [vmem:[%s528 + $0x169] sm:$0xff]
      %v817 = vld [vmem:[%s528 + $0x171] sm:$0xff]
      %v818 = vld [vmem:[%s528 + $0x2] sm:$0xff]
      %v819 = vld [vmem:[%s528 + $0xa] sm:$0xff]
      %v820 = vld [vmem:[%s528 + $0x1a] sm:$0xff]
      %v821 = vld [vmem:[%s528 + $0x22] sm:$0xff]
      %v822 = vld [vmem:[%s528 + $0x32] sm:$0xff]
      %v823 = vld [vmem:[%s528 + $0x3a] sm:$0xff]
      %v824 = vld [vmem:[%s528 + $0x4a] sm:$0xff]
      %v825 = vld [vmem:[%s528 + $0x52] sm:$0xff]
      %v826 = vld [vmem:[%s528 + $0x62] sm:$0xff]
      %v827 = vld [vmem:[%s528 + $0x6a] sm:$0xff]
      %v828 = vld [vmem:[%s528 + $0x7a] sm:$0xff]
      %v829 = vld [vmem:[%s528 + $0x82] sm:$0xff]
      %v830 = vld [vmem:[%s528 + $0x92] sm:$0xff]
      %v831 = vld [vmem:[%s528 + $0x9a] sm:$0xff]
      %v832 = vld [vmem:[%s528 + $0xaa] sm:$0xff]
      %v833 = vld [vmem:[%s528 + $0xb2] sm:$0xff]
      %v834 = vld [vmem:[%s528 + $0xc2] sm:$0xff]
      %v835 = vld [vmem:[%s528 + $0xca] sm:$0xff]
      %v836 = vld [vmem:[%s528 + $0xda] sm:$0xff]
      %v837 = vld [vmem:[%s528 + $0xe2] sm:$0xff]
      %v838 = vld [vmem:[%s528 + $0xf2] sm:$0xff]
      %v839 = vld [vmem:[%s528 + $0xfa] sm:$0xff]
      %v840 = vld [vmem:[%s528 + $0x10a] sm:$0xff]
      %v841 = vld [vmem:[%s528 + $0x112] sm:$0xff]
      %v842 = vld [vmem:[%s528 + $0x122] sm:$0xff]
      %v843 = vld [vmem:[%s528 + $0x12a] sm:$0xff]
      %v844 = vld [vmem:[%s528 + $0x13a] sm:$0xff]
      %v845 = vld [vmem:[%s528 + $0x142] sm:$0xff]
      %v846 = vld [vmem:[%s528 + $0x152] sm:$0xff]
      %v847 = vld [vmem:[%s528 + $0x15a] sm:$0xff]
      %v848 = vld [vmem:[%s528 + $0x16a] sm:$0xff]
      %v849 = vld [vmem:[%s528 + $0x172] sm:$0xff]
      %s850 = scalar_lea.vmem [#allocation2], 48
      %v851 = vld [vmem:[%s850] sm:$0xff]
      %v852 = vld [vmem:[%s850 + $0x8] sm:$0xff]
      %v853 = vld [vmem:[%s850 + $0x18] sm:$0xff]
      %v854 = vld [vmem:[%s850 + $0x20] sm:$0xff]
      %v855 = vld [vmem:[%s850 + $0x30] sm:$0xff]
      %v856 = vld [vmem:[%s850 + $0x38] sm:$0xff]
      %v857 = vld [vmem:[%s850 + $0x48] sm:$0xff]
      %v858 = vld [vmem:[%s850 + $0x50] sm:$0xff]
      %v859 = vld [vmem:[%s850 + $0x60] sm:$0xff]
      %v860 = vld [vmem:[%s850 + $0x68] sm:$0xff]
      %v861 = vld [vmem:[%s850 + $0x78] sm:$0xff]
      %v862 = vld [vmem:[%s850 + $0x80] sm:$0xff]
      %v863 = vld [vmem:[%s850 + $0x90] sm:$0xff]
      %v864 = vld [vmem:[%s850 + $0x98] sm:$0xff]
      %v865 = vld [vmem:[%s850 + $0xa8] sm:$0xff]
      %v866 = vld [vmem:[%s850 + $0xb0] sm:$0xff]
      %v867 = vld [vmem:[%s850 + $0xc0] sm:$0xff]
      %v868 = vld [vmem:[%s850 + $0xc8] sm:$0xff]
      %v869 = vld [vmem:[%s850 + $0xd8] sm:$0xff]
      %v870 = vld [vmem:[%s850 + $0xe0] sm:$0xff]
      %v871 = vld [vmem:[%s850 + $0xf0] sm:$0xff]
      %v872 = vld [vmem:[%s850 + $0xf8] sm:$0xff]
      %v873 = vld [vmem:[%s850 + $0x108] sm:$0xff]
      %v874 = vld [vmem:[%s850 + $0x110] sm:$0xff]
      %v875 = vld [vmem:[%s850 + $0x120] sm:$0xff]
      %v876 = vld [vmem:[%s850 + $0x128] sm:$0xff]
      %v877 = vld [vmem:[%s850 + $0x138] sm:$0xff]
      %v878 = vld [vmem:[%s850 + $0x140] sm:$0xff]
      %v879 = vld [vmem:[%s850 + $0x150] sm:$0xff]
      %v880 = vld [vmem:[%s850 + $0x158] sm:$0xff]
      %v881 = vld [vmem:[%s850 + $0x168] sm:$0xff]
      %v882 = vld [vmem:[%s850 + $0x170] sm:$0xff]
      %v883 = vld [vmem:[%s850 + $0x1] sm:$0xff]
      %v884 = vld [vmem:[%s850 + $0x9] sm:$0xff]
      %v885 = vld [vmem:[%s850 + $0x19] sm:$0xff]
      %v886 = vld [vmem:[%s850 + $0x21] sm:$0xff]
      %v887 = vld [vmem:[%s850 + $0x31] sm:$0xff]
      %v888 = vld [vmem:[%s850 + $0x39] sm:$0xff]
      %v889 = vld [vmem:[%s850 + $0x49] sm:$0xff]
      %v890 = vld [vmem:[%s850 + $0x51] sm:$0xff]
      %v891 = vld [vmem:[%s850 + $0x61] sm:$0xff]
      %v892 = vld [vmem:[%s850 + $0x69] sm:$0xff]
      %v893 = vld [vmem:[%s850 + $0x79] sm:$0xff]
      %v894 = vld [vmem:[%s850 + $0x81] sm:$0xff]
      %v895 = vld [vmem:[%s850 + $0x91] sm:$0xff]
      %v896 = vld [vmem:[%s850 + $0x99] sm:$0xff]
      %v897 = vld [vmem:[%s850 + $0xa9] sm:$0xff]
      %v898 = vld [vmem:[%s850 + $0xb1] sm:$0xff]
      %v899 = vld [vmem:[%s850 + $0xc1] sm:$0xff]
      %v900 = vld [vmem:[%s850 + $0xc9] sm:$0xff]
      %v901 = vld [vmem:[%s850 + $0xd9] sm:$0xff]
      %v902 = vld [vmem:[%s850 + $0xe1] sm:$0xff]
      %v903 = vld [vmem:[%s850 + $0xf1] sm:$0xff]
      %v904 = vld [vmem:[%s850 + $0xf9] sm:$0xff]
      %v905 = vld [vmem:[%s850 + $0x109] sm:$0xff]
      %v906 = vld [vmem:[%s850 + $0x111] sm:$0xff]
      %v907 = vld [vmem:[%s850 + $0x121] sm:$0xff]
      %v908 = vld [vmem:[%s850 + $0x129] sm:$0xff]
      %v909 = vld [vmem:[%s850 + $0x139] sm:$0xff]
      %v910 = vld [vmem:[%s850 + $0x141] sm:$0xff]
      %v911 = vld [vmem:[%s850 + $0x151] sm:$0xff]
      %v912 = vld [vmem:[%s850 + $0x159] sm:$0xff]
      %v913 = vld [vmem:[%s850 + $0x169] sm:$0xff]
      %v914 = vld [vmem:[%s850 + $0x171] sm:$0xff]
      %v915 = vld [vmem:[%s850 + $0x2] sm:$0xff]
      %v916 = vld [vmem:[%s850 + $0xa] sm:$0xff]
      %v917 = vld [vmem:[%s850 + $0x1a] sm:$0xff]
      %v918 = vld [vmem:[%s850 + $0x22] sm:$0xff]
      %v919 = vld [vmem:[%s850 + $0x32] sm:$0xff]
      %v920 = vld [vmem:[%s850 + $0x3a] sm:$0xff]
      %v921 = vld [vmem:[%s850 + $0x4a] sm:$0xff]
      %v922 = vld [vmem:[%s850 + $0x52] sm:$0xff]
      %v923 = vld [vmem:[%s850 + $0x62] sm:$0xff]
      %v924 = vld [vmem:[%s850 + $0x6a] sm:$0xff]
      %v925 = vld [vmem:[%s850 + $0x7a] sm:$0xff]
      %v926 = vld [vmem:[%s850 + $0x82] sm:$0xff]
      %v927 = vld [vmem:[%s850 + $0x92] sm:$0xff]
      %v928 = vld [vmem:[%s850 + $0x9a] sm:$0xff]
      %v929 = vld [vmem:[%s850 + $0xaa] sm:$0xff]
      %v930 = vld [vmem:[%s850 + $0xb2] sm:$0xff]
      %v931 = vld [vmem:[%s850 + $0xc2] sm:$0xff]
      %v932 = vld [vmem:[%s850 + $0xca] sm:$0xff]
      %v933 = vld [vmem:[%s850 + $0xda] sm:$0xff]
      %v934 = vld [vmem:[%s850 + $0xe2] sm:$0xff]
      %v935 = vld [vmem:[%s850 + $0xf2] sm:$0xff]
      %v936 = vld [vmem:[%s850 + $0xfa] sm:$0xff]
      %v937 = vld [vmem:[%s850 + $0x10a] sm:$0xff]
      %v938 = vld [vmem:[%s850 + $0x112] sm:$0xff]
      %v939 = vld [vmem:[%s850 + $0x122] sm:$0xff]
      %v940 = vld [vmem:[%s850 + $0x12a] sm:$0xff]
      %v941 = vld [vmem:[%s850 + $0x13a] sm:$0xff]
      %v942 = vld [vmem:[%s850 + $0x142] sm:$0xff]
      %v943 = vld [vmem:[%s850 + $0x152] sm:$0xff]
      %v944 = vld [vmem:[%s850 + $0x15a] sm:$0xff]
      %v945 = vld [vmem:[%s850 + $0x16a] sm:$0xff]
      %v946 = vld [vmem:[%s850 + $0x172] sm:$0xff]
      %979 = vrot.lane.b32.xlu0 %v690, 4
      %v980 = vpop.permute.xlu0 %979
      %981 = vrot.lane.b32.xlu0 %v691, 4
      %v982 = vpop.permute.xlu0 %981
      %983 = vrot.lane.b32.xlu0 %v692, 4
      %v984 = vpop.permute.xlu0 %983
      %985 = vrot.lane.b32.xlu0 %v693, 4
      %v986 = vpop.permute.xlu0 %985
      %987 = vrot.lane.b32.xlu0 %v694, 4
      %v988 = vpop.permute.xlu0 %987
      %989 = vrot.lane.b32.xlu0 %v695, 4
      %v990 = vpop.permute.xlu0 %989
      %991 = vrot.lane.b32.xlu0 %v696, 4
      %v992 = vpop.permute.xlu0 %991
      %993 = vrot.lane.b32.xlu0 %v697, 4
      %v994 = vpop.permute.xlu0 %993
      %995 = vrot.lane.b32.xlu0 %v698, 4
      %v996 = vpop.permute.xlu0 %995
      %997 = vrot.lane.b32.xlu0 %v699, 4
      %v998 = vpop.permute.xlu0 %997
      %999 = vrot.lane.b32.xlu0 %v700, 4
      %v1000 = vpop.permute.xlu0 %999
      %1001 = vrot.lane.b32.xlu0 %v701, 4
      %v1002 = vpop.permute.xlu0 %1001
      %1003 = vrot.lane.b32.xlu0 %v702, 4
      %v1004 = vpop.permute.xlu0 %1003
      %1005 = vrot.lane.b32.xlu0 %v703, 4
      %v1006 = vpop.permute.xlu0 %1005
      %1007 = vrot.lane.b32.xlu0 %v704, 4
      %v1008 = vpop.permute.xlu0 %1007
      %1009 = vrot.lane.b32.xlu0 %v705, 4
      %v1010 = vpop.permute.xlu0 %1009
      %1011 = vrot.lane.b32.xlu0 %v706, 4
      %v1012 = vpop.permute.xlu0 %1011
      %1013 = vrot.lane.b32.xlu0 %v707, 4
      %v1014 = vpop.permute.xlu0 %1013
      %1015 = vrot.lane.b32.xlu0 %v708, 4
      %v1016 = vpop.permute.xlu0 %1015
      %1017 = vrot.lane.b32.xlu0 %v709, 4
      %v1018 = vpop.permute.xlu0 %1017
      %1019 = vrot.lane.b32.xlu0 %v710, 4
      %v1020 = vpop.permute.xlu0 %1019
      %1021 = vrot.lane.b32.xlu0 %v711, 4
      %v1022 = vpop.permute.xlu0 %1021
      %1023 = vrot.lane.b32.xlu0 %v712, 4
      %v1024 = vpop.permute.xlu0 %1023
      %1025 = vrot.lane.b32.xlu0 %v713, 4
      %v1026 = vpop.permute.xlu0 %1025
      %1027 = vrot.lane.b32.xlu0 %v714, 4
      %v1028 = vpop.permute.xlu0 %1027
      %1029 = vrot.lane.b32.xlu0 %v715, 4
      %v1030 = vpop.permute.xlu0 %1029
      %1031 = vrot.lane.b32.xlu0 %v716, 4
      %v1032 = vpop.permute.xlu0 %1031
      %1033 = vrot.lane.b32.xlu0 %v717, 4
      %v1034 = vpop.permute.xlu0 %1033
      %1035 = vrot.lane.b32.xlu0 %v718, 4
      %v1036 = vpop.permute.xlu0 %1035
      %1037 = vrot.lane.b32.xlu0 %v719, 4
      %v1038 = vpop.permute.xlu0 %1037
      %1039 = vrot.lane.b32.xlu0 %v720, 4
      %v1040 = vpop.permute.xlu0 %1039
      %1041 = vrot.lane.b32.xlu0 %v721, 4
      %v1042 = vpop.permute.xlu0 %1041
      %1107 = vrot.lane.b32.xlu0 %v722, 8
      %v1108 = vpop.permute.xlu0 %1107
      %1109 = vrot.lane.b32.xlu0 %v723, 8
      %v1110 = vpop.permute.xlu0 %1109
      %1111 = vrot.lane.b32.xlu0 %v724, 8
      %v1112 = vpop.permute.xlu0 %1111
      %1113 = vrot.lane.b32.xlu0 %v725, 8
      %v1114 = vpop.permute.xlu0 %1113
      %1115 = vrot.lane.b32.xlu0 %v726, 8
      %v1116 = vpop.permute.xlu0 %1115
      %1117 = vrot.lane.b32.xlu0 %v727, 8
      %v1118 = vpop.permute.xlu0 %1117
      %1119 = vrot.lane.b32.xlu0 %v728, 8
      %v1120 = vpop.permute.xlu0 %1119
      %1121 = vrot.lane.b32.xlu0 %v729, 8
      %v1122 = vpop.permute.xlu0 %1121
      %1123 = vrot.lane.b32.xlu0 %v730, 8
      %v1124 = vpop.permute.xlu0 %1123
      %1125 = vrot.lane.b32.xlu0 %v731, 8
      %v1126 = vpop.permute.xlu0 %1125
      %1127 = vrot.lane.b32.xlu0 %v732, 8
      %v1128 = vpop.permute.xlu0 %1127
      %1129 = vrot.lane.b32.xlu0 %v733, 8
      %v1130 = vpop.permute.xlu0 %1129
      %1131 = vrot.lane.b32.xlu0 %v734, 8
      %v1132 = vpop.permute.xlu0 %1131
      %1133 = vrot.lane.b32.xlu0 %v735, 8
      %v1134 = vpop.permute.xlu0 %1133
      %1135 = vrot.lane.b32.xlu0 %v736, 8
      %v1136 = vpop.permute.xlu0 %1135
      %1137 = vrot.lane.b32.xlu0 %v737, 8
      %v1138 = vpop.permute.xlu0 %1137
      %1139 = vrot.lane.b32.xlu0 %v738, 8
      %v1140 = vpop.permute.xlu0 %1139
      %1141 = vrot.lane.b32.xlu0 %v739, 8
      %v1142 = vpop.permute.xlu0 %1141
      %1143 = vrot.lane.b32.xlu0 %v740, 8
      %v1144 = vpop.permute.xlu0 %1143
      %1145 = vrot.lane.b32.xlu0 %v741, 8
      %v1146 = vpop.permute.xlu0 %1145
      %1147 = vrot.lane.b32.xlu0 %v742, 8
      %v1148 = vpop.permute.xlu0 %1147
      %1149 = vrot.lane.b32.xlu0 %v743, 8
      %v1150 = vpop.permute.xlu0 %1149
      %1151 = vrot.lane.b32.xlu0 %v744, 8
      %v1152 = vpop.permute.xlu0 %1151
      %1153 = vrot.lane.b32.xlu0 %v745, 8
      %v1154 = vpop.permute.xlu0 %1153
      %1155 = vrot.lane.b32.xlu0 %v746, 8
      %v1156 = vpop.permute.xlu0 %1155
      %1157 = vrot.lane.b32.xlu0 %v747, 8
      %v1158 = vpop.permute.xlu0 %1157
      %1159 = vrot.lane.b32.xlu0 %v748, 8
      %v1160 = vpop.permute.xlu0 %1159
      %1161 = vrot.lane.b32.xlu0 %v749, 8
      %v1162 = vpop.permute.xlu0 %1161
      %1163 = vrot.lane.b32.xlu0 %v750, 8
      %v1164 = vpop.permute.xlu0 %1163
      %1165 = vrot.lane.b32.xlu0 %v751, 8
      %v1166 = vpop.permute.xlu0 %1165
      %1167 = vrot.lane.b32.xlu0 %v752, 8
      %v1168 = vpop.permute.xlu0 %1167
      %1169 = vrot.lane.b32.xlu0 %v753, 8
      %v1170 = vpop.permute.xlu0 %1169
      %1235 = vrot.lane.b32.xlu0 %v754, 12
      %v1236 = vpop.permute.xlu0 %1235
      %1237 = vrot.lane.b32.xlu0 %v755, 12
      %v1238 = vpop.permute.xlu0 %1237
      %1239 = vrot.lane.b32.xlu0 %v756, 12
      %v1240 = vpop.permute.xlu0 %1239
      %1241 = vrot.lane.b32.xlu0 %v757, 12
      %v1242 = vpop.permute.xlu0 %1241
      %1243 = vrot.lane.b32.xlu0 %v758, 12
      %v1244 = vpop.permute.xlu0 %1243
      %1245 = vrot.lane.b32.xlu0 %v759, 12
      %v1246 = vpop.permute.xlu0 %1245
      %1247 = vrot.lane.b32.xlu0 %v760, 12
      %v1248 = vpop.permute.xlu0 %1247
      %1249 = vrot.lane.b32.xlu0 %v761, 12
      %v1250 = vpop.permute.xlu0 %1249
      %1251 = vrot.lane.b32.xlu0 %v762, 12
      %v1252 = vpop.permute.xlu0 %1251
      %1253 = vrot.lane.b32.xlu0 %v763, 12
      %v1254 = vpop.permute.xlu0 %1253
      %1255 = vrot.lane.b32.xlu0 %v764, 12
      %v1256 = vpop.permute.xlu0 %1255
      %1257 = vrot.lane.b32.xlu0 %v765, 12
      %v1258 = vpop.permute.xlu0 %1257
      %1259 = vrot.lane.b32.xlu0 %v766, 12
      %v1260 = vpop.permute.xlu0 %1259
      %1261 = vrot.lane.b32.xlu0 %v767, 12
      %v1262 = vpop.permute.xlu0 %1261
      %1263 = vrot.lane.b32.xlu0 %v768, 12
      %v1264 = vpop.permute.xlu0 %1263
      %1265 = vrot.lane.b32.xlu0 %v769, 12
      %v1266 = vpop.permute.xlu0 %1265
      %1267 = vrot.lane.b32.xlu0 %v770, 12
      %v1268 = vpop.permute.xlu0 %1267
      %1269 = vrot.lane.b32.xlu0 %v771, 12
      %v1270 = vpop.permute.xlu0 %1269
      %1271 = vrot.lane.b32.xlu0 %v772, 12
      %v1272 = vpop.permute.xlu0 %1271
      %1273 = vrot.lane.b32.xlu0 %v773, 12
      %v1274 = vpop.permute.xlu0 %1273
      %1275 = vrot.lane.b32.xlu0 %v774, 12
      %v1276 = vpop.permute.xlu0 %1275
      %1277 = vrot.lane.b32.xlu0 %v775, 12
      %v1278 = vpop.permute.xlu0 %1277
      %1279 = vrot.lane.b32.xlu0 %v776, 12
      %v1280 = vpop.permute.xlu0 %1279
      %1281 = vrot.lane.b32.xlu0 %v777, 12
      %v1282 = vpop.permute.xlu0 %1281
      %1283 = vrot.lane.b32.xlu0 %v778, 12
      %v1284 = vpop.permute.xlu0 %1283
      %1285 = vrot.lane.b32.xlu0 %v779, 12
      %v1286 = vpop.permute.xlu0 %1285
      %1287 = vrot.lane.b32.xlu0 %v780, 12
      %v1288 = vpop.permute.xlu0 %1287
      %1289 = vrot.lane.b32.xlu0 %v781, 12
      %v1290 = vpop.permute.xlu0 %1289
      %1291 = vrot.lane.b32.xlu0 %v782, 12
      %v1292 = vpop.permute.xlu0 %1291
      %1293 = vrot.lane.b32.xlu0 %v783, 12
      %v1294 = vpop.permute.xlu0 %1293
      %1295 = vrot.lane.b32.xlu0 %v784, 12
      %v1296 = vpop.permute.xlu0 %1295
      %1297 = vrot.lane.b32.xlu0 %v785, 12
      %v1298 = vpop.permute.xlu0 %1297
      %1363 = vrot.lane.b32.xlu0 %v786, 16
      %v1364 = vpop.permute.xlu0 %1363
      %1365 = vrot.lane.b32.xlu0 %v787, 16
      %v1366 = vpop.permute.xlu0 %1365
      %1367 = vrot.lane.b32.xlu0 %v788, 16
      %v1368 = vpop.permute.xlu0 %1367
      %1369 = vrot.lane.b32.xlu0 %v789, 16
      %v1370 = vpop.permute.xlu0 %1369
      %1371 = vrot.lane.b32.xlu0 %v790, 16
      %v1372 = vpop.permute.xlu0 %1371
      %1373 = vrot.lane.b32.xlu0 %v791, 16
      %v1374 = vpop.permute.xlu0 %1373
      %1375 = vrot.lane.b32.xlu0 %v792, 16
      %v1376 = vpop.permute.xlu0 %1375
      %1377 = vrot.lane.b32.xlu0 %v793, 16
      %v1378 = vpop.permute.xlu0 %1377
      %1379 = vrot.lane.b32.xlu0 %v794, 16
      %v1380 = vpop.permute.xlu0 %1379
      %1381 = vrot.lane.b32.xlu0 %v795, 16
      %v1382 = vpop.permute.xlu0 %1381
      %1383 = vrot.lane.b32.xlu0 %v796, 16
      %v1384 = vpop.permute.xlu0 %1383
      %1385 = vrot.lane.b32.xlu0 %v797, 16
      %v1386 = vpop.permute.xlu0 %1385
      %1387 = vrot.lane.b32.xlu0 %v798, 16
      %v1388 = vpop.permute.xlu0 %1387
      %1389 = vrot.lane.b32.xlu0 %v799, 16
      %v1390 = vpop.permute.xlu0 %1389
      %1391 = vrot.lane.b32.xlu0 %v800, 16
      %v1392 = vpop.permute.xlu0 %1391
      %1393 = vrot.lane.b32.xlu0 %v801, 16
      %v1394 = vpop.permute.xlu0 %1393
      %1395 = vrot.lane.b32.xlu0 %v802, 16
      %v1396 = vpop.permute.xlu0 %1395
      %1397 = vrot.lane.b32.xlu0 %v803, 16
      %v1398 = vpop.permute.xlu0 %1397
      %1399 = vrot.lane.b32.xlu0 %v804, 16
      %v1400 = vpop.permute.xlu0 %1399
      %1401 = vrot.lane.b32.xlu0 %v805, 16
      %v1402 = vpop.permute.xlu0 %1401
      %1403 = vrot.lane.b32.xlu0 %v806, 16
      %v1404 = vpop.permute.xlu0 %1403
      %1405 = vrot.lane.b32.xlu0 %v807, 16
      %v1406 = vpop.permute.xlu0 %1405
      %1407 = vrot.lane.b32.xlu0 %v808, 16
      %v1408 = vpop.permute.xlu0 %1407
      %1409 = vrot.lane.b32.xlu0 %v809, 16
      %v1410 = vpop.permute.xlu0 %1409
      %1411 = vrot.lane.b32.xlu0 %v810, 16
      %v1412 = vpop.permute.xlu0 %1411
      %1413 = vrot.lane.b32.xlu0 %v811, 16
      %v1414 = vpop.permute.xlu0 %1413
      %1415 = vrot.lane.b32.xlu0 %v812, 16
      %v1416 = vpop.permute.xlu0 %1415
      %1417 = vrot.lane.b32.xlu0 %v813, 16
      %v1418 = vpop.permute.xlu0 %1417
      %1419 = vrot.lane.b32.xlu0 %v814, 16
      %v1420 = vpop.permute.xlu0 %1419
      %1421 = vrot.lane.b32.xlu0 %v815, 16
      %v1422 = vpop.permute.xlu0 %1421
      %1423 = vrot.lane.b32.xlu0 %v816, 16
      %v1424 = vpop.permute.xlu0 %1423
      %1425 = vrot.lane.b32.xlu0 %v817, 16
      %v1426 = vpop.permute.xlu0 %1425
      %1491 = vrot.lane.b32.xlu0 %v818, 20
      %v1492 = vpop.permute.xlu0 %1491
      %1493 = vrot.lane.b32.xlu0 %v819, 20
      %v1494 = vpop.permute.xlu0 %1493
      %1495 = vrot.lane.b32.xlu0 %v820, 20
      %v1496 = vpop.permute.xlu0 %1495
      %1497 = vrot.lane.b32.xlu0 %v821, 20
      %v1498 = vpop.permute.xlu0 %1497
      %1499 = vrot.lane.b32.xlu0 %v822, 20
      %v1500 = vpop.permute.xlu0 %1499
      %1501 = vrot.lane.b32.xlu0 %v823, 20
      %v1502 = vpop.permute.xlu0 %1501
      %1503 = vrot.lane.b32.xlu0 %v824, 20
      %v1504 = vpop.permute.xlu0 %1503
      %1505 = vrot.lane.b32.xlu0 %v825, 20
      %v1506 = vpop.permute.xlu0 %1505
      %1507 = vrot.lane.b32.xlu0 %v826, 20
      %v1508 = vpop.permute.xlu0 %1507
      %1509 = vrot.lane.b32.xlu0 %v827, 20
      %v1510 = vpop.permute.xlu0 %1509
      %1511 = vrot.lane.b32.xlu0 %v828, 20
      %v1512 = vpop.permute.xlu0 %1511
      %1513 = vrot.lane.b32.xlu0 %v829, 20
      %v1514 = vpop.permute.xlu0 %1513
      %1515 = vrot.lane.b32.xlu0 %v830, 20
      %v1516 = vpop.permute.xlu0 %1515
      %1517 = vrot.lane.b32.xlu0 %v831, 20
      %v1518 = vpop.permute.xlu0 %1517
      %1519 = vrot.lane.b32.xlu0 %v832, 20
      %v1520 = vpop.permute.xlu0 %1519
      %1521 = vrot.lane.b32.xlu0 %v833, 20
      %v1522 = vpop.permute.xlu0 %1521
      %1523 = vrot.lane.b32.xlu0 %v834, 20
      %v1524 = vpop.permute.xlu0 %1523
      %1525 = vrot.lane.b32.xlu0 %v835, 20
      %v1526 = vpop.permute.xlu0 %1525
      %1527 = vrot.lane.b32.xlu0 %v836, 20
      %v1528 = vpop.permute.xlu0 %1527
      %1529 = vrot.lane.b32.xlu0 %v837, 20
      %v1530 = vpop.permute.xlu0 %1529
      %1531 = vrot.lane.b32.xlu0 %v838, 20
      %v1532 = vpop.permute.xlu0 %1531
      %1533 = vrot.lane.b32.xlu0 %v839, 20
      %v1534 = vpop.permute.xlu0 %1533
      %1535 = vrot.lane.b32.xlu0 %v840, 20
      %v1536 = vpop.permute.xlu0 %1535
      %1537 = vrot.lane.b32.xlu0 %v841, 20
      %v1538 = vpop.permute.xlu0 %1537
      %1539 = vrot.lane.b32.xlu0 %v842, 20
      %v1540 = vpop.permute.xlu0 %1539
      %1541 = vrot.lane.b32.xlu0 %v843, 20
      %v1542 = vpop.permute.xlu0 %1541
      %1543 = vrot.lane.b32.xlu0 %v844, 20
      %v1544 = vpop.permute.xlu0 %1543
      %1545 = vrot.lane.b32.xlu0 %v845, 20
      %v1546 = vpop.permute.xlu0 %1545
      %1547 = vrot.lane.b32.xlu0 %v846, 20
      %v1548 = vpop.permute.xlu0 %1547
      %1549 = vrot.lane.b32.xlu0 %v847, 20
      %v1550 = vpop.permute.xlu0 %1549
      %1551 = vrot.lane.b32.xlu0 %v848, 20
      %v1552 = vpop.permute.xlu0 %1551
      %1553 = vrot.lane.b32.xlu0 %v849, 20
      %v1554 = vpop.permute.xlu0 %1553
      %1619 = vrot.lane.b32.xlu0 %v851, 24
      %v1620 = vpop.permute.xlu0 %1619
      %1621 = vrot.lane.b32.xlu0 %v852, 24
      %v1622 = vpop.permute.xlu0 %1621
      %1623 = vrot.lane.b32.xlu0 %v853, 24
      %v1624 = vpop.permute.xlu0 %1623
      %1625 = vrot.lane.b32.xlu0 %v854, 24
      %v1626 = vpop.permute.xlu0 %1625
      %1627 = vrot.lane.b32.xlu0 %v855, 24
      %v1628 = vpop.permute.xlu0 %1627
      %1629 = vrot.lane.b32.xlu0 %v856, 24
      %v1630 = vpop.permute.xlu0 %1629
      %1631 = vrot.lane.b32.xlu0 %v857, 24
      %v1632 = vpop.permute.xlu0 %1631
      %1633 = vrot.lane.b32.xlu0 %v858, 24
      %v1634 = vpop.permute.xlu0 %1633
      %1635 = vrot.lane.b32.xlu0 %v859, 24
      %v1636 = vpop.permute.xlu0 %1635
      %1637 = vrot.lane.b32.xlu0 %v860, 24
      %v1638 = vpop.permute.xlu0 %1637
      %1639 = vrot.lane.b32.xlu0 %v861, 24
      %v1640 = vpop.permute.xlu0 %1639
      %1641 = vrot.lane.b32.xlu0 %v862, 24
      %v1642 = vpop.permute.xlu0 %1641
      %1643 = vrot.lane.b32.xlu0 %v863, 24
      %v1644 = vpop.permute.xlu0 %1643
      %1645 = vrot.lane.b32.xlu0 %v864, 24
      %v1646 = vpop.permute.xlu0 %1645
      %1647 = vrot.lane.b32.xlu0 %v865, 24
      %v1648 = vpop.permute.xlu0 %1647
      %1649 = vrot.lane.b32.xlu0 %v866, 24
      %v1650 = vpop.permute.xlu0 %1649
      %1651 = vrot.lane.b32.xlu0 %v867, 24
      %v1652 = vpop.permute.xlu0 %1651
      %1653 = vrot.lane.b32.xlu0 %v868, 24
      %v1654 = vpop.permute.xlu0 %1653
      %1655 = vrot.lane.b32.xlu0 %v869, 24
      %v1656 = vpop.permute.xlu0 %1655
      %1657 = vrot.lane.b32.xlu0 %v870, 24
      %v1658 = vpop.permute.xlu0 %1657
      %1659 = vrot.lane.b32.xlu0 %v871, 24
      %v1660 = vpop.permute.xlu0 %1659
      %1661 = vrot.lane.b32.xlu0 %v872, 24
      %v1662 = vpop.permute.xlu0 %1661
      %1663 = vrot.lane.b32.xlu0 %v873, 24
      %v1664 = vpop.permute.xlu0 %1663
      %1665 = vrot.lane.b32.xlu0 %v874, 24
      %v1666 = vpop.permute.xlu0 %1665
      %1667 = vrot.lane.b32.xlu0 %v875, 24
      %v1668 = vpop.permute.xlu0 %1667
      %1669 = vrot.lane.b32.xlu0 %v876, 24
      %v1670 = vpop.permute.xlu0 %1669
      %1671 = vrot.lane.b32.xlu0 %v877, 24
      %v1672 = vpop.permute.xlu0 %1671
      %1673 = vrot.lane.b32.xlu0 %v878, 24
      %v1674 = vpop.permute.xlu0 %1673
      %1675 = vrot.lane.b32.xlu0 %v879, 24
      %v1676 = vpop.permute.xlu0 %1675
      %1677 = vrot.lane.b32.xlu0 %v880, 24
      %v1678 = vpop.permute.xlu0 %1677
      %1679 = vrot.lane.b32.xlu0 %v881, 24
      %v1680 = vpop.permute.xlu0 %1679
      %1681 = vrot.lane.b32.xlu0 %v882, 24
      %v1682 = vpop.permute.xlu0 %1681
      %1747 = vrot.lane.b32.xlu0 %v883, 28
      %v1748 = vpop.permute.xlu0 %1747
      %1749 = vrot.lane.b32.xlu0 %v884, 28
      %v1750 = vpop.permute.xlu0 %1749
      %1751 = vrot.lane.b32.xlu0 %v885, 28
      %v1752 = vpop.permute.xlu0 %1751
      %1753 = vrot.lane.b32.xlu0 %v886, 28
      %v1754 = vpop.permute.xlu0 %1753
      %1755 = vrot.lane.b32.xlu0 %v887, 28
      %v1756 = vpop.permute.xlu0 %1755
      %1757 = vrot.lane.b32.xlu0 %v888, 28
      %v1758 = vpop.permute.xlu0 %1757
      %1759 = vrot.lane.b32.xlu0 %v889, 28
      %v1760 = vpop.permute.xlu0 %1759
      %1761 = vrot.lane.b32.xlu0 %v890, 28
      %v1762 = vpop.permute.xlu0 %1761
      %1763 = vrot.lane.b32.xlu0 %v891, 28
      %v1764 = vpop.permute.xlu0 %1763
      %1765 = vrot.lane.b32.xlu0 %v892, 28
      %v1766 = vpop.permute.xlu0 %1765
      %1767 = vrot.lane.b32.xlu0 %v893, 28
      %v1768 = vpop.permute.xlu0 %1767
      %1769 = vrot.lane.b32.xlu0 %v894, 28
      %v1770 = vpop.permute.xlu0 %1769
      %1771 = vrot.lane.b32.xlu0 %v895, 28
      %v1772 = vpop.permute.xlu0 %1771
      %1773 = vrot.lane.b32.xlu0 %v896, 28
      %v1774 = vpop.permute.xlu0 %1773
      %1775 = vrot.lane.b32.xlu0 %v897, 28
      %v1776 = vpop.permute.xlu0 %1775
      %1777 = vrot.lane.b32.xlu0 %v898, 28
      %v1778 = vpop.permute.xlu0 %1777
      %1779 = vrot.lane.b32.xlu0 %v899, 28
      %v1780 = vpop.permute.xlu0 %1779
      %1781 = vrot.lane.b32.xlu0 %v900, 28
      %v1782 = vpop.permute.xlu0 %1781
      %1783 = vrot.lane.b32.xlu0 %v901, 28
      %v1784 = vpop.permute.xlu0 %1783
      %1785 = vrot.lane.b32.xlu0 %v902, 28
      %v1786 = vpop.permute.xlu0 %1785
      %1787 = vrot.lane.b32.xlu0 %v903, 28
      %v1788 = vpop.permute.xlu0 %1787
      %1789 = vrot.lane.b32.xlu0 %v904, 28
      %v1790 = vpop.permute.xlu0 %1789
      %1791 = vrot.lane.b32.xlu0 %v905, 28
      %v1792 = vpop.permute.xlu0 %1791
      %1793 = vrot.lane.b32.xlu0 %v906, 28
      %v1794 = vpop.permute.xlu0 %1793
      %1795 = vrot.lane.b32.xlu0 %v907, 28
      %v1796 = vpop.permute.xlu0 %1795
      %1797 = vrot.lane.b32.xlu0 %v908, 28
      %v1798 = vpop.permute.xlu0 %1797
      %1799 = vrot.lane.b32.xlu0 %v909, 28
      %v1800 = vpop.permute.xlu0 %1799
      %1801 = vrot.lane.b32.xlu0 %v910, 28
      %v1802 = vpop.permute.xlu0 %1801
      %1803 = vrot.lane.b32.xlu0 %v911, 28
      %v1804 = vpop.permute.xlu0 %1803
      %1805 = vrot.lane.b32.xlu0 %v912, 28
      %v1806 = vpop.permute.xlu0 %1805
      %1807 = vrot.lane.b32.xlu0 %v913, 28
      %v1808 = vpop.permute.xlu0 %1807
      %1809 = vrot.lane.b32.xlu0 %v914, 28
      %v1810 = vpop.permute.xlu0 %1809
      %1875 = vrot.lane.b32.xlu0 %v915, 32
      %v1876 = vpop.permute.xlu0 %1875
      %1877 = vrot.lane.b32.xlu0 %v916, 32
      %v1878 = vpop.permute.xlu0 %1877
      %1879 = vrot.lane.b32.xlu0 %v917, 32
      %v1880 = vpop.permute.xlu0 %1879
      %1881 = vrot.lane.b32.xlu0 %v918, 32
      %v1882 = vpop.permute.xlu0 %1881
      %1883 = vrot.lane.b32.xlu0 %v919, 32
      %v1884 = vpop.permute.xlu0 %1883
      %1885 = vrot.lane.b32.xlu0 %v920, 32
      %v1886 = vpop.permute.xlu0 %1885
      %1887 = vrot.lane.b32.xlu0 %v921, 32
      %v1888 = vpop.permute.xlu0 %1887
      %1889 = vrot.lane.b32.xlu0 %v922, 32
      %v1890 = vpop.permute.xlu0 %1889
      %1891 = vrot.lane.b32.xlu0 %v923, 32
      %v1892 = vpop.permute.xlu0 %1891
      %1893 = vrot.lane.b32.xlu0 %v924, 32
      %v1894 = vpop.permute.xlu0 %1893
      %1895 = vrot.lane.b32.xlu0 %v925, 32
      %v1896 = vpop.permute.xlu0 %1895
      %1897 = vrot.lane.b32.xlu0 %v926, 32
      %v1898 = vpop.permute.xlu0 %1897
      %1899 = vrot.lane.b32.xlu0 %v927, 32
      %v1900 = vpop.permute.xlu0 %1899
      %1901 = vrot.lane.b32.xlu0 %v928, 32
      %v1902 = vpop.permute.xlu0 %1901
      %1903 = vrot.lane.b32.xlu0 %v929, 32
      %v1904 = vpop.permute.xlu0 %1903
      %1905 = vrot.lane.b32.xlu0 %v930, 32
      %v1906 = vpop.permute.xlu0 %1905
      %1907 = vrot.lane.b32.xlu0 %v931, 32
      %v1908 = vpop.permute.xlu0 %1907
      %1909 = vrot.lane.b32.xlu0 %v932, 32
      %v1910 = vpop.permute.xlu0 %1909
      %1911 = vrot.lane.b32.xlu0 %v933, 32
      %v1912 = vpop.permute.xlu0 %1911
      %1913 = vrot.lane.b32.xlu0 %v934, 32
      %v1914 = vpop.permute.xlu0 %1913
      %1915 = vrot.lane.b32.xlu0 %v935, 32
      %v1916 = vpop.permute.xlu0 %1915
      %1917 = vrot.lane.b32.xlu0 %v936, 32
      %v1918 = vpop.permute.xlu0 %1917
      %1919 = vrot.lane.b32.xlu0 %v937, 32
      %v1920 = vpop.permute.xlu0 %1919
      %1921 = vrot.lane.b32.xlu0 %v938, 32
      %v1922 = vpop.permute.xlu0 %1921
      %1923 = vrot.lane.b32.xlu0 %v939, 32
      %v1924 = vpop.permute.xlu0 %1923
      %1925 = vrot.lane.b32.xlu0 %v940, 32
      %v1926 = vpop.permute.xlu0 %1925
      %1927 = vrot.lane.b32.xlu0 %v941, 32
      %v1928 = vpop.permute.xlu0 %1927
      %1929 = vrot.lane.b32.xlu0 %v942, 32
      %v1930 = vpop.permute.xlu0 %1929
      %1931 = vrot.lane.b32.xlu0 %v943, 32
      %v1932 = vpop.permute.xlu0 %1931
      %1933 = vrot.lane.b32.xlu0 %v944, 32
      %v1934 = vpop.permute.xlu0 %1933
      %1935 = vrot.lane.b32.xlu0 %v945, 32
      %v1936 = vpop.permute.xlu0 %1935
      %1937 = vrot.lane.b32.xlu0 %v946, 32
      %v1938 = vpop.permute.xlu0 %1937
      %v1971 = vsel %vm300, %v658, %v980
      %v1972 = vsel %vm300, %v659, %v982
      %v1973 = vsel %vm300, %v660, %v984
      %v1974 = vsel %vm300, %v661, %v986
      %v1975 = vsel %vm300, %v662, %v988
      %v1976 = vsel %vm300, %v663, %v990
      %v1977 = vsel %vm300, %v664, %v992
      %v1978 = vsel %vm300, %v665, %v994
      %v1979 = vsel %vm300, %v666, %v996
      %v1980 = vsel %vm300, %v667, %v998
      %v1981 = vsel %vm300, %v668, %v1000
      %v1982 = vsel %vm300, %v669, %v1002
      %v1983 = vsel %vm300, %v670, %v1004
      %v1984 = vsel %vm300, %v671, %v1006
      %v1985 = vsel %vm300, %v672, %v1008
      %v1986 = vsel %vm300, %v673, %v1010
      %v1987 = vsel %vm300, %v674, %v1012
      %v1988 = vsel %vm300, %v675, %v1014
      %v1989 = vsel %vm300, %v676, %v1016
      %v1990 = vsel %vm300, %v677, %v1018
      %v1991 = vsel %vm300, %v678, %v1020
      %v1992 = vsel %vm300, %v679, %v1022
      %v1993 = vsel %vm300, %v680, %v1024
      %v1994 = vsel %vm300, %v681, %v1026
      %v1995 = vsel %vm300, %v682, %v1028
      %v1996 = vsel %vm300, %v683, %v1030
      %v1997 = vsel %vm300, %v684, %v1032
      %v1998 = vsel %vm300, %v685, %v1034
      %v1999 = vsel %vm300, %v686, %v1036
      %v2000 = vsel %vm300, %v687, %v1038
      %v2001 = vsel %vm300, %v688, %v1040
      %v2002 = vsel %vm300, %v689, %v1042
      %vm2003 = vcmask 64512
      %v2004 = vsel %vm2003, %v1971, %v1108
      %v2005 = vsel %vm2003, %v1972, %v1110
      %v2006 = vsel %vm2003, %v1973, %v1112
      %v2007 = vsel %vm2003, %v1974, %v1114
      %v2008 = vsel %vm2003, %v1975, %v1116
      %v2009 = vsel %vm2003, %v1976, %v1118
      %v2010 = vsel %vm2003, %v1977, %v1120
      %v2011 = vsel %vm2003, %v1978, %v1122
      %v2012 = vsel %vm2003, %v1979, %v1124
      %v2013 = vsel %vm2003, %v1980, %v1126
      %v2014 = vsel %vm2003, %v1981, %v1128
      %v2015 = vsel %vm2003, %v1982, %v1130
      %v2016 = vsel %vm2003, %v1983, %v1132
      %v2017 = vsel %vm2003, %v1984, %v1134
      %v2018 = vsel %vm2003, %v1985, %v1136
      %v2019 = vsel %vm2003, %v1986, %v1138
      %v2020 = vsel %vm2003, %v1987, %v1140
      %v2021 = vsel %vm2003, %v1988, %v1142
      %v2022 = vsel %vm2003, %v1989, %v1144
      %v2023 = vsel %vm2003, %v1990, %v1146
      %v2024 = vsel %vm2003, %v1991, %v1148
      %v2025 = vsel %vm2003, %v1992, %v1150
      %v2026 = vsel %vm2003, %v1993, %v1152
      %v2027 = vsel %vm2003, %v1994, %v1154
      %v2028 = vsel %vm2003, %v1995, %v1156
      %v2029 = vsel %vm2003, %v1996, %v1158
      %v2030 = vsel %vm2003, %v1997, %v1160
      %v2031 = vsel %vm2003, %v1998, %v1162
      %v2032 = vsel %vm2003, %v1999, %v1164
      %v2033 = vsel %vm2003, %v2000, %v1166
      %v2034 = vsel %vm2003, %v2001, %v1168
      %v2035 = vsel %vm2003, %v2002, %v1170
      %vm2036 = vcmask 97280
      %v2037 = vsel %vm2036, %v2004, %v1236
      %v2038 = vsel %vm2036, %v2005, %v1238
      %v2039 = vsel %vm2036, %v2006, %v1240
      %v2040 = vsel %vm2036, %v2007, %v1242
      %v2041 = vsel %vm2036, %v2008, %v1244
      %v2042 = vsel %vm2036, %v2009, %v1246
      %v2043 = vsel %vm2036, %v2010, %v1248
      %v2044 = vsel %vm2036, %v2011, %v1250
      %v2045 = vsel %vm2036, %v2012, %v1252
      %v2046 = vsel %vm2036, %v2013, %v1254
      %v2047 = vsel %vm2036, %v2014, %v1256
      %v2048 = vsel %vm2036, %v2015, %v1258
      %v2049 = vsel %vm2036, %v2016, %v1260
      %v2050 = vsel %vm2036, %v2017, %v1262
      %v2051 = vsel %vm2036, %v2018, %v1264
      %v2052 = vsel %vm2036, %v2019, %v1266
      %v2053 = vsel %vm2036, %v2020, %v1268
      %v2054 = vsel %vm2036, %v2021, %v1270
      %v2055 = vsel %vm2036, %v2022, %v1272
      %v2056 = vsel %vm2036, %v2023, %v1274
      %v2057 = vsel %vm2036, %v2024, %v1276
      %v2058 = vsel %vm2036, %v2025, %v1278
      %v2059 = vsel %vm2036, %v2026, %v1280
      %v2060 = vsel %vm2036, %v2027, %v1282
      %v2061 = vsel %vm2036, %v2028, %v1284
      %v2062 = vsel %vm2036, %v2029, %v1286
      %v2063 = vsel %vm2036, %v2030, %v1288
      %v2064 = vsel %vm2036, %v2031, %v1290
      %v2065 = vsel %vm2036, %v2032, %v1292
      %v2066 = vsel %vm2036, %v2033, %v1294
      %v2067 = vsel %vm2036, %v2034, %v1296
      %v2068 = vsel %vm2036, %v2035, %v1298
      %vm2069 = vcmask 130048
      %v2070 = vsel %vm2069, %v2037, %v1364
      %v2071 = vsel %vm2069, %v2038, %v1366
      %v2072 = vsel %vm2069, %v2039, %v1368
      %v2073 = vsel %vm2069, %v2040, %v1370
      %v2074 = vsel %vm2069, %v2041, %v1372
      %v2075 = vsel %vm2069, %v2042, %v1374
      %v2076 = vsel %vm2069, %v2043, %v1376
      %v2077 = vsel %vm2069, %v2044, %v1378
      %v2078 = vsel %vm2069, %v2045, %v1380
      %v2079 = vsel %vm2069, %v2046, %v1382
      %v2080 = vsel %vm2069, %v2047, %v1384
      %v2081 = vsel %vm2069, %v2048, %v1386
      %v2082 = vsel %vm2069, %v2049, %v1388
      %v2083 = vsel %vm2069, %v2050, %v1390
      %v2084 = vsel %vm2069, %v2051, %v1392
      %v2085 = vsel %vm2069, %v2052, %v1394
      %v2086 = vsel %vm2069, %v2053, %v1396
      %v2087 = vsel %vm2069, %v2054, %v1398
      %v2088 = vsel %vm2069, %v2055, %v1400
      %v2089 = vsel %vm2069, %v2056, %v1402
      %v2090 = vsel %vm2069, %v2057, %v1404
      %v2091 = vsel %vm2069, %v2058, %v1406
      %v2092 = vsel %vm2069, %v2059, %v1408
      %v2093 = vsel %vm2069, %v2060, %v1410
      %v2094 = vsel %vm2069, %v2061, %v1412
      %v2095 = vsel %vm2069, %v2062, %v1414
      %v2096 = vsel %vm2069, %v2063, %v1416
      %v2097 = vsel %vm2069, %v2064, %v1418
      %v2098 = vsel %vm2069, %v2065, %v1420
      %v2099 = vsel %vm2069, %v2066, %v1422
      %v2100 = vsel %vm2069, %v2067, %v1424
      %v2101 = vsel %vm2069, %v2068, %v1426
      %vm2102 = vcmask 162816
      %v2103 = vsel %vm2102, %v2070, %v1492
      %v2104 = vsel %vm2102, %v2071, %v1494
      %v2105 = vsel %vm2102, %v2072, %v1496
      %v2106 = vsel %vm2102, %v2073, %v1498
      %v2107 = vsel %vm2102, %v2074, %v1500
      %v2108 = vsel %vm2102, %v2075, %v1502
      %v2109 = vsel %vm2102, %v2076, %v1504
      %v2110 = vsel %vm2102, %v2077, %v1506
      %v2111 = vsel %vm2102, %v2078, %v1508
      %v2112 = vsel %vm2102, %v2079, %v1510
      %v2113 = vsel %vm2102, %v2080, %v1512
      %v2114 = vsel %vm2102, %v2081, %v1514
      %v2115 = vsel %vm2102, %v2082, %v1516
      %v2116 = vsel %vm2102, %v2083, %v1518
      %v2117 = vsel %vm2102, %v2084, %v1520
      %v2118 = vsel %vm2102, %v2085, %v1522
      %v2119 = vsel %vm2102, %v2086, %v1524
      %v2120 = vsel %vm2102, %v2087, %v1526
      %v2121 = vsel %vm2102, %v2088, %v1528
      %v2122 = vsel %vm2102, %v2089, %v1530
      %v2123 = vsel %vm2102, %v2090, %v1532
      %v2124 = vsel %vm2102, %v2091, %v1534
      %v2125 = vsel %vm2102, %v2092, %v1536
      %v2126 = vsel %vm2102, %v2093, %v1538
      %v2127 = vsel %vm2102, %v2094, %v1540
      %v2128 = vsel %vm2102, %v2095, %v1542
      %v2129 = vsel %vm2102, %v2096, %v1544
      %v2130 = vsel %vm2102, %v2097, %v1546
      %v2131 = vsel %vm2102, %v2098, %v1548
      %v2132 = vsel %vm2102, %v2099, %v1550
      %v2133 = vsel %vm2102, %v2100, %v1552
      %v2134 = vsel %vm2102, %v2101, %v1554
      %vm2135 = vcmask 195584
      %v2136 = vsel %vm2135, %v2103, %v1620
      %v2137 = vsel %vm2135, %v2104, %v1622
      %v2138 = vsel %vm2135, %v2105, %v1624
      %v2139 = vsel %vm2135, %v2106, %v1626
      %v2140 = vsel %vm2135, %v2107, %v1628
      %v2141 = vsel %vm2135, %v2108, %v1630
      %v2142 = vsel %vm2135, %v2109, %v1632
      %v2143 = vsel %vm2135, %v2110, %v1634
      %v2144 = vsel %vm2135, %v2111, %v1636
      %v2145 = vsel %vm2135, %v2112, %v1638
      %v2146 = vsel %vm2135, %v2113, %v1640
      %v2147 = vsel %vm2135, %v2114, %v1642
      %v2148 = vsel %vm2135, %v2115, %v1644
      %v2149 = vsel %vm2135, %v2116, %v1646
      %v2150 = vsel %vm2135, %v2117, %v1648
      %v2151 = vsel %vm2135, %v2118, %v1650
      %v2152 = vsel %vm2135, %v2119, %v1652
      %v2153 = vsel %vm2135, %v2120, %v1654
      %v2154 = vsel %vm2135, %v2121, %v1656
      %v2155 = vsel %vm2135, %v2122, %v1658
      %v2156 = vsel %vm2135, %v2123, %v1660
      %v2157 = vsel %vm2135, %v2124, %v1662
      %v2158 = vsel %vm2135, %v2125, %v1664
      %v2159 = vsel %vm2135, %v2126, %v1666
      %v2160 = vsel %vm2135, %v2127, %v1668
      %v2161 = vsel %vm2135, %v2128, %v1670
      %v2162 = vsel %vm2135, %v2129, %v1672
      %v2163 = vsel %vm2135, %v2130, %v1674
      %v2164 = vsel %vm2135, %v2131, %v1676
      %v2165 = vsel %vm2135, %v2132, %v1678
      %v2166 = vsel %vm2135, %v2133, %v1680
      %v2167 = vsel %vm2135, %v2134, %v1682
      %vm2168 = vcmask 228352
      %v2169 = vsel %vm2168, %v2136, %v1748
      %v2170 = vsel %vm2168, %v2137, %v1750
      %v2171 = vsel %vm2168, %v2138, %v1752
      %v2172 = vsel %vm2168, %v2139, %v1754
      %v2173 = vsel %vm2168, %v2140, %v1756
      %v2174 = vsel %vm2168, %v2141, %v1758
      %v2175 = vsel %vm2168, %v2142, %v1760
      %v2176 = vsel %vm2168, %v2143, %v1762
      %v2177 = vsel %vm2168, %v2144, %v1764
      %v2178 = vsel %vm2168, %v2145, %v1766
      %v2179 = vsel %vm2168, %v2146, %v1768
      %v2180 = vsel %vm2168, %v2147, %v1770
      %v2181 = vsel %vm2168, %v2148, %v1772
      %v2182 = vsel %vm2168, %v2149, %v1774
      %v2183 = vsel %vm2168, %v2150, %v1776
      %v2184 = vsel %vm2168, %v2151, %v1778
      %v2185 = vsel %vm2168, %v2152, %v1780
      %v2186 = vsel %vm2168, %v2153, %v1782
      %v2187 = vsel %vm2168, %v2154, %v1784
      %v2188 = vsel %vm2168, %v2155, %v1786
      %v2189 = vsel %vm2168, %v2156, %v1788
      %v2190 = vsel %vm2168, %v2157, %v1790
      %v2191 = vsel %vm2168, %v2158, %v1792
      %v2192 = vsel %vm2168, %v2159, %v1794
      %v2193 = vsel %vm2168, %v2160, %v1796
      %v2194 = vsel %vm2168, %v2161, %v1798
      %v2195 = vsel %vm2168, %v2162, %v1800
      %v2196 = vsel %vm2168, %v2163, %v1802
      %v2197 = vsel %vm2168, %v2164, %v1804
      %v2198 = vsel %vm2168, %v2165, %v1806
      %v2199 = vsel %vm2168, %v2166, %v1808
      %v2200 = vsel %vm2168, %v2167, %v1810
      %vm2201 = vcmask 261120
      %v2202 = vsel %vm2201, %v2169, %v1876
      %v2203 = vsel %vm2201, %v2170, %v1878
      %v2204 = vsel %vm2201, %v2171, %v1880
      %v2205 = vsel %vm2201, %v2172, %v1882
      %v2206 = vsel %vm2201, %v2173, %v1884
      %v2207 = vsel %vm2201, %v2174, %v1886
      %v2208 = vsel %vm2201, %v2175, %v1888
      %v2209 = vsel %vm2201, %v2176, %v1890
      %v2210 = vsel %vm2201, %v2177, %v1892
      %v2211 = vsel %vm2201, %v2178, %v1894
      %v2212 = vsel %vm2201, %v2179, %v1896
      %v2213 = vsel %vm2201, %v2180, %v1898
      %v2214 = vsel %vm2201, %v2181, %v1900
      %v2215 = vsel %vm2201, %v2182, %v1902
      %v2216 = vsel %vm2201, %v2183, %v1904
      %v2217 = vsel %vm2201, %v2184, %v1906
      %v2218 = vsel %vm2201, %v2185, %v1908
      %v2219 = vsel %vm2201, %v2186, %v1910
      %v2220 = vsel %vm2201, %v2187, %v1912
      %v2221 = vsel %vm2201, %v2188, %v1914
      %v2222 = vsel %vm2201, %v2189, %v1916
      %v2223 = vsel %vm2201, %v2190, %v1918
      %v2224 = vsel %vm2201, %v2191, %v1920
      %v2225 = vsel %vm2201, %v2192, %v1922
      %v2226 = vsel %vm2201, %v2193, %v1924
      %v2227 = vsel %vm2201, %v2194, %v1926
      %v2228 = vsel %vm2201, %v2195, %v1928
      %v2229 = vsel %vm2201, %v2196, %v1930
      %v2230 = vsel %vm2201, %v2197, %v1932
      %v2231 = vsel %vm2201, %v2198, %v1934
      %v2232 = vsel %vm2201, %v2199, %v1936
      %v2233 = vsel %vm2201, %v2200, %v1938
      %v2234 = vpack.c.bf16 %v2203, %v2202
      %v2235 = vpack.c.bf16 %v2205, %v2204
      %v2236 = vpack.c.bf16 %v2207, %v2206
      %v2237 = vpack.c.bf16 %v2209, %v2208
      %v2238 = vpack.c.bf16 %v2211, %v2210
      %v2239 = vpack.c.bf16 %v2213, %v2212
      %v2240 = vpack.c.bf16 %v2215, %v2214
      %v2241 = vpack.c.bf16 %v2217, %v2216
      %v2242 = vpack.c.bf16 %v2219, %v2218
      %v2243 = vpack.c.bf16 %v2221, %v2220
      %v2244 = vpack.c.bf16 %v2223, %v2222
      %v2245 = vpack.c.bf16 %v2225, %v2224
      %v2246 = vpack.c.bf16 %v2227, %v2226
      %v2247 = vpack.c.bf16 %v2229, %v2228
      %v2248 = vpack.c.bf16 %v2231, %v2230
      %v2249 = vpack.c.bf16 %v2233, %v2232
      %v2250 = vld [vmem:[%s2] sm:$0xf]
      %v2251 = vld [vmem:[%s2 + $0x4] sm:$0xf]
      %v2252 = vld [vmem:[%s2 + $0x8] sm:$0xf]
      %v2253 = vld [vmem:[%s2 + $0xc] sm:$0xf]
      %v2254 = vld [vmem:[%s2 + $0x10] sm:$0x3]
      %v2255 = vld [vmem:[#allocation3] sm:$0xff]
      %v2256 = vld [vmem:[#allocation3 + $0x8] sm:$0xff]
      %v2257 = vld [vmem:[#allocation3 + $0x18] sm:$0xff]
      %v2258 = vld [vmem:[#allocation3 + $0x20] sm:$0xff]
      %v2259 = vld [vmem:[#allocation3 + $0x30] sm:$0xff]
      %v2260 = vld [vmem:[#allocation3 + $0x38] sm:$0xff]
      %v2261 = vld [vmem:[#allocation3 + $0x48] sm:$0xff]
      %v2262 = vld [vmem:[#allocation3 + $0x50] sm:$0xff]
      %v2263 = vld [vmem:[#allocation3 + $0x60] sm:$0xff]
      %v2264 = vld [vmem:[#allocation3 + $0x68] sm:$0xff]
      %v2265 = vld [vmem:[#allocation3 + $0x78] sm:$0xff]
      %v2266 = vld [vmem:[#allocation3 + $0x80] sm:$0xff]
      %v2267 = vld [vmem:[#allocation3 + $0x90] sm:$0xff]
      %v2268 = vld [vmem:[#allocation3 + $0x98] sm:$0xff]
      %v2269 = vld [vmem:[#allocation3 + $0xa8] sm:$0xff]
      %v2270 = vld [vmem:[#allocation3 + $0xb0] sm:$0xff]
      %v2271 = vld [vmem:[#allocation3 + $0xc0] sm:$0xff]
      %v2272 = vld [vmem:[#allocation3 + $0xc8] sm:$0xff]
      %v2273 = vld [vmem:[#allocation3 + $0xd8] sm:$0xff]
      %v2274 = vld [vmem:[#allocation3 + $0xe0] sm:$0xff]
      %v2275 = vld [vmem:[#allocation3 + $0xf0] sm:$0xff]
      %v2276 = vld [vmem:[#allocation3 + $0xf8] sm:$0xff]
      %v2277 = vld [vmem:[#allocation3 + $0x108] sm:$0xff]
      %v2278 = vld [vmem:[#allocation3 + $0x110] sm:$0xff]
      %v2279 = vld [vmem:[#allocation3 + $0x120] sm:$0xff]
      %v2280 = vld [vmem:[#allocation3 + $0x128] sm:$0xff]
      %v2281 = vld [vmem:[#allocation3 + $0x138] sm:$0xff]
      %v2282 = vld [vmem:[#allocation3 + $0x140] sm:$0xff]
      %v2283 = vld [vmem:[#allocation3 + $0x150] sm:$0xff]
      %v2284 = vld [vmem:[#allocation3 + $0x158] sm:$0xff]
      %v2285 = vld [vmem:[#allocation3 + $0x168] sm:$0xff]
      %v2286 = vld [vmem:[#allocation3 + $0x170] sm:$0xff]
      %v2287 = vld [vmem:[#allocation3 + $0x1] sm:$0xff]
      %v2288 = vld [vmem:[#allocation3 + $0x9] sm:$0xff]
      %v2289 = vld [vmem:[#allocation3 + $0x19] sm:$0xff]
      %v2290 = vld [vmem:[#allocation3 + $0x21] sm:$0xff]
      %v2291 = vld [vmem:[#allocation3 + $0x31] sm:$0xff]
      %v2292 = vld [vmem:[#allocation3 + $0x39] sm:$0xff]
      %v2293 = vld [vmem:[#allocation3 + $0x49] sm:$0xff]
      %v2294 = vld [vmem:[#allocation3 + $0x51] sm:$0xff]
      %v2295 = vld [vmem:[#allocation3 + $0x61] sm:$0xff]
      %v2296 = vld [vmem:[#allocation3 + $0x69] sm:$0xff]
      %v2297 = vld [vmem:[#allocation3 + $0x79] sm:$0xff]
      %v2298 = vld [vmem:[#allocation3 + $0x81] sm:$0xff]
      %v2299 = vld [vmem:[#allocation3 + $0x91] sm:$0xff]
      %v2300 = vld [vmem:[#allocation3 + $0x99] sm:$0xff]
      %v2301 = vld [vmem:[#allocation3 + $0xa9] sm:$0xff]
      %v2302 = vld [vmem:[#allocation3 + $0xb1] sm:$0xff]
      %v2303 = vld [vmem:[#allocation3 + $0xc1] sm:$0xff]
      %v2304 = vld [vmem:[#allocation3 + $0xc9] sm:$0xff]
      %v2305 = vld [vmem:[#allocation3 + $0xd9] sm:$0xff]
      %v2306 = vld [vmem:[#allocation3 + $0xe1] sm:$0xff]
      %v2307 = vld [vmem:[#allocation3 + $0xf1] sm:$0xff]
      %v2308 = vld [vmem:[#allocation3 + $0xf9] sm:$0xff]
      %v2309 = vld [vmem:[#allocation3 + $0x109] sm:$0xff]
      %v2310 = vld [vmem:[#allocation3 + $0x111] sm:$0xff]
      %v2311 = vld [vmem:[#allocation3 + $0x121] sm:$0xff]
      %v2312 = vld [vmem:[#allocation3 + $0x129] sm:$0xff]
      %v2313 = vld [vmem:[#allocation3 + $0x139] sm:$0xff]
      %v2314 = vld [vmem:[#allocation3 + $0x141] sm:$0xff]
      %v2315 = vld [vmem:[#allocation3 + $0x151] sm:$0xff]
      %v2316 = vld [vmem:[#allocation3 + $0x159] sm:$0xff]
      %v2317 = vld [vmem:[#allocation3 + $0x169] sm:$0xff]
      %v2318 = vld [vmem:[#allocation3 + $0x171] sm:$0xff]
      %v2319 = vld [vmem:[#allocation3 + $0x2] sm:$0xff]
      %v2320 = vld [vmem:[#allocation3 + $0xa] sm:$0xff]
      %v2321 = vld [vmem:[#allocation3 + $0x1a] sm:$0xff]
      %v2322 = vld [vmem:[#allocation3 + $0x22] sm:$0xff]
      %v2323 = vld [vmem:[#allocation3 + $0x32] sm:$0xff]
      %v2324 = vld [vmem:[#allocation3 + $0x3a] sm:$0xff]
      %v2325 = vld [vmem:[#allocation3 + $0x4a] sm:$0xff]
      %v2326 = vld [vmem:[#allocation3 + $0x52] sm:$0xff]
      %v2327 = vld [vmem:[#allocation3 + $0x62] sm:$0xff]
      %v2328 = vld [vmem:[#allocation3 + $0x6a] sm:$0xff]
      %v2329 = vld [vmem:[#allocation3 + $0x7a] sm:$0xff]
      %v2330 = vld [vmem:[#allocation3 + $0x82] sm:$0xff]
      %v2331 = vld [vmem:[#allocation3 + $0x92] sm:$0xff]
      %v2332 = vld [vmem:[#allocation3 + $0x9a] sm:$0xff]
      %v2333 = vld [vmem:[#allocation3 + $0xaa] sm:$0xff]
      %v2334 = vld [vmem:[#allocation3 + $0xb2] sm:$0xff]
      %v2335 = vld [vmem:[#allocation3 + $0xc2] sm:$0xff]
      %v2336 = vld [vmem:[#allocation3 + $0xca] sm:$0xff]
      %v2337 = vld [vmem:[#allocation3 + $0xda] sm:$0xff]
      %v2338 = vld [vmem:[#allocation3 + $0xe2] sm:$0xff]
      %v2339 = vld [vmem:[#allocation3 + $0xf2] sm:$0xff]
      %v2340 = vld [vmem:[#allocation3 + $0xfa] sm:$0xff]
      %v2341 = vld [vmem:[#allocation3 + $0x10a] sm:$0xff]
      %v2342 = vld [vmem:[#allocation3 + $0x112] sm:$0xff]
      %v2343 = vld [vmem:[#allocation3 + $0x122] sm:$0xff]
      %v2344 = vld [vmem:[#allocation3 + $0x12a] sm:$0xff]
      %v2345 = vld [vmem:[#allocation3 + $0x13a] sm:$0xff]
      %v2346 = vld [vmem:[#allocation3 + $0x142] sm:$0xff]
      %v2347 = vld [vmem:[#allocation3 + $0x152] sm:$0xff]
      %v2348 = vld [vmem:[#allocation3 + $0x15a] sm:$0xff]
      %v2349 = vld [vmem:[#allocation3 + $0x16a] sm:$0xff]
      %v2350 = vld [vmem:[#allocation3 + $0x172] sm:$0xff]
      %v2351 = vld [vmem:[%s625] sm:$0xff]
      %v2352 = vld [vmem:[%s625 + $0x8] sm:$0xff]
      %v2353 = vld [vmem:[%s625 + $0x18] sm:$0xff]
      %v2354 = vld [vmem:[%s625 + $0x20] sm:$0xff]
      %v2355 = vld [vmem:[%s625 + $0x30] sm:$0xff]
      %v2356 = vld [vmem:[%s625 + $0x38] sm:$0xff]
      %v2357 = vld [vmem:[%s625 + $0x48] sm:$0xff]
      %v2358 = vld [vmem:[%s625 + $0x50] sm:$0xff]
      %v2359 = vld [vmem:[%s625 + $0x60] sm:$0xff]
      %v2360 = vld [vmem:[%s625 + $0x68] sm:$0xff]
      %v2361 = vld [vmem:[%s625 + $0x78] sm:$0xff]
      %v2362 = vld [vmem:[%s625 + $0x80] sm:$0xff]
      %v2363 = vld [vmem:[%s625 + $0x90] sm:$0xff]
      %v2364 = vld [vmem:[%s625 + $0x98] sm:$0xff]
      %v2365 = vld [vmem:[%s625 + $0xa8] sm:$0xff]
      %v2366 = vld [vmem:[%s625 + $0xb0] sm:$0xff]
      %v2367 = vld [vmem:[%s625 + $0xc0] sm:$0xff]
      %v2368 = vld [vmem:[%s625 + $0xc8] sm:$0xff]
      %v2369 = vld [vmem:[%s625 + $0xd8] sm:$0xff]
      %v2370 = vld [vmem:[%s625 + $0xe0] sm:$0xff]
      %v2371 = vld [vmem:[%s625 + $0xf0] sm:$0xff]
      %v2372 = vld [vmem:[%s625 + $0xf8] sm:$0xff]
      %v2373 = vld [vmem:[%s625 + $0x108] sm:$0xff]
      %v2374 = vld [vmem:[%s625 + $0x110] sm:$0xff]
      %v2375 = vld [vmem:[%s625 + $0x120] sm:$0xff]
      %v2376 = vld [vmem:[%s625 + $0x128] sm:$0xff]
      %v2377 = vld [vmem:[%s625 + $0x138] sm:$0xff]
      %v2378 = vld [vmem:[%s625 + $0x140] sm:$0xff]
      %v2379 = vld [vmem:[%s625 + $0x150] sm:$0xff]
      %v2380 = vld [vmem:[%s625 + $0x158] sm:$0xff]
      %v2381 = vld [vmem:[%s625 + $0x168] sm:$0xff]
      %v2382 = vld [vmem:[%s625 + $0x170] sm:$0xff]
      %v2383 = vld [vmem:[%s625 + $0x1] sm:$0xff]
      %v2384 = vld [vmem:[%s625 + $0x9] sm:$0xff]
      %v2385 = vld [vmem:[%s625 + $0x19] sm:$0xff]
      %v2386 = vld [vmem:[%s625 + $0x21] sm:$0xff]
      %v2387 = vld [vmem:[%s625 + $0x31] sm:$0xff]
      %v2388 = vld [vmem:[%s625 + $0x39] sm:$0xff]
      %v2389 = vld [vmem:[%s625 + $0x49] sm:$0xff]
      %v2390 = vld [vmem:[%s625 + $0x51] sm:$0xff]
      %v2391 = vld [vmem:[%s625 + $0x61] sm:$0xff]
      %v2392 = vld [vmem:[%s625 + $0x69] sm:$0xff]
      %v2393 = vld [vmem:[%s625 + $0x79] sm:$0xff]
      %v2394 = vld [vmem:[%s625 + $0x81] sm:$0xff]
      %v2395 = vld [vmem:[%s625 + $0x91] sm:$0xff]
      %v2396 = vld [vmem:[%s625 + $0x99] sm:$0xff]
      %v2397 = vld [vmem:[%s625 + $0xa9] sm:$0xff]
      %v2398 = vld [vmem:[%s625 + $0xb1] sm:$0xff]
      %v2399 = vld [vmem:[%s625 + $0xc1] sm:$0xff]
      %v2400 = vld [vmem:[%s625 + $0xc9] sm:$0xff]
      %v2401 = vld [vmem:[%s625 + $0xd9] sm:$0xff]
      %v2402 = vld [vmem:[%s625 + $0xe1] sm:$0xff]
      %v2403 = vld [vmem:[%s625 + $0xf1] sm:$0xff]
      %v2404 = vld [vmem:[%s625 + $0xf9] sm:$0xff]
      %v2405 = vld [vmem:[%s625 + $0x109] sm:$0xff]
      %v2406 = vld [vmem:[%s625 + $0x111] sm:$0xff]
      %v2407 = vld [vmem:[%s625 + $0x121] sm:$0xff]
      %v2408 = vld [vmem:[%s625 + $0x129] sm:$0xff]
      %v2409 = vld [vmem:[%s625 + $0x139] sm:$0xff]
      %v2410 = vld [vmem:[%s625 + $0x141] sm:$0xff]
      %v2411 = vld [vmem:[%s625 + $0x151] sm:$0xff]
      %v2412 = vld [vmem:[%s625 + $0x159] sm:$0xff]
      %v2413 = vld [vmem:[%s625 + $0x169] sm:$0xff]
      %v2414 = vld [vmem:[%s625 + $0x171] sm:$0xff]
      %v2415 = vld [vmem:[%s625 + $0x2] sm:$0xff]
      %v2416 = vld [vmem:[%s625 + $0xa] sm:$0xff]
      %v2417 = vld [vmem:[%s625 + $0x1a] sm:$0xff]
      %v2418 = vld [vmem:[%s625 + $0x22] sm:$0xff]
      %v2419 = vld [vmem:[%s625 + $0x32] sm:$0xff]
      %v2420 = vld [vmem:[%s625 + $0x3a] sm:$0xff]
      %v2421 = vld [vmem:[%s625 + $0x4a] sm:$0xff]
      %v2422 = vld [vmem:[%s625 + $0x52] sm:$0xff]
      %v2423 = vld [vmem:[%s625 + $0x62] sm:$0xff]
      %v2424 = vld [vmem:[%s625 + $0x6a] sm:$0xff]
      %v2425 = vld [vmem:[%s625 + $0x7a] sm:$0xff]
      %v2426 = vld [vmem:[%s625 + $0x82] sm:$0xff]
      %v2427 = vld [vmem:[%s625 + $0x92] sm:$0xff]
      %v2428 = vld [vmem:[%s625 + $0x9a] sm:$0xff]
      %v2429 = vld [vmem:[%s625 + $0xaa] sm:$0xff]
      %v2430 = vld [vmem:[%s625 + $0xb2] sm:$0xff]
      %v2431 = vld [vmem:[%s625 + $0xc2] sm:$0xff]
      %v2432 = vld [vmem:[%s625 + $0xca] sm:$0xff]
      %v2433 = vld [vmem:[%s625 + $0xda] sm:$0xff]
      %v2434 = vld [vmem:[%s625 + $0xe2] sm:$0xff]
      %v2435 = vld [vmem:[%s625 + $0xf2] sm:$0xff]
      %v2436 = vld [vmem:[%s625 + $0xfa] sm:$0xff]
      %v2437 = vld [vmem:[%s625 + $0x10a] sm:$0xff]
      %v2438 = vld [vmem:[%s625 + $0x112] sm:$0xff]
      %v2439 = vld [vmem:[%s625 + $0x122] sm:$0xff]
      %v2440 = vld [vmem:[%s625 + $0x12a] sm:$0xff]
      %v2441 = vld [vmem:[%s625 + $0x13a] sm:$0xff]
      %v2442 = vld [vmem:[%s625 + $0x142] sm:$0xff]
      %v2443 = vld [vmem:[%s625 + $0x152] sm:$0xff]
      %v2444 = vld [vmem:[%s625 + $0x15a] sm:$0xff]
      %v2445 = vld [vmem:[%s625 + $0x16a] sm:$0xff]
      %v2446 = vld [vmem:[%s625 + $0x172] sm:$0xff]
      %s2447 = scalar_lea.vmem [#allocation3], 48
      %v2448 = vld [vmem:[%s2447] sm:$0xff]
      %v2449 = vld [vmem:[%s2447 + $0x8] sm:$0xff]
      %v2450 = vld [vmem:[%s2447 + $0x18] sm:$0xff]
      %v2451 = vld [vmem:[%s2447 + $0x20] sm:$0xff]
      %v2452 = vld [vmem:[%s2447 + $0x30] sm:$0xff]
      %v2453 = vld [vmem:[%s2447 + $0x38] sm:$0xff]
      %v2454 = vld [vmem:[%s2447 + $0x48] sm:$0xff]
      %v2455 = vld [vmem:[%s2447 + $0x50] sm:$0xff]
      %v2456 = vld [vmem:[%s2447 + $0x60] sm:$0xff]
      %v2457 = vld [vmem:[%s2447 + $0x68] sm:$0xff]
      %v2458 = vld [vmem:[%s2447 + $0x78] sm:$0xff]
      %v2459 = vld [vmem:[%s2447 + $0x80] sm:$0xff]
      %v2460 = vld [vmem:[%s2447 + $0x90] sm:$0xff]
      %v2461 = vld [vmem:[%s2447 + $0x98] sm:$0xff]
      %v2462 = vld [vmem:[%s2447 + $0xa8] sm:$0xff]
      %v2463 = vld [vmem:[%s2447 + $0xb0] sm:$0xff]
      %v2464 = vld [vmem:[%s2447 + $0xc0] sm:$0xff]
      %v2465 = vld [vmem:[%s2447 + $0xc8] sm:$0xff]
      %v2466 = vld [vmem:[%s2447 + $0xd8] sm:$0xff]
      %v2467 = vld [vmem:[%s2447 + $0xe0] sm:$0xff]
      %v2468 = vld [vmem:[%s2447 + $0xf0] sm:$0xff]
      %v2469 = vld [vmem:[%s2447 + $0xf8] sm:$0xff]
      %v2470 = vld [vmem:[%s2447 + $0x108] sm:$0xff]
      %v2471 = vld [vmem:[%s2447 + $0x110] sm:$0xff]
      %v2472 = vld [vmem:[%s2447 + $0x120] sm:$0xff]
      %v2473 = vld [vmem:[%s2447 + $0x128] sm:$0xff]
      %v2474 = vld [vmem:[%s2447 + $0x138] sm:$0xff]
      %v2475 = vld [vmem:[%s2447 + $0x140] sm:$0xff]
      %v2476 = vld [vmem:[%s2447 + $0x150] sm:$0xff]
      %v2477 = vld [vmem:[%s2447 + $0x158] sm:$0xff]
      %v2478 = vld [vmem:[%s2447 + $0x168] sm:$0xff]
      %v2479 = vld [vmem:[%s2447 + $0x170] sm:$0xff]
      %v2480 = vld [vmem:[%s2447 + $0x1] sm:$0xff]
      %v2481 = vld [vmem:[%s2447 + $0x9] sm:$0xff]
      %v2482 = vld [vmem:[%s2447 + $0x19] sm:$0xff]
      %v2483 = vld [vmem:[%s2447 + $0x21] sm:$0xff]
      %v2484 = vld [vmem:[%s2447 + $0x31] sm:$0xff]
      %v2485 = vld [vmem:[%s2447 + $0x39] sm:$0xff]
      %v2486 = vld [vmem:[%s2447 + $0x49] sm:$0xff]
      %v2487 = vld [vmem:[%s2447 + $0x51] sm:$0xff]
      %v2488 = vld [vmem:[%s2447 + $0x61] sm:$0xff]
      %v2489 = vld [vmem:[%s2447 + $0x69] sm:$0xff]
      %v2490 = vld [vmem:[%s2447 + $0x79] sm:$0xff]
      %v2491 = vld [vmem:[%s2447 + $0x81] sm:$0xff]
      %v2492 = vld [vmem:[%s2447 + $0x91] sm:$0xff]
      %v2493 = vld [vmem:[%s2447 + $0x99] sm:$0xff]
      %v2494 = vld [vmem:[%s2447 + $0xa9] sm:$0xff]
      %v2495 = vld [vmem:[%s2447 + $0xb1] sm:$0xff]
      %v2496 = vld [vmem:[%s2447 + $0xc1] sm:$0xff]
      %v2497 = vld [vmem:[%s2447 + $0xc9] sm:$0xff]
      %v2498 = vld [vmem:[%s2447 + $0xd9] sm:$0xff]
      %v2499 = vld [vmem:[%s2447 + $0xe1] sm:$0xff]
      %v2500 = vld [vmem:[%s2447 + $0xf1] sm:$0xff]
      %v2501 = vld [vmem:[%s2447 + $0xf9] sm:$0xff]
      %v2502 = vld [vmem:[%s2447 + $0x109] sm:$0xff]
      %v2503 = vld [vmem:[%s2447 + $0x111] sm:$0xff]
      %v2504 = vld [vmem:[%s2447 + $0x121] sm:$0xff]
      %v2505 = vld [vmem:[%s2447 + $0x129] sm:$0xff]
      %v2506 = vld [vmem:[%s2447 + $0x139] sm:$0xff]
      %v2507 = vld [vmem:[%s2447 + $0x141] sm:$0xff]
      %v2508 = vld [vmem:[%s2447 + $0x151] sm:$0xff]
      %v2509 = vld [vmem:[%s2447 + $0x159] sm:$0xff]
      %v2510 = vld [vmem:[%s2447 + $0x169] sm:$0xff]
      %v2511 = vld [vmem:[%s2447 + $0x171] sm:$0xff]
      %v2512 = vld [vmem:[%s2447 + $0x2] sm:$0xff]
      %v2513 = vld [vmem:[%s2447 + $0xa] sm:$0xff]
      %v2514 = vld [vmem:[%s2447 + $0x1a] sm:$0xff]
      %v2515 = vld [vmem:[%s2447 + $0x22] sm:$0xff]
      %v2516 = vld [vmem:[%s2447 + $0x32] sm:$0xff]
      %v2517 = vld [vmem:[%s2447 + $0x3a] sm:$0xff]
      %v2518 = vld [vmem:[%s2447 + $0x4a] sm:$0xff]
      %v2519 = vld [vmem:[%s2447 + $0x52] sm:$0xff]
      %v2520 = vld [vmem:[%s2447 + $0x62] sm:$0xff]
      %v2521 = vld [vmem:[%s2447 + $0x6a] sm:$0xff]
      %v2522 = vld [vmem:[%s2447 + $0x7a] sm:$0xff]
      %v2523 = vld [vmem:[%s2447 + $0x82] sm:$0xff]
      %v2524 = vld [vmem:[%s2447 + $0x92] sm:$0xff]
      %v2525 = vld [vmem:[%s2447 + $0x9a] sm:$0xff]
      %v2526 = vld [vmem:[%s2447 + $0xaa] sm:$0xff]
      %v2527 = vld [vmem:[%s2447 + $0xb2] sm:$0xff]
      %v2528 = vld [vmem:[%s2447 + $0xc2] sm:$0xff]
      %v2529 = vld [vmem:[%s2447 + $0xca] sm:$0xff]
      %v2530 = vld [vmem:[%s2447 + $0xda] sm:$0xff]
      %v2531 = vld [vmem:[%s2447 + $0xe2] sm:$0xff]
      %v2532 = vld [vmem:[%s2447 + $0xf2] sm:$0xff]
      %v2533 = vld [vmem:[%s2447 + $0xfa] sm:$0xff]
      %v2534 = vld [vmem:[%s2447 + $0x10a] sm:$0xff]
      %v2535 = vld [vmem:[%s2447 + $0x112] sm:$0xff]
      %v2536 = vld [vmem:[%s2447 + $0x122] sm:$0xff]
      %v2537 = vld [vmem:[%s2447 + $0x12a] sm:$0xff]
      %v2538 = vld [vmem:[%s2447 + $0x13a] sm:$0xff]
      %v2539 = vld [vmem:[%s2447 + $0x142] sm:$0xff]
      %v2540 = vld [vmem:[%s2447 + $0x152] sm:$0xff]
      %v2541 = vld [vmem:[%s2447 + $0x15a] sm:$0xff]
      %v2542 = vld [vmem:[%s2447 + $0x16a] sm:$0xff]
      %v2543 = vld [vmem:[%s2447 + $0x172] sm:$0xff]
      %2576 = vrot.lane.b32.xlu0 %v2287, 4
      %v2577 = vpop.permute.xlu0 %2576
      %2578 = vrot.lane.b32.xlu0 %v2288, 4
      %v2579 = vpop.permute.xlu0 %2578
      %2580 = vrot.lane.b32.xlu0 %v2289, 4
      %v2581 = vpop.permute.xlu0 %2580
      %2582 = vrot.lane.b32.xlu0 %v2290, 4
      %v2583 = vpop.permute.xlu0 %2582
      %2584 = vrot.lane.b32.xlu0 %v2291, 4
      %v2585 = vpop.permute.xlu0 %2584
      %2586 = vrot.lane.b32.xlu0 %v2292, 4
      %v2587 = vpop.permute.xlu0 %2586
      %2588 = vrot.lane.b32.xlu0 %v2293, 4
      %v2589 = vpop.permute.xlu0 %2588
      %2590 = vrot.lane.b32.xlu0 %v2294, 4
      %v2591 = vpop.permute.xlu0 %2590
      %2592 = vrot.lane.b32.xlu0 %v2295, 4
      %v2593 = vpop.permute.xlu0 %2592
      %2594 = vrot.lane.b32.xlu0 %v2296, 4
      %v2595 = vpop.permute.xlu0 %2594
      %2596 = vrot.lane.b32.xlu0 %v2297, 4
      %v2597 = vpop.permute.xlu0 %2596
      %2598 = vrot.lane.b32.xlu0 %v2298, 4
      %v2599 = vpop.permute.xlu0 %2598
      %2600 = vrot.lane.b32.xlu0 %v2299, 4
      %v2601 = vpop.permute.xlu0 %2600
      %2602 = vrot.lane.b32.xlu0 %v2300, 4
      %v2603 = vpop.permute.xlu0 %2602
      %2604 = vrot.lane.b32.xlu0 %v2301, 4
      %v2605 = vpop.permute.xlu0 %2604
      %2606 = vrot.lane.b32.xlu0 %v2302, 4
      %v2607 = vpop.permute.xlu0 %2606
      %2608 = vrot.lane.b32.xlu0 %v2303, 4
      %v2609 = vpop.permute.xlu0 %2608
      %2610 = vrot.lane.b32.xlu0 %v2304, 4
      %v2611 = vpop.permute.xlu0 %2610
      %2612 = vrot.lane.b32.xlu0 %v2305, 4
      %v2613 = vpop.permute.xlu0 %2612
      %2614 = vrot.lane.b32.xlu0 %v2306, 4
      %v2615 = vpop.permute.xlu0 %2614
      %2616 = vrot.lane.b32.xlu0 %v2307, 4
      %v2617 = vpop.permute.xlu0 %2616
      %2618 = vrot.lane.b32.xlu0 %v2308, 4
      %v2619 = vpop.permute.xlu0 %2618
      %2620 = vrot.lane.b32.xlu0 %v2309, 4
      %v2621 = vpop.permute.xlu0 %2620
      %2622 = vrot.lane.b32.xlu0 %v2310, 4
      %v2623 = vpop.permute.xlu0 %2622
      %2624 = vrot.lane.b32.xlu0 %v2311, 4
      %v2625 = vpop.permute.xlu0 %2624
      %2626 = vrot.lane.b32.xlu0 %v2312, 4
      %v2627 = vpop.permute.xlu0 %2626
      %2628 = vrot.lane.b32.xlu0 %v2313, 4
      %v2629 = vpop.permute.xlu0 %2628
      %2630 = vrot.lane.b32.xlu0 %v2314, 4
      %v2631 = vpop.permute.xlu0 %2630
      %2632 = vrot.lane.b32.xlu0 %v2315, 4
      %v2633 = vpop.permute.xlu0 %2632
      %2634 = vrot.lane.b32.xlu0 %v2316, 4
      %v2635 = vpop.permute.xlu0 %2634
      %2636 = vrot.lane.b32.xlu0 %v2317, 4
      %v2637 = vpop.permute.xlu0 %2636
      %2638 = vrot.lane.b32.xlu0 %v2318, 4
      %v2639 = vpop.permute.xlu0 %2638
      %2704 = vrot.lane.b32.xlu0 %v2319, 8
      %v2705 = vpop.permute.xlu0 %2704
      %2706 = vrot.lane.b32.xlu0 %v2320, 8
      %v2707 = vpop.permute.xlu0 %2706
      %2708 = vrot.lane.b32.xlu0 %v2321, 8
      %v2709 = vpop.permute.xlu0 %2708
      %2710 = vrot.lane.b32.xlu0 %v2322, 8
      %v2711 = vpop.permute.xlu0 %2710
      %2712 = vrot.lane.b32.xlu0 %v2323, 8
      %v2713 = vpop.permute.xlu0 %2712
      %2714 = vrot.lane.b32.xlu0 %v2324, 8
      %v2715 = vpop.permute.xlu0 %2714
      %2716 = vrot.lane.b32.xlu0 %v2325, 8
      %v2717 = vpop.permute.xlu0 %2716
      %2718 = vrot.lane.b32.xlu0 %v2326, 8
      %v2719 = vpop.permute.xlu0 %2718
      %2720 = vrot.lane.b32.xlu0 %v2327, 8
      %v2721 = vpop.permute.xlu0 %2720
      %2722 = vrot.lane.b32.xlu0 %v2328, 8
      %v2723 = vpop.permute.xlu0 %2722
      %2724 = vrot.lane.b32.xlu0 %v2329, 8
      %v2725 = vpop.permute.xlu0 %2724
      %2726 = vrot.lane.b32.xlu0 %v2330, 8
      %v2727 = vpop.permute.xlu0 %2726
      %2728 = vrot.lane.b32.xlu0 %v2331, 8
      %v2729 = vpop.permute.xlu0 %2728
      %2730 = vrot.lane.b32.xlu0 %v2332, 8
      %v2731 = vpop.permute.xlu0 %2730
      %2732 = vrot.lane.b32.xlu0 %v2333, 8
      %v2733 = vpop.permute.xlu0 %2732
      %2734 = vrot.lane.b32.xlu0 %v2334, 8
      %v2735 = vpop.permute.xlu0 %2734
      %2736 = vrot.lane.b32.xlu0 %v2335, 8
      %v2737 = vpop.permute.xlu0 %2736
      %2738 = vrot.lane.b32.xlu0 %v2336, 8
      %v2739 = vpop.permute.xlu0 %2738
      %2740 = vrot.lane.b32.xlu0 %v2337, 8
      %v2741 = vpop.permute.xlu0 %2740
      %2742 = vrot.lane.b32.xlu0 %v2338, 8
      %v2743 = vpop.permute.xlu0 %2742
      %2744 = vrot.lane.b32.xlu0 %v2339, 8
      %v2745 = vpop.permute.xlu0 %2744
      %2746 = vrot.lane.b32.xlu0 %v2340, 8
      %v2747 = vpop.permute.xlu0 %2746
      %2748 = vrot.lane.b32.xlu0 %v2341, 8
      %v2749 = vpop.permute.xlu0 %2748
      %2750 = vrot.lane.b32.xlu0 %v2342, 8
      %v2751 = vpop.permute.xlu0 %2750
      %2752 = vrot.lane.b32.xlu0 %v2343, 8
      %v2753 = vpop.permute.xlu0 %2752
      %2754 = vrot.lane.b32.xlu0 %v2344, 8
      %v2755 = vpop.permute.xlu0 %2754
      %2756 = vrot.lane.b32.xlu0 %v2345, 8
      %v2757 = vpop.permute.xlu0 %2756
      %2758 = vrot.lane.b32.xlu0 %v2346, 8
      %v2759 = vpop.permute.xlu0 %2758
      %2760 = vrot.lane.b32.xlu0 %v2347, 8
      %v2761 = vpop.permute.xlu0 %2760
      %2762 = vrot.lane.b32.xlu0 %v2348, 8
      %v2763 = vpop.permute.xlu0 %2762
      %2764 = vrot.lane.b32.xlu0 %v2349, 8
      %v2765 = vpop.permute.xlu0 %2764
      %2766 = vrot.lane.b32.xlu0 %v2350, 8
      %v2767 = vpop.permute.xlu0 %2766
      %2832 = vrot.lane.b32.xlu0 %v2351, 12
      %v2833 = vpop.permute.xlu0 %2832
      %2834 = vrot.lane.b32.xlu0 %v2352, 12
      %v2835 = vpop.permute.xlu0 %2834
      %2836 = vrot.lane.b32.xlu0 %v2353, 12
      %v2837 = vpop.permute.xlu0 %2836
      %2838 = vrot.lane.b32.xlu0 %v2354, 12
      %v2839 = vpop.permute.xlu0 %2838
      %2840 = vrot.lane.b32.xlu0 %v2355, 12
      %v2841 = vpop.permute.xlu0 %2840
      %2842 = vrot.lane.b32.xlu0 %v2356, 12
      %v2843 = vpop.permute.xlu0 %2842
      %2844 = vrot.lane.b32.xlu0 %v2357, 12
      %v2845 = vpop.permute.xlu0 %2844
      %2846 = vrot.lane.b32.xlu0 %v2358, 12
      %v2847 = vpop.permute.xlu0 %2846
      %2848 = vrot.lane.b32.xlu0 %v2359, 12
      %v2849 = vpop.permute.xlu0 %2848
      %2850 = vrot.lane.b32.xlu0 %v2360, 12
      %v2851 = vpop.permute.xlu0 %2850
      %2852 = vrot.lane.b32.xlu0 %v2361, 12
      %v2853 = vpop.permute.xlu0 %2852
      %2854 = vrot.lane.b32.xlu0 %v2362, 12
      %v2855 = vpop.permute.xlu0 %2854
      %2856 = vrot.lane.b32.xlu0 %v2363, 12
      %v2857 = vpop.permute.xlu0 %2856
      %2858 = vrot.lane.b32.xlu0 %v2364, 12
      %v2859 = vpop.permute.xlu0 %2858
      %2860 = vrot.lane.b32.xlu0 %v2365, 12
      %v2861 = vpop.permute.xlu0 %2860
      %2862 = vrot.lane.b32.xlu0 %v2366, 12
      %v2863 = vpop.permute.xlu0 %2862
      %2864 = vrot.lane.b32.xlu0 %v2367, 12
      %v2865 = vpop.permute.xlu0 %2864
      %2866 = vrot.lane.b32.xlu0 %v2368, 12
      %v2867 = vpop.permute.xlu0 %2866
      %2868 = vrot.lane.b32.xlu0 %v2369, 12
      %v2869 = vpop.permute.xlu0 %2868
      %2870 = vrot.lane.b32.xlu0 %v2370, 12
      %v2871 = vpop.permute.xlu0 %2870
      %2872 = vrot.lane.b32.xlu0 %v2371, 12
      %v2873 = vpop.permute.xlu0 %2872
      %2874 = vrot.lane.b32.xlu0 %v2372, 12
      %v2875 = vpop.permute.xlu0 %2874
      %2876 = vrot.lane.b32.xlu0 %v2373, 12
      %v2877 = vpop.permute.xlu0 %2876
      %2878 = vrot.lane.b32.xlu0 %v2374, 12
      %v2879 = vpop.permute.xlu0 %2878
      %2880 = vrot.lane.b32.xlu0 %v2375, 12
      %v2881 = vpop.permute.xlu0 %2880
      %2882 = vrot.lane.b32.xlu0 %v2376, 12
      %v2883 = vpop.permute.xlu0 %2882
      %2884 = vrot.lane.b32.xlu0 %v2377, 12
      %v2885 = vpop.permute.xlu0 %2884
      %2886 = vrot.lane.b32.xlu0 %v2378, 12
      %v2887 = vpop.permute.xlu0 %2886
      %2888 = vrot.lane.b32.xlu0 %v2379, 12
      %v2889 = vpop.permute.xlu0 %2888
      %2890 = vrot.lane.b32.xlu0 %v2380, 12
      %v2891 = vpop.permute.xlu0 %2890
      %2892 = vrot.lane.b32.xlu0 %v2381, 12
      %v2893 = vpop.permute.xlu0 %2892
      %2894 = vrot.lane.b32.xlu0 %v2382, 12
      %v2895 = vpop.permute.xlu0 %2894
      %2960 = vrot.lane.b32.xlu0 %v2383, 16
      %v2961 = vpop.permute.xlu0 %2960
      %2962 = vrot.lane.b32.xlu0 %v2384, 16
      %v2963 = vpop.permute.xlu0 %2962
      %2964 = vrot.lane.b32.xlu0 %v2385, 16
      %v2965 = vpop.permute.xlu0 %2964
      %2966 = vrot.lane.b32.xlu0 %v2386, 16
      %v2967 = vpop.permute.xlu0 %2966
      %2968 = vrot.lane.b32.xlu0 %v2387, 16
      %v2969 = vpop.permute.xlu0 %2968
      %2970 = vrot.lane.b32.xlu0 %v2388, 16
      %v2971 = vpop.permute.xlu0 %2970
      %2972 = vrot.lane.b32.xlu0 %v2389, 16
      %v2973 = vpop.permute.xlu0 %2972
      %2974 = vrot.lane.b32.xlu0 %v2390, 16
      %v2975 = vpop.permute.xlu0 %2974
      %2976 = vrot.lane.b32.xlu0 %v2391, 16
      %v2977 = vpop.permute.xlu0 %2976
      %2978 = vrot.lane.b32.xlu0 %v2392, 16
      %v2979 = vpop.permute.xlu0 %2978
      %2980 = vrot.lane.b32.xlu0 %v2393, 16
      %v2981 = vpop.permute.xlu0 %2980
      %2982 = vrot.lane.b32.xlu0 %v2394, 16
      %v2983 = vpop.permute.xlu0 %2982
      %2984 = vrot.lane.b32.xlu0 %v2395, 16
      %v2985 = vpop.permute.xlu0 %2984
      %2986 = vrot.lane.b32.xlu0 %v2396, 16
      %v2987 = vpop.permute.xlu0 %2986
      %2988 = vrot.lane.b32.xlu0 %v2397, 16
      %v2989 = vpop.permute.xlu0 %2988
      %2990 = vrot.lane.b32.xlu0 %v2398, 16
      %v2991 = vpop.permute.xlu0 %2990
      %2992 = vrot.lane.b32.xlu0 %v2399, 16
      %v2993 = vpop.permute.xlu0 %2992
      %2994 = vrot.lane.b32.xlu0 %v2400, 16
      %v2995 = vpop.permute.xlu0 %2994
      %2996 = vrot.lane.b32.xlu0 %v2401, 16
      %v2997 = vpop.permute.xlu0 %2996
      %2998 = vrot.lane.b32.xlu0 %v2402, 16
      %v2999 = vpop.permute.xlu0 %2998
      %3000 = vrot.lane.b32.xlu0 %v2403, 16
      %v3001 = vpop.permute.xlu0 %3000
      %3002 = vrot.lane.b32.xlu0 %v2404, 16
      %v3003 = vpop.permute.xlu0 %3002
      %3004 = vrot.lane.b32.xlu0 %v2405, 16
      %v3005 = vpop.permute.xlu0 %3004
      %3006 = vrot.lane.b32.xlu0 %v2406, 16
      %v3007 = vpop.permute.xlu0 %3006
      %3008 = vrot.lane.b32.xlu0 %v2407, 16
      %v3009 = vpop.permute.xlu0 %3008
      %3010 = vrot.lane.b32.xlu0 %v2408, 16
      %v3011 = vpop.permute.xlu0 %3010
      %3012 = vrot.lane.b32.xlu0 %v2409, 16
      %v3013 = vpop.permute.xlu0 %3012
      %3014 = vrot.lane.b32.xlu0 %v2410, 16
      %v3015 = vpop.permute.xlu0 %3014
      %3016 = vrot.lane.b32.xlu0 %v2411, 16
      %v3017 = vpop.permute.xlu0 %3016
      %3018 = vrot.lane.b32.xlu0 %v2412, 16
      %v3019 = vpop.permute.xlu0 %3018
      %3020 = vrot.lane.b32.xlu0 %v2413, 16
      %v3021 = vpop.permute.xlu0 %3020
      %3022 = vrot.lane.b32.xlu0 %v2414, 16
      %v3023 = vpop.permute.xlu0 %3022
      %3088 = vrot.lane.b32.xlu0 %v2415, 20
      %v3089 = vpop.permute.xlu0 %3088
      %3090 = vrot.lane.b32.xlu0 %v2416, 20
      %v3091 = vpop.permute.xlu0 %3090
      %3092 = vrot.lane.b32.xlu0 %v2417, 20
      %v3093 = vpop.permute.xlu0 %3092
      %3094 = vrot.lane.b32.xlu0 %v2418, 20
      %v3095 = vpop.permute.xlu0 %3094
      %3096 = vrot.lane.b32.xlu0 %v2419, 20
      %v3097 = vpop.permute.xlu0 %3096
      %3098 = vrot.lane.b32.xlu0 %v2420, 20
      %v3099 = vpop.permute.xlu0 %3098
      %3100 = vrot.lane.b32.xlu0 %v2421, 20
      %v3101 = vpop.permute.xlu0 %3100
      %3102 = vrot.lane.b32.xlu0 %v2422, 20
      %v3103 = vpop.permute.xlu0 %3102
      %3104 = vrot.lane.b32.xlu0 %v2423, 20
      %v3105 = vpop.permute.xlu0 %3104
      %3106 = vrot.lane.b32.xlu0 %v2424, 20
      %v3107 = vpop.permute.xlu0 %3106
      %3108 = vrot.lane.b32.xlu0 %v2425, 20
      %v3109 = vpop.permute.xlu0 %3108
      %3110 = vrot.lane.b32.xlu0 %v2426, 20
      %v3111 = vpop.permute.xlu0 %3110
      %3112 = vrot.lane.b32.xlu0 %v2427, 20
      %v3113 = vpop.permute.xlu0 %3112
      %3114 = vrot.lane.b32.xlu0 %v2428, 20
      %v3115 = vpop.permute.xlu0 %3114
      %3116 = vrot.lane.b32.xlu0 %v2429, 20
      %v3117 = vpop.permute.xlu0 %3116
      %3118 = vrot.lane.b32.xlu0 %v2430, 20
      %v3119 = vpop.permute.xlu0 %3118
      %3120 = vrot.lane.b32.xlu0 %v2431, 20
      %v3121 = vpop.permute.xlu0 %3120
      %3122 = vrot.lane.b32.xlu0 %v2432, 20
      %v3123 = vpop.permute.xlu0 %3122
      %3124 = vrot.lane.b32.xlu0 %v2433, 20
      %v3125 = vpop.permute.xlu0 %3124
      %3126 = vrot.lane.b32.xlu0 %v2434, 20
      %v3127 = vpop.permute.xlu0 %3126
      %3128 = vrot.lane.b32.xlu0 %v2435, 20
      %v3129 = vpop.permute.xlu0 %3128
      %3130 = vrot.lane.b32.xlu0 %v2436, 20
      %v3131 = vpop.permute.xlu0 %3130
      %3132 = vrot.lane.b32.xlu0 %v2437, 20
      %v3133 = vpop.permute.xlu0 %3132
      %3134 = vrot.lane.b32.xlu0 %v2438, 20
      %v3135 = vpop.permute.xlu0 %3134
      %3136 = vrot.lane.b32.xlu0 %v2439, 20
      %v3137 = vpop.permute.xlu0 %3136
      %3138 = vrot.lane.b32.xlu0 %v2440, 20
      %v3139 = vpop.permute.xlu0 %3138
      %3140 = vrot.lane.b32.xlu0 %v2441, 20
      %v3141 = vpop.permute.xlu0 %3140
      %3142 = vrot.lane.b32.xlu0 %v2442, 20
      %v3143 = vpop.permute.xlu0 %3142
      %3144 = vrot.lane.b32.xlu0 %v2443, 20
      %v3145 = vpop.permute.xlu0 %3144
      %3146 = vrot.lane.b32.xlu0 %v2444, 20
      %v3147 = vpop.permute.xlu0 %3146
      %3148 = vrot.lane.b32.xlu0 %v2445, 20
      %v3149 = vpop.permute.xlu0 %3148
      %3150 = vrot.lane.b32.xlu0 %v2446, 20
      %v3151 = vpop.permute.xlu0 %3150
      %3216 = vrot.lane.b32.xlu0 %v2448, 24
      %v3217 = vpop.permute.xlu0 %3216
      %3218 = vrot.lane.b32.xlu0 %v2449, 24
      %v3219 = vpop.permute.xlu0 %3218
      %3220 = vrot.lane.b32.xlu0 %v2450, 24
      %v3221 = vpop.permute.xlu0 %3220
      %3222 = vrot.lane.b32.xlu0 %v2451, 24
      %v3223 = vpop.permute.xlu0 %3222
      %3224 = vrot.lane.b32.xlu0 %v2452, 24
      %v3225 = vpop.permute.xlu0 %3224
      %3226 = vrot.lane.b32.xlu0 %v2453, 24
      %v3227 = vpop.permute.xlu0 %3226
      %3228 = vrot.lane.b32.xlu0 %v2454, 24
      %v3229 = vpop.permute.xlu0 %3228
      %3230 = vrot.lane.b32.xlu0 %v2455, 24
      %v3231 = vpop.permute.xlu0 %3230
      %3232 = vrot.lane.b32.xlu0 %v2456, 24
      %v3233 = vpop.permute.xlu0 %3232
      %3234 = vrot.lane.b32.xlu0 %v2457, 24
      %v3235 = vpop.permute.xlu0 %3234
      %3236 = vrot.lane.b32.xlu0 %v2458, 24
      %v3237 = vpop.permute.xlu0 %3236
      %3238 = vrot.lane.b32.xlu0 %v2459, 24
      %v3239 = vpop.permute.xlu0 %3238
      %3240 = vrot.lane.b32.xlu0 %v2460, 24
      %v3241 = vpop.permute.xlu0 %3240
      %3242 = vrot.lane.b32.xlu0 %v2461, 24
      %v3243 = vpop.permute.xlu0 %3242
      %3244 = vrot.lane.b32.xlu0 %v2462, 24
      %v3245 = vpop.permute.xlu0 %3244
      %3246 = vrot.lane.b32.xlu0 %v2463, 24
      %v3247 = vpop.permute.xlu0 %3246
      %3248 = vrot.lane.b32.xlu0 %v2464, 24
      %v3249 = vpop.permute.xlu0 %3248
      %3250 = vrot.lane.b32.xlu0 %v2465, 24
      %v3251 = vpop.permute.xlu0 %3250
      %3252 = vrot.lane.b32.xlu0 %v2466, 24
      %v3253 = vpop.permute.xlu0 %3252
      %3254 = vrot.lane.b32.xlu0 %v2467, 24
      %v3255 = vpop.permute.xlu0 %3254
      %3256 = vrot.lane.b32.xlu0 %v2468, 24
      %v3257 = vpop.permute.xlu0 %3256
      %3258 = vrot.lane.b32.xlu0 %v2469, 24
      %v3259 = vpop.permute.xlu0 %3258
      %3260 = vrot.lane.b32.xlu0 %v2470, 24
      %v3261 = vpop.permute.xlu0 %3260
      %3262 = vrot.lane.b32.xlu0 %v2471, 24
      %v3263 = vpop.permute.xlu0 %3262
      %3264 = vrot.lane.b32.xlu0 %v2472, 24
      %v3265 = vpop.permute.xlu0 %3264
      %3266 = vrot.lane.b32.xlu0 %v2473, 24
      %v3267 = vpop.permute.xlu0 %3266
      %3268 = vrot.lane.b32.xlu0 %v2474, 24
      %v3269 = vpop.permute.xlu0 %3268
      %3270 = vrot.lane.b32.xlu0 %v2475, 24
      %v3271 = vpop.permute.xlu0 %3270
      %3272 = vrot.lane.b32.xlu0 %v2476, 24
      %v3273 = vpop.permute.xlu0 %3272
      %3274 = vrot.lane.b32.xlu0 %v2477, 24
      %v3275 = vpop.permute.xlu0 %3274
      %3276 = vrot.lane.b32.xlu0 %v2478, 24
      %v3277 = vpop.permute.xlu0 %3276
      %3278 = vrot.lane.b32.xlu0 %v2479, 24
      %v3279 = vpop.permute.xlu0 %3278
      %3344 = vrot.lane.b32.xlu0 %v2480, 28
      %v3345 = vpop.permute.xlu0 %3344
      %3346 = vrot.lane.b32.xlu0 %v2481, 28
      %v3347 = vpop.permute.xlu0 %3346
      %3348 = vrot.lane.b32.xlu0 %v2482, 28
      %v3349 = vpop.permute.xlu0 %3348
      %3350 = vrot.lane.b32.xlu0 %v2483, 28
      %v3351 = vpop.permute.xlu0 %3350
      %3352 = vrot.lane.b32.xlu0 %v2484, 28
      %v3353 = vpop.permute.xlu0 %3352
      %3354 = vrot.lane.b32.xlu0 %v2485, 28
      %v3355 = vpop.permute.xlu0 %3354
      %3356 = vrot.lane.b32.xlu0 %v2486, 28
      %v3357 = vpop.permute.xlu0 %3356
      %3358 = vrot.lane.b32.xlu0 %v2487, 28
      %v3359 = vpop.permute.xlu0 %3358
      %3360 = vrot.lane.b32.xlu0 %v2488, 28
      %v3361 = vpop.permute.xlu0 %3360
      %3362 = vrot.lane.b32.xlu0 %v2489, 28
      %v3363 = vpop.permute.xlu0 %3362
      %3364 = vrot.lane.b32.xlu0 %v2490, 28
      %v3365 = vpop.permute.xlu0 %3364
      %3366 = vrot.lane.b32.xlu0 %v2491, 28
      %v3367 = vpop.permute.xlu0 %3366
      %3368 = vrot.lane.b32.xlu0 %v2492, 28
      %v3369 = vpop.permute.xlu0 %3368
      %3370 = vrot.lane.b32.xlu0 %v2493, 28
      %v3371 = vpop.permute.xlu0 %3370
      %3372 = vrot.lane.b32.xlu0 %v2494, 28
      %v3373 = vpop.permute.xlu0 %3372
      %3374 = vrot.lane.b32.xlu0 %v2495, 28
      %v3375 = vpop.permute.xlu0 %3374
      %3376 = vrot.lane.b32.xlu0 %v2496, 28
      %v3377 = vpop.permute.xlu0 %3376
      %3378 = vrot.lane.b32.xlu0 %v2497, 28
      %v3379 = vpop.permute.xlu0 %3378
      %3380 = vrot.lane.b32.xlu0 %v2498, 28
      %v3381 = vpop.permute.xlu0 %3380
      %3382 = vrot.lane.b32.xlu0 %v2499, 28
      %v3383 = vpop.permute.xlu0 %3382
      %3384 = vrot.lane.b32.xlu0 %v2500, 28
      %v3385 = vpop.permute.xlu0 %3384
      %3386 = vrot.lane.b32.xlu0 %v2501, 28
      %v3387 = vpop.permute.xlu0 %3386
      %3388 = vrot.lane.b32.xlu0 %v2502, 28
      %v3389 = vpop.permute.xlu0 %3388
      %3390 = vrot.lane.b32.xlu0 %v2503, 28
      %v3391 = vpop.permute.xlu0 %3390
      %3392 = vrot.lane.b32.xlu0 %v2504, 28
      %v3393 = vpop.permute.xlu0 %3392
      %3394 = vrot.lane.b32.xlu0 %v2505, 28
      %v3395 = vpop.permute.xlu0 %3394
      %3396 = vrot.lane.b32.xlu0 %v2506, 28
      %v3397 = vpop.permute.xlu0 %3396
      %3398 = vrot.lane.b32.xlu0 %v2507, 28
      %v3399 = vpop.permute.xlu0 %3398
      %3400 = vrot.lane.b32.xlu0 %v2508, 28
      %v3401 = vpop.permute.xlu0 %3400
      %3402 = vrot.lane.b32.xlu0 %v2509, 28
      %v3403 = vpop.permute.xlu0 %3402
      %3404 = vrot.lane.b32.xlu0 %v2510, 28
      %v3405 = vpop.permute.xlu0 %3404
      %3406 = vrot.lane.b32.xlu0 %v2511, 28
      %v3407 = vpop.permute.xlu0 %3406
      %3472 = vrot.lane.b32.xlu0 %v2512, 32
      %v3473 = vpop.permute.xlu0 %3472
      %3474 = vrot.lane.b32.xlu0 %v2513, 32
      %v3475 = vpop.permute.xlu0 %3474
      %3476 = vrot.lane.b32.xlu0 %v2514, 32
      %v3477 = vpop.permute.xlu0 %3476
      %3478 = vrot.lane.b32.xlu0 %v2515, 32
      %v3479 = vpop.permute.xlu0 %3478
      %3480 = vrot.lane.b32.xlu0 %v2516, 32
      %v3481 = vpop.permute.xlu0 %3480
      %3482 = vrot.lane.b32.xlu0 %v2517, 32
      %v3483 = vpop.permute.xlu0 %3482
      %3484 = vrot.lane.b32.xlu0 %v2518, 32
      %v3485 = vpop.permute.xlu0 %3484
      %3486 = vrot.lane.b32.xlu0 %v2519, 32
      %v3487 = vpop.permute.xlu0 %3486
      %3488 = vrot.lane.b32.xlu0 %v2520, 32
      %v3489 = vpop.permute.xlu0 %3488
      %3490 = vrot.lane.b32.xlu0 %v2521, 32
      %v3491 = vpop.permute.xlu0 %3490
      %3492 = vrot.lane.b32.xlu0 %v2522, 32
      %v3493 = vpop.permute.xlu0 %3492
      %3494 = vrot.lane.b32.xlu0 %v2523, 32
      %v3495 = vpop.permute.xlu0 %3494
      %3496 = vrot.lane.b32.xlu0 %v2524, 32
      %v3497 = vpop.permute.xlu0 %3496
      %3498 = vrot.lane.b32.xlu0 %v2525, 32
      %v3499 = vpop.permute.xlu0 %3498
      %3500 = vrot.lane.b32.xlu0 %v2526, 32
      %v3501 = vpop.permute.xlu0 %3500
      %3502 = vrot.lane.b32.xlu0 %v2527, 32
      %v3503 = vpop.permute.xlu0 %3502
      %3504 = vrot.lane.b32.xlu0 %v2528, 32
      %v3505 = vpop.permute.xlu0 %3504
      %3506 = vrot.lane.b32.xlu0 %v2529, 32
      %v3507 = vpop.permute.xlu0 %3506
      %3508 = vrot.lane.b32.xlu0 %v2530, 32
      %v3509 = vpop.permute.xlu0 %3508
      %3510 = vrot.lane.b32.xlu0 %v2531, 32
      %v3511 = vpop.permute.xlu0 %3510
      %3512 = vrot.lane.b32.xlu0 %v2532, 32
      %v3513 = vpop.permute.xlu0 %3512
      %3514 = vrot.lane.b32.xlu0 %v2533, 32
      %v3515 = vpop.permute.xlu0 %3514
      %3516 = vrot.lane.b32.xlu0 %v2534, 32
      %v3517 = vpop.permute.xlu0 %3516
      %3518 = vrot.lane.b32.xlu0 %v2535, 32
      %v3519 = vpop.permute.xlu0 %3518
      %3520 = vrot.lane.b32.xlu0 %v2536, 32
      %v3521 = vpop.permute.xlu0 %3520
      %3522 = vrot.lane.b32.xlu0 %v2537, 32
      %v3523 = vpop.permute.xlu0 %3522
      %3524 = vrot.lane.b32.xlu0 %v2538, 32
      %v3525 = vpop.permute.xlu0 %3524
      %3526 = vrot.lane.b32.xlu0 %v2539, 32
      %v3527 = vpop.permute.xlu0 %3526
      %3528 = vrot.lane.b32.xlu0 %v2540, 32
      %v3529 = vpop.permute.xlu0 %3528
      %3530 = vrot.lane.b32.xlu0 %v2541, 32
      %v3531 = vpop.permute.xlu0 %3530
      %3532 = vrot.lane.b32.xlu0 %v2542, 32
      %v3533 = vpop.permute.xlu0 %3532
      %3534 = vrot.lane.b32.xlu0 %v2543, 32
      %v3535 = vpop.permute.xlu0 %3534
      %v3568 = vsel %vm300, %v2255, %v2577
      %v3569 = vsel %vm300, %v2256, %v2579
      %v3570 = vsel %vm300, %v2257, %v2581
      %v3571 = vsel %vm300, %v2258, %v2583
      %v3572 = vsel %vm300, %v2259, %v2585
      %v3573 = vsel %vm300, %v2260, %v2587
      %v3574 = vsel %vm300, %v2261, %v2589
      %v3575 = vsel %vm300, %v2262, %v2591
      %v3576 = vsel %vm300, %v2263, %v2593
      %v3577 = vsel %vm300, %v2264, %v2595
      %v3578 = vsel %vm300, %v2265, %v2597
      %v3579 = vsel %vm300, %v2266, %v2599
      %v3580 = vsel %vm300, %v2267, %v2601
      %v3581 = vsel %vm300, %v2268, %v2603
      %v3582 = vsel %vm300, %v2269, %v2605
      %v3583 = vsel %vm300, %v2270, %v2607
      %v3584 = vsel %vm300, %v2271, %v2609
      %v3585 = vsel %vm300, %v2272, %v2611
      %v3586 = vsel %vm300, %v2273, %v2613
      %v3587 = vsel %vm300, %v2274, %v2615
      %v3588 = vsel %vm300, %v2275, %v2617
      %v3589 = vsel %vm300, %v2276, %v2619
      %v3590 = vsel %vm300, %v2277, %v2621
      %v3591 = vsel %vm300, %v2278, %v2623
      %v3592 = vsel %vm300, %v2279, %v2625
      %v3593 = vsel %vm300, %v2280, %v2627
      %v3594 = vsel %vm300, %v2281, %v2629
      %v3595 = vsel %vm300, %v2282, %v2631
      %v3596 = vsel %vm300, %v2283, %v2633
      %v3597 = vsel %vm300, %v2284, %v2635
      %v3598 = vsel %vm300, %v2285, %v2637
      %v3599 = vsel %vm300, %v2286, %v2639
      %v3600 = vsel %vm2003, %v3568, %v2705
      %v3601 = vsel %vm2003, %v3569, %v2707
      %v3602 = vsel %vm2003, %v3570, %v2709
      %v3603 = vsel %vm2003, %v3571, %v2711
      %v3604 = vsel %vm2003, %v3572, %v2713
      %v3605 = vsel %vm2003, %v3573, %v2715
      %v3606 = vsel %vm2003, %v3574, %v2717
      %v3607 = vsel %vm2003, %v3575, %v2719
      %v3608 = vsel %vm2003, %v3576, %v2721
      %v3609 = vsel %vm2003, %v3577, %v2723
      %v3610 = vsel %vm2003, %v3578, %v2725
      %v3611 = vsel %vm2003, %v3579, %v2727
      %v3612 = vsel %vm2003, %v3580, %v2729
      %v3613 = vsel %vm2003, %v3581, %v2731
      %v3614 = vsel %vm2003, %v3582, %v2733
      %v3615 = vsel %vm2003, %v3583, %v2735
      %v3616 = vsel %vm2003, %v3584, %v2737
      %v3617 = vsel %vm2003, %v3585, %v2739
      %v3618 = vsel %vm2003, %v3586, %v2741
      %v3619 = vsel %vm2003, %v3587, %v2743
      %v3620 = vsel %vm2003, %v3588, %v2745
      %v3621 = vsel %vm2003, %v3589, %v2747
      %v3622 = vsel %vm2003, %v3590, %v2749
      %v3623 = vsel %vm2003, %v3591, %v2751
      %v3624 = vsel %vm2003, %v3592, %v2753
      %v3625 = vsel %vm2003, %v3593, %v2755
      %v3626 = vsel %vm2003, %v3594, %v2757
      %v3627 = vsel %vm2003, %v3595, %v2759
      %v3628 = vsel %vm2003, %v3596, %v2761
      %v3629 = vsel %vm2003, %v3597, %v2763
      %v3630 = vsel %vm2003, %v3598, %v2765
      %v3631 = vsel %vm2003, %v3599, %v2767
      %v3632 = vsel %vm2036, %v3600, %v2833
      %v3633 = vsel %vm2036, %v3601, %v2835
      %v3634 = vsel %vm2036, %v3602, %v2837
      %v3635 = vsel %vm2036, %v3603, %v2839
      %v3636 = vsel %vm2036, %v3604, %v2841
      %v3637 = vsel %vm2036, %v3605, %v2843
      %v3638 = vsel %vm2036, %v3606, %v2845
      %v3639 = vsel %vm2036, %v3607, %v2847
      %v3640 = vsel %vm2036, %v3608, %v2849
      %v3641 = vsel %vm2036, %v3609, %v2851
      %v3642 = vsel %vm2036, %v3610, %v2853
      %v3643 = vsel %vm2036, %v3611, %v2855
      %v3644 = vsel %vm2036, %v3612, %v2857
      %v3645 = vsel %vm2036, %v3613, %v2859
      %v3646 = vsel %vm2036, %v3614, %v2861
      %v3647 = vsel %vm2036, %v3615, %v2863
      %v3648 = vsel %vm2036, %v3616, %v2865
      %v3649 = vsel %vm2036, %v3617, %v2867
      %v3650 = vsel %vm2036, %v3618, %v2869
      %v3651 = vsel %vm2036, %v3619, %v2871
      %v3652 = vsel %vm2036, %v3620, %v2873
      %v3653 = vsel %vm2036, %v3621, %v2875
      %v3654 = vsel %vm2036, %v3622, %v2877
      %v3655 = vsel %vm2036, %v3623, %v2879
      %v3656 = vsel %vm2036, %v3624, %v2881
      %v3657 = vsel %vm2036, %v3625, %v2883
      %v3658 = vsel %vm2036, %v3626, %v2885
      %v3659 = vsel %vm2036, %v3627, %v2887
      %v3660 = vsel %vm2036, %v3628, %v2889
      %v3661 = vsel %vm2036, %v3629, %v2891
      %v3662 = vsel %vm2036, %v3630, %v2893
      %v3663 = vsel %vm2036, %v3631, %v2895
      %v3664 = vsel %vm2069, %v3632, %v2961
      %v3665 = vsel %vm2069, %v3633, %v2963
      %v3666 = vsel %vm2069, %v3634, %v2965
      %v3667 = vsel %vm2069, %v3635, %v2967
      %v3668 = vsel %vm2069, %v3636, %v2969
      %v3669 = vsel %vm2069, %v3637, %v2971
      %v3670 = vsel %vm2069, %v3638, %v2973
      %v3671 = vsel %vm2069, %v3639, %v2975
      %v3672 = vsel %vm2069, %v3640, %v2977
      %v3673 = vsel %vm2069, %v3641, %v2979
      %v3674 = vsel %vm2069, %v3642, %v2981
      %v3675 = vsel %vm2069, %v3643, %v2983
      %v3676 = vsel %vm2069, %v3644, %v2985
      %v3677 = vsel %vm2069, %v3645, %v2987
      %v3678 = vsel %vm2069, %v3646, %v2989
      %v3679 = vsel %vm2069, %v3647, %v2991
      %v3680 = vsel %vm2069, %v3648, %v2993
      %v3681 = vsel %vm2069, %v3649, %v2995
      %v3682 = vsel %vm2069, %v3650, %v2997
      %v3683 = vsel %vm2069, %v3651, %v2999
      %v3684 = vsel %vm2069, %v3652, %v3001
      %v3685 = vsel %vm2069, %v3653, %v3003
      %v3686 = vsel %vm2069, %v3654, %v3005
      %v3687 = vsel %vm2069, %v3655, %v3007
      %v3688 = vsel %vm2069, %v3656, %v3009
      %v3689 = vsel %vm2069, %v3657, %v3011
      %v3690 = vsel %vm2069, %v3658, %v3013
      %v3691 = vsel %vm2069, %v3659, %v3015
      %v3692 = vsel %vm2069, %v3660, %v3017
      %v3693 = vsel %vm2069, %v3661, %v3019
      %v3694 = vsel %vm2069, %v3662, %v3021
      %v3695 = vsel %vm2069, %v3663, %v3023
      %v3696 = vsel %vm2102, %v3664, %v3089
      %v3697 = vsel %vm2102, %v3665, %v3091
      %v3698 = vsel %vm2102, %v3666, %v3093
      %v3699 = vsel %vm2102, %v3667, %v3095
      %v3700 = vsel %vm2102, %v3668, %v3097
      %v3701 = vsel %vm2102, %v3669, %v3099
      %v3702 = vsel %vm2102, %v3670, %v3101
      %v3703 = vsel %vm2102, %v3671, %v3103
      %v3704 = vsel %vm2102, %v3672, %v3105
      %v3705 = vsel %vm2102, %v3673, %v3107
      %v3706 = vsel %vm2102, %v3674, %v3109
      %v3707 = vsel %vm2102, %v3675, %v3111
      %v3708 = vsel %vm2102, %v3676, %v3113
      %v3709 = vsel %vm2102, %v3677, %v3115
      %v3710 = vsel %vm2102, %v3678, %v3117
      %v3711 = vsel %vm2102, %v3679, %v3119
      %v3712 = vsel %vm2102, %v3680, %v3121
      %v3713 = vsel %vm2102, %v3681, %v3123
      %v3714 = vsel %vm2102, %v3682, %v3125
      %v3715 = vsel %vm2102, %v3683, %v3127
      %v3716 = vsel %vm2102, %v3684, %v3129
      %v3717 = vsel %vm2102, %v3685, %v3131
      %v3718 = vsel %vm2102, %v3686, %v3133
      %v3719 = vsel %vm2102, %v3687, %v3135
      %v3720 = vsel %vm2102, %v3688, %v3137
      %v3721 = vsel %vm2102, %v3689, %v3139
      %v3722 = vsel %vm2102, %v3690, %v3141
      %v3723 = vsel %vm2102, %v3691, %v3143
      %v3724 = vsel %vm2102, %v3692, %v3145
      %v3725 = vsel %vm2102, %v3693, %v3147
      %v3726 = vsel %vm2102, %v3694, %v3149
      %v3727 = vsel %vm2102, %v3695, %v3151
      %v3728 = vsel %vm2135, %v3696, %v3217
      %v3729 = vsel %vm2135, %v3697, %v3219
      %v3730 = vsel %vm2135, %v3698, %v3221
      %v3731 = vsel %vm2135, %v3699, %v3223
      %v3732 = vsel %vm2135, %v3700, %v3225
      %v3733 = vsel %vm2135, %v3701, %v3227
      %v3734 = vsel %vm2135, %v3702, %v3229
      %v3735 = vsel %vm2135, %v3703, %v3231
      %v3736 = vsel %vm2135, %v3704, %v3233
      %v3737 = vsel %vm2135, %v3705, %v3235
      %v3738 = vsel %vm2135, %v3706, %v3237
      %v3739 = vsel %vm2135, %v3707, %v3239
      %v3740 = vsel %vm2135, %v3708, %v3241
      %v3741 = vsel %vm2135, %v3709, %v3243
      %v3742 = vsel %vm2135, %v3710, %v3245
      %v3743 = vsel %vm2135, %v3711, %v3247
      %v3744 = vsel %vm2135, %v3712, %v3249
      %v3745 = vsel %vm2135, %v3713, %v3251
      %v3746 = vsel %vm2135, %v3714, %v3253
      %v3747 = vsel %vm2135, %v3715, %v3255
      %v3748 = vsel %vm2135, %v3716, %v3257
      %v3749 = vsel %vm2135, %v3717, %v3259
      %v3750 = vsel %vm2135, %v3718, %v3261
      %v3751 = vsel %vm2135, %v3719, %v3263
      %v3752 = vsel %vm2135, %v3720, %v3265
      %v3753 = vsel %vm2135, %v3721, %v3267
      %v3754 = vsel %vm2135, %v3722, %v3269
      %v3755 = vsel %vm2135, %v3723, %v3271
      %v3756 = vsel %vm2135, %v3724, %v3273
      %v3757 = vsel %vm2135, %v3725, %v3275
      %v3758 = vsel %vm2135, %v3726, %v3277
      %v3759 = vsel %vm2135, %v3727, %v3279
      %v3760 = vsel %vm2168, %v3728, %v3345
      %v3761 = vsel %vm2168, %v3729, %v3347
      %v3762 = vsel %vm2168, %v3730, %v3349
      %v3763 = vsel %vm2168, %v3731, %v3351
      %v3764 = vsel %vm2168, %v3732, %v3353
      %v3765 = vsel %vm2168, %v3733, %v3355
      %v3766 = vsel %vm2168, %v3734, %v3357
      %v3767 = vsel %vm2168, %v3735, %v3359
      %v3768 = vsel %vm2168, %v3736, %v3361
      %v3769 = vsel %vm2168, %v3737, %v3363
      %v3770 = vsel %vm2168, %v3738, %v3365
      %v3771 = vsel %vm2168, %v3739, %v3367
      %v3772 = vsel %vm2168, %v3740, %v3369
      %v3773 = vsel %vm2168, %v3741, %v3371
      %v3774 = vsel %vm2168, %v3742, %v3373
      %v3775 = vsel %vm2168, %v3743, %v3375
      %v3776 = vsel %vm2168, %v3744, %v3377
      %v3777 = vsel %vm2168, %v3745, %v3379
      %v3778 = vsel %vm2168, %v3746, %v3381
      %v3779 = vsel %vm2168, %v3747, %v3383
      %v3780 = vsel %vm2168, %v3748, %v3385
      %v3781 = vsel %vm2168, %v3749, %v3387
      %v3782 = vsel %vm2168, %v3750, %v3389
      %v3783 = vsel %vm2168, %v3751, %v3391
      %v3784 = vsel %vm2168, %v3752, %v3393
      %v3785 = vsel %vm2168, %v3753, %v3395
      %v3786 = vsel %vm2168, %v3754, %v3397
      %v3787 = vsel %vm2168, %v3755, %v3399
      %v3788 = vsel %vm2168, %v3756, %v3401
      %v3789 = vsel %vm2168, %v3757, %v3403
      %v3790 = vsel %vm2168, %v3758, %v3405
      %v3791 = vsel %vm2168, %v3759, %v3407
      %v3792 = vsel %vm2201, %v3760, %v3473
      %v3793 = vsel %vm2201, %v3761, %v3475
      %v3794 = vsel %vm2201, %v3762, %v3477
      %v3795 = vsel %vm2201, %v3763, %v3479
      %v3796 = vsel %vm2201, %v3764, %v3481
      %v3797 = vsel %vm2201, %v3765, %v3483
      %v3798 = vsel %vm2201, %v3766, %v3485
      %v3799 = vsel %vm2201, %v3767, %v3487
      %v3800 = vsel %vm2201, %v3768, %v3489
      %v3801 = vsel %vm2201, %v3769, %v3491
      %v3802 = vsel %vm2201, %v3770, %v3493
      %v3803 = vsel %vm2201, %v3771, %v3495
      %v3804 = vsel %vm2201, %v3772, %v3497
      %v3805 = vsel %vm2201, %v3773, %v3499
      %v3806 = vsel %vm2201, %v3774, %v3501
      %v3807 = vsel %vm2201, %v3775, %v3503
      %v3808 = vsel %vm2201, %v3776, %v3505
      %v3809 = vsel %vm2201, %v3777, %v3507
      %v3810 = vsel %vm2201, %v3778, %v3509
      %v3811 = vsel %vm2201, %v3779, %v3511
      %v3812 = vsel %vm2201, %v3780, %v3513
      %v3813 = vsel %vm2201, %v3781, %v3515
      %v3814 = vsel %vm2201, %v3782, %v3517
      %v3815 = vsel %vm2201, %v3783, %v3519
      %v3816 = vsel %vm2201, %v3784, %v3521
      %v3817 = vsel %vm2201, %v3785, %v3523
      %v3818 = vsel %vm2201, %v3786, %v3525
      %v3819 = vsel %vm2201, %v3787, %v3527
      %v3820 = vsel %vm2201, %v3788, %v3529
      %v3821 = vsel %vm2201, %v3789, %v3531
      %v3822 = vsel %vm2201, %v3790, %v3533
      %v3823 = vsel %vm2201, %v3791, %v3535
      %v3824 = vpack.c.bf16 %v3793, %v3792
      %v3825 = vpack.c.bf16 %v3795, %v3794
      %v3826 = vpack.c.bf16 %v3797, %v3796
      %v3827 = vpack.c.bf16 %v3799, %v3798
      %v3828 = vpack.c.bf16 %v3801, %v3800
      %v3829 = vpack.c.bf16 %v3803, %v3802
      %v3830 = vpack.c.bf16 %v3805, %v3804
      %v3831 = vpack.c.bf16 %v3807, %v3806
      %v3832 = vpack.c.bf16 %v3809, %v3808
      %v3833 = vpack.c.bf16 %v3811, %v3810
      %v3834 = vpack.c.bf16 %v3813, %v3812
      %v3835 = vpack.c.bf16 %v3815, %v3814
      %v3836 = vpack.c.bf16 %v3817, %v3816
      %v3837 = vpack.c.bf16 %v3819, %v3818
      %v3838 = vpack.c.bf16 %v3821, %v3820
      %v3839 = vpack.c.bf16 %v3823, %v3822
      %v3840 = vld [vmem:[%s3] sm:$0xf]
      %v3841 = vld [vmem:[%s3 + $0x4] sm:$0xf]
      %v3842 = vld [vmem:[%s3 + $0x8] sm:$0xf]
      %v3843 = vld [vmem:[%s3 + $0xc] sm:$0xf]
      %v3844 = vld [vmem:[%s3 + $0x10] sm:$0x3]
      %v3850 = vunpack.c.l.b16 %v3840
      %v3851 = vunpack.c.l.b16 %v3841
      %v3852 = vunpack.c.l.b16 %v3842
      %v3853 = vunpack.c.l.b16 %v3843
      %v3854 = vunpack.c.l.b16 %v3844
      %v3855 = vpack.c.b16 %v3851, %v3850
      %v3856 = vpack.c.b16 %v3853, %v3852
      %v3857 = vpack.c.b16 %v3854, %v3854
      %vm3860 = vcmask 293888
      %v3862 = vsel %vm3860, %v3824, 0
      %v3865 = vsel %vm3860, %v3825, 0
      %v3868 = vsel %vm3860, %v3826, 0
      %v3871 = vsel %vm3860, %v3827, 0
      %v3874 = vsel %vm3860, %v3828, 0
      %v3877 = vsel %vm3860, %v3829, 0
      %v3880 = vsel %vm3860, %v3830, 0
      %v3883 = vsel %vm3860, %v3831, 0
      %v3886 = vsel %vm3860, %v3832, 0
      %v3889 = vsel %vm3860, %v3833, 0
      %v3892 = vsel %vm3860, %v3834, 0
      %v3895 = vsel %vm3860, %v3835, 0
      %v3898 = vsel %vm3860, %v3836, 0
      %v3901 = vsel %vm3860, %v3837, 0
      %v3904 = vsel %vm3860, %v3838, 0
      %v3907 = vsel %vm3860, %v3839, 0
      %vm3909 = vcmask 1041408
      %v3911 = vsel %vm3909, %v3857, 0
      %3913 = vmatprep.subr.bf16.mxu0 0
      %3914 = vmatpush1.bf16.msra.mxu0 0
      %3915 = vmatprep.subr.bf16.mxu0 0
      %3916 = vmatpush1.bf16.msra.mxu0 0
      %3917 = vmatprep.subr.bf16.mxu0 0
      %3918 = vmatpush1.bf16.msra.mxu0 0
      %3919 = vmatprep.subr.bf16.mxu0 0
      %3920 = vmatpush1.bf16.msra.mxu0 0
      %3921 = vmatprep.subr.bf16.mxu0 0
      %3922 = vmatpush1.bf16.msra.mxu0 0
      %3923 = vmatprep.subr.bf16.mxu0 0
      %3924 = vmatpush1.bf16.msra.mxu0 %v3911
      %3925 = vmatprep.subr.bf16.mxu0 0
      %3926 = vmatpush1.bf16.msra.mxu0 %v3856
      %3927 = vmatprep.subr.bf16.mxu0 0
      %3928 = vmatpush1.bf16.msra.mxu0 %v3855
      %3929 = vmatprep.subr.bf16.mxu0 0
      %3930 = vmatpush2.bf16.msra.mxu0 0
      %3931 = vmatprep.subr.bf16.mxu0 0
      %3932 = vmatpush2.bf16.msra.mxu0 0
      %3933 = vmatprep.subr.bf16.mxu0 0
      %3934 = vmatpush2.bf16.msra.mxu0 0
      %3935 = vmatprep.subr.bf16.mxu0 0
      %3936 = vmatpush2.bf16.msra.mxu0 0
      %3937 = vmatprep.subr.bf16.mxu0 0
      %3938 = vmatpush2.bf16.msra.mxu0 0
      %3939 = vmatprep.subr.bf16.mxu0 0
      %3940 = vmatpush2.bf16.msra.mxu0 0
      %3941 = vmatprep.subr.bf16.mxu0 0
      %3942 = vmatpush2.bf16.msra.mxu0 0
      %3943 = vmatprep.subr.bf16.mxu0 0
      %3944 = vmatpush2.bf16.msra.mxu0 0
      %3945 = vmatprep.mubr.bf16.mxu0 0
      %3946 = vmatmul.mubr.bf16.gmra.mxu0 %v3862
      %v3947 = vpop.f32.mrf.mxu0
      %v3948 = vadd.f32 0.0, %v3947
      %v3949 = vpop.f32.mrf.mxu0
      %v3950 = vpop.f32.mrf.mxu0
      %v3951 = vadd.f32 0.0, %v3950
      %v3952 = vpop.f32.mrf.mxu0
      %3953 = vmatprep.mubr.bf16.mxu0 0
      %3954 = vmatmul.mubr.bf16.gmra.mxu0 %v3865
      %v3955 = vpop.f32.mrf.mxu0
      %v3956 = vadd.f32 0.0, %v3955
      %v3957 = vpop.f32.mrf.mxu0
      %v3958 = vpop.f32.mrf.mxu0
      %v3959 = vadd.f32 0.0, %v3958
      %v3960 = vpop.f32.mrf.mxu0
      %3961 = vmatprep.mubr.bf16.mxu0 0
      %3962 = vmatmul.mubr.bf16.gmra.mxu0 %v3868
      %v3963 = vpop.f32.mrf.mxu0
      %v3964 = vadd.f32 0.0, %v3963
      %v3965 = vpop.f32.mrf.mxu0
      %v3966 = vpop.f32.mrf.mxu0
      %v3967 = vadd.f32 0.0, %v3966
      %v3968 = vpop.f32.mrf.mxu0
      %3969 = vmatprep.mubr.bf16.mxu0 0
      %3970 = vmatmul.mubr.bf16.gmra.mxu0 %v3871
      %v3971 = vpop.f32.mrf.mxu0
      %v3972 = vadd.f32 0.0, %v3971
      %v3973 = vpop.f32.mrf.mxu0
      %v3974 = vpop.f32.mrf.mxu0
      %v3975 = vadd.f32 0.0, %v3974
      %v3976 = vpop.f32.mrf.mxu0
      %3977 = vmatprep.mubr.bf16.mxu0 0
      %3978 = vmatmul.mubr.bf16.gmra.mxu0 %v3874
      %v3979 = vpop.f32.mrf.mxu0
      %v3980 = vadd.f32 0.0, %v3979
      %v3981 = vpop.f32.mrf.mxu0
      %v3982 = vpop.f32.mrf.mxu0
      %v3983 = vadd.f32 0.0, %v3982
      %v3984 = vpop.f32.mrf.mxu0
      %3985 = vmatprep.mubr.bf16.mxu0 0
      %3986 = vmatmul.mubr.bf16.gmra.mxu0 %v3877
      %v3987 = vpop.f32.mrf.mxu0
      %v3988 = vadd.f32 0.0, %v3987
      %v3989 = vpop.f32.mrf.mxu0
      %v3990 = vpop.f32.mrf.mxu0
      %v3991 = vadd.f32 0.0, %v3990
      %v3992 = vpop.f32.mrf.mxu0
      %3993 = vmatprep.mubr.bf16.mxu0 0
      %3994 = vmatmul.mubr.bf16.gmra.mxu0 %v3880
      %v3995 = vpop.f32.mrf.mxu0
      %v3996 = vadd.f32 0.0, %v3995
      %v3997 = vpop.f32.mrf.mxu0
      %v3998 = vpop.f32.mrf.mxu0
      %v3999 = vadd.f32 0.0, %v3998
      %v4000 = vpop.f32.mrf.mxu0
      %4001 = vmatprep.mubr.bf16.mxu0 0
      %4002 = vmatmul.mubr.bf16.gmra.mxu0 %v3883
      %v4003 = vpop.f32.mrf.mxu0
      %v4004 = vadd.f32 0.0, %v4003
      %v4005 = vpop.f32.mrf.mxu0
      %v4006 = vpop.f32.mrf.mxu0
      %v4007 = vadd.f32 0.0, %v4006
      %v4008 = vpop.f32.mrf.mxu0
      %4009 = vmatprep.mubr.bf16.mxu0 0
      %4010 = vmatmul.mubr.bf16.gmra.mxu0 %v3886
      %v4011 = vpop.f32.mrf.mxu0
      %v4012 = vadd.f32 0.0, %v4011
      %v4013 = vpop.f32.mrf.mxu0
      %v4014 = vpop.f32.mrf.mxu0
      %v4015 = vadd.f32 0.0, %v4014
      %v4016 = vpop.f32.mrf.mxu0
      %4017 = vmatprep.mubr.bf16.mxu0 0
      %4018 = vmatmul.mubr.bf16.gmra.mxu0 %v3889
      %v4019 = vpop.f32.mrf.mxu0
      %v4020 = vadd.f32 0.0, %v4019
      %v4021 = vpop.f32.mrf.mxu0
      %v4022 = vpop.f32.mrf.mxu0
      %v4023 = vadd.f32 0.0, %v4022
      %v4024 = vpop.f32.mrf.mxu0
      %4025 = vmatprep.mubr.bf16.mxu0 0
      %4026 = vmatmul.mubr.bf16.gmra.mxu0 %v3892
      %v4027 = vpop.f32.mrf.mxu0
      %v4028 = vadd.f32 0.0, %v4027
      %v4029 = vpop.f32.mrf.mxu0
      %v4030 = vpop.f32.mrf.mxu0
      %v4031 = vadd.f32 0.0, %v4030
      %v4032 = vpop.f32.mrf.mxu0
      %4033 = vmatprep.mubr.bf16.mxu0 0
      %4034 = vmatmul.mubr.bf16.gmra.mxu0 %v3895
      %v4035 = vpop.f32.mrf.mxu0
      %v4036 = vadd.f32 0.0, %v4035
      %v4037 = vpop.f32.mrf.mxu0
      %v4038 = vpop.f32.mrf.mxu0
      %v4039 = vadd.f32 0.0, %v4038
      %v4040 = vpop.f32.mrf.mxu0
      %4041 = vmatprep.mubr.bf16.mxu0 0
      %4042 = vmatmul.mubr.bf16.gmra.mxu0 %v3898
      %v4043 = vpop.f32.mrf.mxu0
      %v4044 = vadd.f32 0.0, %v4043
      %v4045 = vpop.f32.mrf.mxu0
      %v4046 = vpop.f32.mrf.mxu0
      %v4047 = vadd.f32 0.0, %v4046
      %v4048 = vpop.f32.mrf.mxu0
      %4049 = vmatprep.mubr.bf16.mxu0 0
      %4050 = vmatmul.mubr.bf16.gmra.mxu0 %v3901
      %v4051 = vpop.f32.mrf.mxu0
      %v4052 = vadd.f32 0.0, %v4051
      %v4053 = vpop.f32.mrf.mxu0
      %v4054 = vpop.f32.mrf.mxu0
      %v4055 = vadd.f32 0.0, %v4054
      %v4056 = vpop.f32.mrf.mxu0
      %4057 = vmatprep.mubr.bf16.mxu0 0
      %4058 = vmatmul.mubr.bf16.gmra.mxu0 %v3904
      %v4059 = vpop.f32.mrf.mxu0
      %v4060 = vadd.f32 0.0, %v4059
      %v4061 = vpop.f32.mrf.mxu0
      %v4062 = vpop.f32.mrf.mxu0
      %v4063 = vadd.f32 0.0, %v4062
      %v4064 = vpop.f32.mrf.mxu0
      %4065 = vmatprep.mubr.bf16.mxu0 0
      %4066 = vmatmul.mubr.bf16.gmra.mxu0 %v3907
      %v4067 = vpop.f32.mrf.mxu0
      %v4068 = vadd.f32 0.0, %v4067
      %v4069 = vpop.f32.mrf.mxu0
      %v4070 = vpop.f32.mrf.mxu0
      %v4071 = vadd.f32 0.0, %v4070
      %v4072 = vpop.f32.mrf.mxu0
      %4073 = vdwg.mxu0
      %v4079 = vunpack.c.l.b16 %v2250
      %v4080 = vunpack.c.l.b16 %v2251
      %v4081 = vunpack.c.l.b16 %v2252
      %v4082 = vunpack.c.l.b16 %v2253
      %v4083 = vunpack.c.l.b16 %v2254
      %v4084 = vpack.c.b16 %v4080, %v4079
      %v4085 = vpack.c.b16 %v4082, %v4081
      %v4086 = vpack.c.b16 %v4083, %v4083
      %v4090 = vsel %vm3860, %v2234, 0
      %v4093 = vsel %vm3860, %v2235, 0
      %v4096 = vsel %vm3860, %v2236, 0
      %v4099 = vsel %vm3860, %v2237, 0
      %v4102 = vsel %vm3860, %v2238, 0
      %v4105 = vsel %vm3860, %v2239, 0
      %v4108 = vsel %vm3860, %v2240, 0
      %v4111 = vsel %vm3860, %v2241, 0
      %v4114 = vsel %vm3860, %v2242, 0
      %v4117 = vsel %vm3860, %v2243, 0
      %v4120 = vsel %vm3860, %v2244, 0
      %v4123 = vsel %vm3860, %v2245, 0
      %v4126 = vsel %vm3860, %v2246, 0
      %v4129 = vsel %vm3860, %v2247, 0
      %v4132 = vsel %vm3860, %v2248, 0
      %v4135 = vsel %vm3860, %v2249, 0
      %v4138 = vsel %vm3909, %v4086, 0
      %4140 = vmatprep.subr.bf16.mxu0 0
      %4141 = vmatpush1.bf16.msra.mxu0 0
      %4142 = vmatprep.subr.bf16.mxu0 0
      %4143 = vmatpush1.bf16.msra.mxu0 0
      %4144 = vmatprep.subr.bf16.mxu0 0
      %4145 = vmatpush1.bf16.msra.mxu0 0
      %4146 = vmatprep.subr.bf16.mxu0 0
      %4147 = vmatpush1.bf16.msra.mxu0 0
      %4148 = vmatprep.subr.bf16.mxu0 0
      %4149 = vmatpush1.bf16.msra.mxu0 0
      %4150 = vmatprep.subr.bf16.mxu0 0
      %4151 = vmatpush1.bf16.msra.mxu0 %v4138
      %4152 = vmatprep.subr.bf16.mxu0 0
      %4153 = vmatpush1.bf16.msra.mxu0 %v4085
      %4154 = vmatprep.subr.bf16.mxu0 0
      %4155 = vmatpush1.bf16.msra.mxu0 %v4084
      %4156 = vmatprep.subr.bf16.mxu0 0
      %4157 = vmatpush2.bf16.msra.mxu0 0
      %4158 = vmatprep.subr.bf16.mxu0 0
      %4159 = vmatpush2.bf16.msra.mxu0 0
      %4160 = vmatprep.subr.bf16.mxu0 0
      %4161 = vmatpush2.bf16.msra.mxu0 0
      %4162 = vmatprep.subr.bf16.mxu0 0
      %4163 = vmatpush2.bf16.msra.mxu0 0
      %4164 = vmatprep.subr.bf16.mxu0 0
      %4165 = vmatpush2.bf16.msra.mxu0 0
      %4166 = vmatprep.subr.bf16.mxu0 0
      %4167 = vmatpush2.bf16.msra.mxu0 0
      %4168 = vmatprep.subr.bf16.mxu0 0
      %4169 = vmatpush2.bf16.msra.mxu0 0
      %4170 = vmatprep.subr.bf16.mxu0 0
      %4171 = vmatpush2.bf16.msra.mxu0 0
      %4172 = vmatprep.mubr.bf16.mxu0 0
      %4173 = vmatmul.mubr.bf16.gmra.mxu0 %v4090
      %v4174 = vpop.f32.mrf.mxu0
      %v4175 = vadd.f32 %v3948, %v4174
      %v4176 = vpop.f32.mrf.mxu0
      %v4177 = vpop.f32.mrf.mxu0
      %v4178 = vadd.f32 %v3951, %v4177
      %v4179 = vpop.f32.mrf.mxu0
      %4180 = vmatprep.mubr.bf16.mxu0 0
      %4181 = vmatmul.mubr.bf16.gmra.mxu0 %v4093
      %v4182 = vpop.f32.mrf.mxu0
      %v4183 = vadd.f32 %v3956, %v4182
      %v4184 = vpop.f32.mrf.mxu0
      %v4185 = vpop.f32.mrf.mxu0
      %v4186 = vadd.f32 %v3959, %v4185
      %v4187 = vpop.f32.mrf.mxu0
      %4188 = vmatprep.mubr.bf16.mxu0 0
      %4189 = vmatmul.mubr.bf16.gmra.mxu0 %v4096
      %v4190 = vpop.f32.mrf.mxu0
      %v4191 = vadd.f32 %v3964, %v4190
      %v4192 = vpop.f32.mrf.mxu0
      %v4193 = vpop.f32.mrf.mxu0
      %v4194 = vadd.f32 %v3967, %v4193
      %v4195 = vpop.f32.mrf.mxu0
      %4196 = vmatprep.mubr.bf16.mxu0 0
      %4197 = vmatmul.mubr.bf16.gmra.mxu0 %v4099
      %v4198 = vpop.f32.mrf.mxu0
      %v4199 = vadd.f32 %v3972, %v4198
      %v4200 = vpop.f32.mrf.mxu0
      %v4201 = vpop.f32.mrf.mxu0
      %v4202 = vadd.f32 %v3975, %v4201
      %v4203 = vpop.f32.mrf.mxu0
      %4204 = vmatprep.mubr.bf16.mxu0 0
      %4205 = vmatmul.mubr.bf16.gmra.mxu0 %v4102
      %v4206 = vpop.f32.mrf.mxu0
      %v4207 = vadd.f32 %v3980, %v4206
      %v4208 = vpop.f32.mrf.mxu0
      %v4209 = vpop.f32.mrf.mxu0
      %v4210 = vadd.f32 %v3983, %v4209
      %v4211 = vpop.f32.mrf.mxu0
      %4212 = vmatprep.mubr.bf16.mxu0 0
      %4213 = vmatmul.mubr.bf16.gmra.mxu0 %v4105
      %v4214 = vpop.f32.mrf.mxu0
      %v4215 = vadd.f32 %v3988, %v4214
      %v4216 = vpop.f32.mrf.mxu0
      %v4217 = vpop.f32.mrf.mxu0
      %v4218 = vadd.f32 %v3991, %v4217
      %v4219 = vpop.f32.mrf.mxu0
      %4220 = vmatprep.mubr.bf16.mxu0 0
      %4221 = vmatmul.mubr.bf16.gmra.mxu0 %v4108
      %v4222 = vpop.f32.mrf.mxu0
      %v4223 = vadd.f32 %v3996, %v4222
      %v4224 = vpop.f32.mrf.mxu0
      %v4225 = vpop.f32.mrf.mxu0
      %v4226 = vadd.f32 %v3999, %v4225
      %v4227 = vpop.f32.mrf.mxu0
      %4228 = vmatprep.mubr.bf16.mxu0 0
      %4229 = vmatmul.mubr.bf16.gmra.mxu0 %v4111
      %v4230 = vpop.f32.mrf.mxu0
      %v4231 = vadd.f32 %v4004, %v4230
      %v4232 = vpop.f32.mrf.mxu0
      %v4233 = vpop.f32.mrf.mxu0
      %v4234 = vadd.f32 %v4007, %v4233
      %v4235 = vpop.f32.mrf.mxu0
      %4236 = vmatprep.mubr.bf16.mxu0 0
      %4237 = vmatmul.mubr.bf16.gmra.mxu0 %v4114
      %v4238 = vpop.f32.mrf.mxu0
      %v4239 = vadd.f32 %v4012, %v4238
      %v4240 = vpop.f32.mrf.mxu0
      %v4241 = vpop.f32.mrf.mxu0
      %v4242 = vadd.f32 %v4015, %v4241
      %v4243 = vpop.f32.mrf.mxu0
      %4244 = vmatprep.mubr.bf16.mxu0 0
      %4245 = vmatmul.mubr.bf16.gmra.mxu0 %v4117
      %v4246 = vpop.f32.mrf.mxu0
      %v4247 = vadd.f32 %v4020, %v4246
      %v4248 = vpop.f32.mrf.mxu0
      %v4249 = vpop.f32.mrf.mxu0
      %v4250 = vadd.f32 %v4023, %v4249
      %v4251 = vpop.f32.mrf.mxu0
      %4252 = vmatprep.mubr.bf16.mxu0 0
      %4253 = vmatmul.mubr.bf16.gmra.mxu0 %v4120
      %v4254 = vpop.f32.mrf.mxu0
      %v4255 = vadd.f32 %v4028, %v4254
      %v4256 = vpop.f32.mrf.mxu0
      %v4257 = vpop.f32.mrf.mxu0
      %v4258 = vadd.f32 %v4031, %v4257
      %v4259 = vpop.f32.mrf.mxu0
      %4260 = vmatprep.mubr.bf16.mxu0 0
      %4261 = vmatmul.mubr.bf16.gmra.mxu0 %v4123
      %v4262 = vpop.f32.mrf.mxu0
      %v4263 = vadd.f32 %v4036, %v4262
      %v4264 = vpop.f32.mrf.mxu0
      %v4265 = vpop.f32.mrf.mxu0
      %v4266 = vadd.f32 %v4039, %v4265
      %v4267 = vpop.f32.mrf.mxu0
      %4268 = vmatprep.mubr.bf16.mxu0 0
      %4269 = vmatmul.mubr.bf16.gmra.mxu0 %v4126
      %v4270 = vpop.f32.mrf.mxu0
      %v4271 = vadd.f32 %v4044, %v4270
      %v4272 = vpop.f32.mrf.mxu0
      %v4273 = vpop.f32.mrf.mxu0
      %v4274 = vadd.f32 %v4047, %v4273
      %v4275 = vpop.f32.mrf.mxu0
      %4276 = vmatprep.mubr.bf16.mxu0 0
      %4277 = vmatmul.mubr.bf16.gmra.mxu0 %v4129
      %v4278 = vpop.f32.mrf.mxu0
      %v4279 = vadd.f32 %v4052, %v4278
      %v4280 = vpop.f32.mrf.mxu0
      %v4281 = vpop.f32.mrf.mxu0
      %v4282 = vadd.f32 %v4055, %v4281
      %v4283 = vpop.f32.mrf.mxu0
      %4284 = vmatprep.mubr.bf16.mxu0 0
      %4285 = vmatmul.mubr.bf16.gmra.mxu0 %v4132
      %v4286 = vpop.f32.mrf.mxu0
      %v4287 = vadd.f32 %v4060, %v4286
      %v4288 = vpop.f32.mrf.mxu0
      %v4289 = vpop.f32.mrf.mxu0
      %v4290 = vadd.f32 %v4063, %v4289
      %v4291 = vpop.f32.mrf.mxu0
      %4292 = vmatprep.mubr.bf16.mxu0 0
      %4293 = vmatmul.mubr.bf16.gmra.mxu0 %v4135
      %v4294 = vpop.f32.mrf.mxu0
      %v4295 = vadd.f32 %v4068, %v4294
      %v4296 = vpop.f32.mrf.mxu0
      %v4297 = vpop.f32.mrf.mxu0
      %v4298 = vadd.f32 %v4071, %v4297
      %v4299 = vpop.f32.mrf.mxu0
      %4300 = vdwg.mxu0
      %v4301 = vld [vmem:[%s4] sm:$0x1]
      %v4303 = vlaneseq
      %v4304 = vshrl.u32 %v4303, 7
      %v4305 = vsub.s32 0, %v4304
      %v4306 = vrot.slane %v4301, %v4305
      %v4308 = vadd.f32 %v4175, %v4306
      %v4309 = vadd.f32 %v4178, %v4306
      %v4310 = vadd.f32 %v4183, %v4306
      %v4311 = vadd.f32 %v4186, %v4306
      %v4312 = vadd.f32 %v4191, %v4306
      %v4313 = vadd.f32 %v4194, %v4306
      %v4314 = vadd.f32 %v4199, %v4306
      %v4315 = vadd.f32 %v4202, %v4306
      %v4316 = vadd.f32 %v4207, %v4306
      %v4317 = vadd.f32 %v4210, %v4306
      %v4318 = vadd.f32 %v4215, %v4306
      %v4319 = vadd.f32 %v4218, %v4306
      %v4320 = vadd.f32 %v4223, %v4306
      %v4321 = vadd.f32 %v4226, %v4306
      %v4322 = vadd.f32 %v4231, %v4306
      %v4323 = vadd.f32 %v4234, %v4306
      %v4324 = vadd.f32 %v4239, %v4306
      %v4325 = vadd.f32 %v4242, %v4306
      %v4326 = vadd.f32 %v4247, %v4306
      %v4327 = vadd.f32 %v4250, %v4306
      %v4328 = vadd.f32 %v4255, %v4306
      %v4329 = vadd.f32 %v4258, %v4306
      %v4330 = vadd.f32 %v4263, %v4306
      %v4331 = vadd.f32 %v4266, %v4306
      %v4332 = vadd.f32 %v4271, %v4306
      %v4333 = vadd.f32 %v4274, %v4306
      %v4334 = vadd.f32 %v4279, %v4306
      %v4335 = vadd.f32 %v4282, %v4306
      %v4336 = vadd.f32 %v4287, %v4306
      %v4337 = vadd.f32 %v4290, %v4306
      %v4338 = vadd.f32 %v4295, %v4306
      %v4339 = vadd.f32 %v4298, %v4306
      %v4340 = vmax.f32 %v4308, 0.0
      %v4341 = vmax.f32 %v4309, 0.0
      %v4342 = vmax.f32 %v4310, 0.0
      %v4343 = vmax.f32 %v4311, 0.0
      %v4344 = vmax.f32 %v4312, 0.0
      %v4345 = vmax.f32 %v4313, 0.0
      %v4346 = vmax.f32 %v4314, 0.0
      %v4347 = vmax.f32 %v4315, 0.0
      %v4348 = vmax.f32 %v4316, 0.0
      %v4349 = vmax.f32 %v4317, 0.0
      %v4350 = vmax.f32 %v4318, 0.0
      %v4351 = vmax.f32 %v4319, 0.0
      %v4352 = vmax.f32 %v4320, 0.0
      %v4353 = vmax.f32 %v4321, 0.0
      %v4354 = vmax.f32 %v4322, 0.0
      %v4355 = vmax.f32 %v4323, 0.0
      %v4356 = vmax.f32 %v4324, 0.0
      %v4357 = vmax.f32 %v4325, 0.0
      %v4358 = vmax.f32 %v4326, 0.0
      %v4359 = vmax.f32 %v4327, 0.0
      %v4360 = vmax.f32 %v4328, 0.0
      %v4361 = vmax.f32 %v4329, 0.0
      %v4362 = vmax.f32 %v4330, 0.0
      %v4363 = vmax.f32 %v4331, 0.0
      %v4364 = vmax.f32 %v4332, 0.0
      %v4365 = vmax.f32 %v4333, 0.0
      %v4366 = vmax.f32 %v4334, 0.0
      %v4367 = vmax.f32 %v4335, 0.0
      %v4368 = vmax.f32 %v4336, 0.0
      %v4369 = vmax.f32 %v4337, 0.0
      %v4370 = vmax.f32 %v4338, 0.0
      %v4371 = vmax.f32 %v4339, 0.0
      %s4372 = scalar_lea.vmem [#allocation4], 24
      %4373 = vst.msk [vmem:[%s4372 + $0x1] sm:$0xff] %vm300, %v4340
      %4374 = vst.msk [vmem:[%s4372 + $0x9] sm:$0xff] %vm300, %v4341
      %4375 = vst.msk [vmem:[%s4372 + $0x19] sm:$0xff] %vm300, %v4342
      %4376 = vst.msk [vmem:[%s4372 + $0x21] sm:$0xff] %vm300, %v4343
      %4377 = vst.msk [vmem:[%s4372 + $0x31] sm:$0xff] %vm300, %v4344
      %4378 = vst.msk [vmem:[%s4372 + $0x39] sm:$0xff] %vm300, %v4345
      %4379 = vst.msk [vmem:[%s4372 + $0x49] sm:$0xff] %vm300, %v4346
      %4380 = vst.msk [vmem:[%s4372 + $0x51] sm:$0xff] %vm300, %v4347
      %4381 = vst.msk [vmem:[%s4372 + $0x61] sm:$0xff] %vm300, %v4348
      %4382 = vst.msk [vmem:[%s4372 + $0x69] sm:$0xff] %vm300, %v4349
      %4383 = vst.msk [vmem:[%s4372 + $0x79] sm:$0xff] %vm300, %v4350
      %4384 = vst.msk [vmem:[%s4372 + $0x81] sm:$0xff] %vm300, %v4351
      %4385 = vst.msk [vmem:[%s4372 + $0x91] sm:$0xff] %vm300, %v4352
      %4386 = vst.msk [vmem:[%s4372 + $0x99] sm:$0xff] %vm300, %v4353
      %4387 = vst.msk [vmem:[%s4372 + $0xa9] sm:$0xff] %vm300, %v4354
      %4388 = vst.msk [vmem:[%s4372 + $0xb1] sm:$0xff] %vm300, %v4355
      %4389 = vst.msk [vmem:[%s4372 + $0xc1] sm:$0xff] %vm300, %v4356
      %4390 = vst.msk [vmem:[%s4372 + $0xc9] sm:$0xff] %vm300, %v4357
      %4391 = vst.msk [vmem:[%s4372 + $0xd9] sm:$0xff] %vm300, %v4358
      %4392 = vst.msk [vmem:[%s4372 + $0xe1] sm:$0xff] %vm300, %v4359
      %4393 = vst.msk [vmem:[%s4372 + $0xf1] sm:$0xff] %vm300, %v4360
      %4394 = vst.msk [vmem:[%s4372 + $0xf9] sm:$0xff] %vm300, %v4361
      %4395 = vst.msk [vmem:[%s4372 + $0x109] sm:$0xff] %vm300, %v4362
      %4396 = vst.msk [vmem:[%s4372 + $0x111] sm:$0xff] %vm300, %v4363
      %4397 = vst.msk [vmem:[%s4372 + $0x121] sm:$0xff] %vm300, %v4364
      %4398 = vst.msk [vmem:[%s4372 + $0x129] sm:$0xff] %vm300, %v4365
      %4399 = vst.msk [vmem:[%s4372 + $0x139] sm:$0xff] %vm300, %v4366
      %4400 = vst.msk [vmem:[%s4372 + $0x141] sm:$0xff] %vm300, %v4367
      %4401 = vst.msk [vmem:[%s4372 + $0x151] sm:$0xff] %vm300, %v4368
      %4402 = vst.msk [vmem:[%s4372 + $0x159] sm:$0xff] %vm300, %v4369
      %4403 = vst.msk [vmem:[%s4372 + $0x169] sm:$0xff] %vm300, %v4370
      %4404 = vst.msk [vmem:[%s4372 + $0x171] sm:$0xff] %vm300, %v4371
      %v4405 = vld [vmem:[#allocation4] sm:$0xff]
      %v4406 = vld [vmem:[#allocation4 + $0x8] sm:$0xff]
      %v4407 = vld [vmem:[#allocation4 + $0x18] sm:$0xff]
      %v4408 = vld [vmem:[#allocation4 + $0x20] sm:$0xff]
      %v4409 = vld [vmem:[#allocation4 + $0x30] sm:$0xff]
      %v4410 = vld [vmem:[#allocation4 + $0x38] sm:$0xff]
      %v4411 = vld [vmem:[#allocation4 + $0x48] sm:$0xff]
      %v4412 = vld [vmem:[#allocation4 + $0x50] sm:$0xff]
      %v4413 = vld [vmem:[#allocation4 + $0x60] sm:$0xff]
      %v4414 = vld [vmem:[#allocation4 + $0x68] sm:$0xff]
      %v4415 = vld [vmem:[#allocation4 + $0x78] sm:$0xff]
      %v4416 = vld [vmem:[#allocation4 + $0x80] sm:$0xff]
      %v4417 = vld [vmem:[#allocation4 + $0x90] sm:$0xff]
      %v4418 = vld [vmem:[#allocation4 + $0x98] sm:$0xff]
      %v4419 = vld [vmem:[#allocation4 + $0xa8] sm:$0xff]
      %v4420 = vld [vmem:[#allocation4 + $0xb0] sm:$0xff]
      %v4421 = vld [vmem:[#allocation4 + $0xc0] sm:$0xff]
      %v4422 = vld [vmem:[#allocation4 + $0xc8] sm:$0xff]
      %v4423 = vld [vmem:[#allocation4 + $0xd8] sm:$0xff]
      %v4424 = vld [vmem:[#allocation4 + $0xe0] sm:$0xff]
      %v4425 = vld [vmem:[#allocation4 + $0xf0] sm:$0xff]
      %v4426 = vld [vmem:[#allocation4 + $0xf8] sm:$0xff]
      %v4427 = vld [vmem:[#allocation4 + $0x108] sm:$0xff]
      %v4428 = vld [vmem:[#allocation4 + $0x110] sm:$0xff]
      %v4429 = vld [vmem:[#allocation4 + $0x120] sm:$0xff]
      %v4430 = vld [vmem:[#allocation4 + $0x128] sm:$0xff]
      %v4431 = vld [vmem:[#allocation4 + $0x138] sm:$0xff]
      %v4432 = vld [vmem:[#allocation4 + $0x140] sm:$0xff]
      %v4433 = vld [vmem:[#allocation4 + $0x150] sm:$0xff]
      %v4434 = vld [vmem:[#allocation4 + $0x158] sm:$0xff]
      %v4435 = vld [vmem:[#allocation4 + $0x168] sm:$0xff]
      %v4436 = vld [vmem:[#allocation4 + $0x170] sm:$0xff]
      %v4437 = vld [vmem:[#allocation4 + $0x1] sm:$0xff]
      %v4438 = vld [vmem:[#allocation4 + $0x9] sm:$0xff]
      %v4439 = vld [vmem:[#allocation4 + $0x19] sm:$0xff]
      %v4440 = vld [vmem:[#allocation4 + $0x21] sm:$0xff]
      %v4441 = vld [vmem:[#allocation4 + $0x31] sm:$0xff]
      %v4442 = vld [vmem:[#allocation4 + $0x39] sm:$0xff]
      %v4443 = vld [vmem:[#allocation4 + $0x49] sm:$0xff]
      %v4444 = vld [vmem:[#allocation4 + $0x51] sm:$0xff]
      %v4445 = vld [vmem:[#allocation4 + $0x61] sm:$0xff]
      %v4446 = vld [vmem:[#allocation4 + $0x69] sm:$0xff]
      %v4447 = vld [vmem:[#allocation4 + $0x79] sm:$0xff]
      %v4448 = vld [vmem:[#allocation4 + $0x81] sm:$0xff]
      %v4449 = vld [vmem:[#allocation4 + $0x91] sm:$0xff]
      %v4450 = vld [vmem:[#allocation4 + $0x99] sm:$0xff]
      %v4451 = vld [vmem:[#allocation4 + $0xa9] sm:$0xff]
      %v4452 = vld [vmem:[#allocation4 + $0xb1] sm:$0xff]
      %v4453 = vld [vmem:[#allocation4 + $0xc1] sm:$0xff]
      %v4454 = vld [vmem:[#allocation4 + $0xc9] sm:$0xff]
      %v4455 = vld [vmem:[#allocation4 + $0xd9] sm:$0xff]
      %v4456 = vld [vmem:[#allocation4 + $0xe1] sm:$0xff]
      %v4457 = vld [vmem:[#allocation4 + $0xf1] sm:$0xff]
      %v4458 = vld [vmem:[#allocation4 + $0xf9] sm:$0xff]
      %v4459 = vld [vmem:[#allocation4 + $0x109] sm:$0xff]
      %v4460 = vld [vmem:[#allocation4 + $0x111] sm:$0xff]
      %v4461 = vld [vmem:[#allocation4 + $0x121] sm:$0xff]
      %v4462 = vld [vmem:[#allocation4 + $0x129] sm:$0xff]
      %v4463 = vld [vmem:[#allocation4 + $0x139] sm:$0xff]
      %v4464 = vld [vmem:[#allocation4 + $0x141] sm:$0xff]
      %v4465 = vld [vmem:[#allocation4 + $0x151] sm:$0xff]
      %v4466 = vld [vmem:[#allocation4 + $0x159] sm:$0xff]
      %v4467 = vld [vmem:[#allocation4 + $0x169] sm:$0xff]
      %v4468 = vld [vmem:[#allocation4 + $0x171] sm:$0xff]
      %v4469 = vld [vmem:[#allocation4 + $0x2] sm:$0xff]
      %v4470 = vld [vmem:[#allocation4 + $0xa] sm:$0xff]
      %v4471 = vld [vmem:[#allocation4 + $0x1a] sm:$0xff]
      %v4472 = vld [vmem:[#allocation4 + $0x22] sm:$0xff]
      %v4473 = vld [vmem:[#allocation4 + $0x32] sm:$0xff]
      %v4474 = vld [vmem:[#allocation4 + $0x3a] sm:$0xff]
      %v4475 = vld [vmem:[#allocation4 + $0x4a] sm:$0xff]
      %v4476 = vld [vmem:[#allocation4 + $0x52] sm:$0xff]
      %v4477 = vld [vmem:[#allocation4 + $0x62] sm:$0xff]
      %v4478 = vld [vmem:[#allocation4 + $0x6a] sm:$0xff]
      %v4479 = vld [vmem:[#allocation4 + $0x7a] sm:$0xff]
      %v4480 = vld [vmem:[#allocation4 + $0x82] sm:$0xff]
      %v4481 = vld [vmem:[#allocation4 + $0x92] sm:$0xff]
      %v4482 = vld [vmem:[#allocation4 + $0x9a] sm:$0xff]
      %v4483 = vld [vmem:[#allocation4 + $0xaa] sm:$0xff]
      %v4484 = vld [vmem:[#allocation4 + $0xb2] sm:$0xff]
      %v4485 = vld [vmem:[#allocation4 + $0xc2] sm:$0xff]
      %v4486 = vld [vmem:[#allocation4 + $0xca] sm:$0xff]
      %v4487 = vld [vmem:[#allocation4 + $0xda] sm:$0xff]
      %v4488 = vld [vmem:[#allocation4 + $0xe2] sm:$0xff]
      %v4489 = vld [vmem:[#allocation4 + $0xf2] sm:$0xff]
      %v4490 = vld [vmem:[#allocation4 + $0xfa] sm:$0xff]
      %v4491 = vld [vmem:[#allocation4 + $0x10a] sm:$0xff]
      %v4492 = vld [vmem:[#allocation4 + $0x112] sm:$0xff]
      %v4493 = vld [vmem:[#allocation4 + $0x122] sm:$0xff]
      %v4494 = vld [vmem:[#allocation4 + $0x12a] sm:$0xff]
      %v4495 = vld [vmem:[#allocation4 + $0x13a] sm:$0xff]
      %v4496 = vld [vmem:[#allocation4 + $0x142] sm:$0xff]
      %v4497 = vld [vmem:[#allocation4 + $0x152] sm:$0xff]
      %v4498 = vld [vmem:[#allocation4 + $0x15a] sm:$0xff]
      %v4499 = vld [vmem:[#allocation4 + $0x16a] sm:$0xff]
      %v4500 = vld [vmem:[#allocation4 + $0x172] sm:$0xff]
      %v4501 = vld [vmem:[%s4372] sm:$0xff]
      %v4502 = vld [vmem:[%s4372 + $0x8] sm:$0xff]
      %v4503 = vld [vmem:[%s4372 + $0x18] sm:$0xff]
      %v4504 = vld [vmem:[%s4372 + $0x20] sm:$0xff]
      %v4505 = vld [vmem:[%s4372 + $0x30] sm:$0xff]
      %v4506 = vld [vmem:[%s4372 + $0x38] sm:$0xff]
      %v4507 = vld [vmem:[%s4372 + $0x48] sm:$0xff]
      %v4508 = vld [vmem:[%s4372 + $0x50] sm:$0xff]
      %v4509 = vld [vmem:[%s4372 + $0x60] sm:$0xff]
      %v4510 = vld [vmem:[%s4372 + $0x68] sm:$0xff]
      %v4511 = vld [vmem:[%s4372 + $0x78] sm:$0xff]
      %v4512 = vld [vmem:[%s4372 + $0x80] sm:$0xff]
      %v4513 = vld [vmem:[%s4372 + $0x90] sm:$0xff]
      %v4514 = vld [vmem:[%s4372 + $0x98] sm:$0xff]
      %v4515 = vld [vmem:[%s4372 + $0xa8] sm:$0xff]
      %v4516 = vld [vmem:[%s4372 + $0xb0] sm:$0xff]
      %v4517 = vld [vmem:[%s4372 + $0xc0] sm:$0xff]
      %v4518 = vld [vmem:[%s4372 + $0xc8] sm:$0xff]
      %v4519 = vld [vmem:[%s4372 + $0xd8] sm:$0xff]
      %v4520 = vld [vmem:[%s4372 + $0xe0] sm:$0xff]
      %v4521 = vld [vmem:[%s4372 + $0xf0] sm:$0xff]
      %v4522 = vld [vmem:[%s4372 + $0xf8] sm:$0xff]
      %v4523 = vld [vmem:[%s4372 + $0x108] sm:$0xff]
      %v4524 = vld [vmem:[%s4372 + $0x110] sm:$0xff]
      %v4525 = vld [vmem:[%s4372 + $0x120] sm:$0xff]
      %v4526 = vld [vmem:[%s4372 + $0x128] sm:$0xff]
      %v4527 = vld [vmem:[%s4372 + $0x138] sm:$0xff]
      %v4528 = vld [vmem:[%s4372 + $0x140] sm:$0xff]
      %v4529 = vld [vmem:[%s4372 + $0x150] sm:$0xff]
      %v4530 = vld [vmem:[%s4372 + $0x158] sm:$0xff]
      %v4531 = vld [vmem:[%s4372 + $0x168] sm:$0xff]
      %v4532 = vld [vmem:[%s4372 + $0x170] sm:$0xff]
      %v4533 = vld [vmem:[%s4372 + $0x1] sm:$0xff]
      %v4534 = vld [vmem:[%s4372 + $0x9] sm:$0xff]
      %v4535 = vld [vmem:[%s4372 + $0x19] sm:$0xff]
      %v4536 = vld [vmem:[%s4372 + $0x21] sm:$0xff]
      %v4537 = vld [vmem:[%s4372 + $0x31] sm:$0xff]
      %v4538 = vld [vmem:[%s4372 + $0x39] sm:$0xff]
      %v4539 = vld [vmem:[%s4372 + $0x49] sm:$0xff]
      %v4540 = vld [vmem:[%s4372 + $0x51] sm:$0xff]
      %v4541 = vld [vmem:[%s4372 + $0x61] sm:$0xff]
      %v4542 = vld [vmem:[%s4372 + $0x69] sm:$0xff]
      %v4543 = vld [vmem:[%s4372 + $0x79] sm:$0xff]
      %v4544 = vld [vmem:[%s4372 + $0x81] sm:$0xff]
      %v4545 = vld [vmem:[%s4372 + $0x91] sm:$0xff]
      %v4546 = vld [vmem:[%s4372 + $0x99] sm:$0xff]
      %v4547 = vld [vmem:[%s4372 + $0xa9] sm:$0xff]
      %v4548 = vld [vmem:[%s4372 + $0xb1] sm:$0xff]
      %v4549 = vld [vmem:[%s4372 + $0xc1] sm:$0xff]
      %v4550 = vld [vmem:[%s4372 + $0xc9] sm:$0xff]
      %v4551 = vld [vmem:[%s4372 + $0xd9] sm:$0xff]
      %v4552 = vld [vmem:[%s4372 + $0xe1] sm:$0xff]
      %v4553 = vld [vmem:[%s4372 + $0xf1] sm:$0xff]
      %v4554 = vld [vmem:[%s4372 + $0xf9] sm:$0xff]
      %v4555 = vld [vmem:[%s4372 + $0x109] sm:$0xff]
      %v4556 = vld [vmem:[%s4372 + $0x111] sm:$0xff]
      %v4557 = vld [vmem:[%s4372 + $0x121] sm:$0xff]
      %v4558 = vld [vmem:[%s4372 + $0x129] sm:$0xff]
      %v4559 = vld [vmem:[%s4372 + $0x139] sm:$0xff]
      %v4560 = vld [vmem:[%s4372 + $0x141] sm:$0xff]
      %v4561 = vld [vmem:[%s4372 + $0x151] sm:$0xff]
      %v4562 = vld [vmem:[%s4372 + $0x159] sm:$0xff]
      %v4563 = vld [vmem:[%s4372 + $0x169] sm:$0xff]
      %v4564 = vld [vmem:[%s4372 + $0x171] sm:$0xff]
      %v4565 = vld [vmem:[%s4372 + $0x2] sm:$0xff]
      %v4566 = vld [vmem:[%s4372 + $0xa] sm:$0xff]
      %v4567 = vld [vmem:[%s4372 + $0x1a] sm:$0xff]
      %v4568 = vld [vmem:[%s4372 + $0x22] sm:$0xff]
      %v4569 = vld [vmem:[%s4372 + $0x32] sm:$0xff]
      %v4570 = vld [vmem:[%s4372 + $0x3a] sm:$0xff]
      %v4571 = vld [vmem:[%s4372 + $0x4a] sm:$0xff]
      %v4572 = vld [vmem:[%s4372 + $0x52] sm:$0xff]
      %v4573 = vld [vmem:[%s4372 + $0x62] sm:$0xff]
      %v4574 = vld [vmem:[%s4372 + $0x6a] sm:$0xff]
      %v4575 = vld [vmem:[%s4372 + $0x7a] sm:$0xff]
      %v4576 = vld [vmem:[%s4372 + $0x82] sm:$0xff]
      %v4577 = vld [vmem:[%s4372 + $0x92] sm:$0xff]
      %v4578 = vld [vmem:[%s4372 + $0x9a] sm:$0xff]
      %v4579 = vld [vmem:[%s4372 + $0xaa] sm:$0xff]
      %v4580 = vld [vmem:[%s4372 + $0xb2] sm:$0xff]
      %v4581 = vld [vmem:[%s4372 + $0xc2] sm:$0xff]
      %v4582 = vld [vmem:[%s4372 + $0xca] sm:$0xff]
      %v4583 = vld [vmem:[%s4372 + $0xda] sm:$0xff]
      %v4584 = vld [vmem:[%s4372 + $0xe2] sm:$0xff]
      %v4585 = vld [vmem:[%s4372 + $0xf2] sm:$0xff]
      %v4586 = vld [vmem:[%s4372 + $0xfa] sm:$0xff]
      %v4587 = vld [vmem:[%s4372 + $0x10a] sm:$0xff]
      %v4588 = vld [vmem:[%s4372 + $0x112] sm:$0xff]
      %v4589 = vld [vmem:[%s4372 + $0x122] sm:$0xff]
      %v4590 = vld [vmem:[%s4372 + $0x12a] sm:$0xff]
      %v4591 = vld [vmem:[%s4372 + $0x13a] sm:$0xff]
      %v4592 = vld [vmem:[%s4372 + $0x142] sm:$0xff]
      %v4593 = vld [vmem:[%s4372 + $0x152] sm:$0xff]
      %v4594 = vld [vmem:[%s4372 + $0x15a] sm:$0xff]
      %v4595 = vld [vmem:[%s4372 + $0x16a] sm:$0xff]
      %v4596 = vld [vmem:[%s4372 + $0x172] sm:$0xff]
      %s4597 = scalar_lea.vmem [#allocation4], 48
      %v4598 = vld [vmem:[%s4597] sm:$0xff]
      %v4599 = vld [vmem:[%s4597 + $0x8] sm:$0xff]
      %v4600 = vld [vmem:[%s4597 + $0x18] sm:$0xff]
      %v4601 = vld [vmem:[%s4597 + $0x20] sm:$0xff]
      %v4602 = vld [vmem:[%s4597 + $0x30] sm:$0xff]
      %v4603 = vld [vmem:[%s4597 + $0x38] sm:$0xff]
      %v4604 = vld [vmem:[%s4597 + $0x48] sm:$0xff]
      %v4605 = vld [vmem:[%s4597 + $0x50] sm:$0xff]
      %v4606 = vld [vmem:[%s4597 + $0x60] sm:$0xff]
      %v4607 = vld [vmem:[%s4597 + $0x68] sm:$0xff]
      %v4608 = vld [vmem:[%s4597 + $0x78] sm:$0xff]
      %v4609 = vld [vmem:[%s4597 + $0x80] sm:$0xff]
      %v4610 = vld [vmem:[%s4597 + $0x90] sm:$0xff]
      %v4611 = vld [vmem:[%s4597 + $0x98] sm:$0xff]
      %v4612 = vld [vmem:[%s4597 + $0xa8] sm:$0xff]
      %v4613 = vld [vmem:[%s4597 + $0xb0] sm:$0xff]
      %v4614 = vld [vmem:[%s4597 + $0xc0] sm:$0xff]
      %v4615 = vld [vmem:[%s4597 + $0xc8] sm:$0xff]
      %v4616 = vld [vmem:[%s4597 + $0xd8] sm:$0xff]
      %v4617 = vld [vmem:[%s4597 + $0xe0] sm:$0xff]
      %v4618 = vld [vmem:[%s4597 + $0xf0] sm:$0xff]
      %v4619 = vld [vmem:[%s4597 + $0xf8] sm:$0xff]
      %v4620 = vld [vmem:[%s4597 + $0x108] sm:$0xff]
      %v4621 = vld [vmem:[%s4597 + $0x110] sm:$0xff]
      %v4622 = vld [vmem:[%s4597 + $0x120] sm:$0xff]
      %v4623 = vld [vmem:[%s4597 + $0x128] sm:$0xff]
      %v4624 = vld [vmem:[%s4597 + $0x138] sm:$0xff]
      %v4625 = vld [vmem:[%s4597 + $0x140] sm:$0xff]
      %v4626 = vld [vmem:[%s4597 + $0x150] sm:$0xff]
      %v4627 = vld [vmem:[%s4597 + $0x158] sm:$0xff]
      %v4628 = vld [vmem:[%s4597 + $0x168] sm:$0xff]
      %v4629 = vld [vmem:[%s4597 + $0x170] sm:$0xff]
      %v4630 = vld [vmem:[%s4597 + $0x1] sm:$0xff]
      %v4631 = vld [vmem:[%s4597 + $0x9] sm:$0xff]
      %v4632 = vld [vmem:[%s4597 + $0x19] sm:$0xff]
      %v4633 = vld [vmem:[%s4597 + $0x21] sm:$0xff]
      %v4634 = vld [vmem:[%s4597 + $0x31] sm:$0xff]
      %v4635 = vld [vmem:[%s4597 + $0x39] sm:$0xff]
      %v4636 = vld [vmem:[%s4597 + $0x49] sm:$0xff]
      %v4637 = vld [vmem:[%s4597 + $0x51] sm:$0xff]
      %v4638 = vld [vmem:[%s4597 + $0x61] sm:$0xff]
      %v4639 = vld [vmem:[%s4597 + $0x69] sm:$0xff]
      %v4640 = vld [vmem:[%s4597 + $0x79] sm:$0xff]
      %v4641 = vld [vmem:[%s4597 + $0x81] sm:$0xff]
      %v4642 = vld [vmem:[%s4597 + $0x91] sm:$0xff]
      %v4643 = vld [vmem:[%s4597 + $0x99] sm:$0xff]
      %v4644 = vld [vmem:[%s4597 + $0xa9] sm:$0xff]
      %v4645 = vld [vmem:[%s4597 + $0xb1] sm:$0xff]
      %v4646 = vld [vmem:[%s4597 + $0xc1] sm:$0xff]
      %v4647 = vld [vmem:[%s4597 + $0xc9] sm:$0xff]
      %v4648 = vld [vmem:[%s4597 + $0xd9] sm:$0xff]
      %v4649 = vld [vmem:[%s4597 + $0xe1] sm:$0xff]
      %v4650 = vld [vmem:[%s4597 + $0xf1] sm:$0xff]
      %v4651 = vld [vmem:[%s4597 + $0xf9] sm:$0xff]
      %v4652 = vld [vmem:[%s4597 + $0x109] sm:$0xff]
      %v4653 = vld [vmem:[%s4597 + $0x111] sm:$0xff]
      %v4654 = vld [vmem:[%s4597 + $0x121] sm:$0xff]
      %v4655 = vld [vmem:[%s4597 + $0x129] sm:$0xff]
      %v4656 = vld [vmem:[%s4597 + $0x139] sm:$0xff]
      %v4657 = vld [vmem:[%s4597 + $0x141] sm:$0xff]
      %v4658 = vld [vmem:[%s4597 + $0x151] sm:$0xff]
      %v4659 = vld [vmem:[%s4597 + $0x159] sm:$0xff]
      %v4660 = vld [vmem:[%s4597 + $0x169] sm:$0xff]
      %v4661 = vld [vmem:[%s4597 + $0x171] sm:$0xff]
      %v4662 = vld [vmem:[%s4597 + $0x2] sm:$0xff]
      %v4663 = vld [vmem:[%s4597 + $0xa] sm:$0xff]
      %v4664 = vld [vmem:[%s4597 + $0x1a] sm:$0xff]
      %v4665 = vld [vmem:[%s4597 + $0x22] sm:$0xff]
      %v4666 = vld [vmem:[%s4597 + $0x32] sm:$0xff]
      %v4667 = vld [vmem:[%s4597 + $0x3a] sm:$0xff]
      %v4668 = vld [vmem:[%s4597 + $0x4a] sm:$0xff]
      %v4669 = vld [vmem:[%s4597 + $0x52] sm:$0xff]
      %v4670 = vld [vmem:[%s4597 + $0x62] sm:$0xff]
      %v4671 = vld [vmem:[%s4597 + $0x6a] sm:$0xff]
      %v4672 = vld [vmem:[%s4597 + $0x7a] sm:$0xff]
      %v4673 = vld [vmem:[%s4597 + $0x82] sm:$0xff]
      %v4674 = vld [vmem:[%s4597 + $0x92] sm:$0xff]
      %v4675 = vld [vmem:[%s4597 + $0x9a] sm:$0xff]
      %v4676 = vld [vmem:[%s4597 + $0xaa] sm:$0xff]
      %v4677 = vld [vmem:[%s4597 + $0xb2] sm:$0xff]
      %v4678 = vld [vmem:[%s4597 + $0xc2] sm:$0xff]
      %v4679 = vld [vmem:[%s4597 + $0xca] sm:$0xff]
      %v4680 = vld [vmem:[%s4597 + $0xda] sm:$0xff]
      %v4681 = vld [vmem:[%s4597 + $0xe2] sm:$0xff]
      %v4682 = vld [vmem:[%s4597 + $0xf2] sm:$0xff]
      %v4683 = vld [vmem:[%s4597 + $0xfa] sm:$0xff]
      %v4684 = vld [vmem:[%s4597 + $0x10a] sm:$0xff]
      %v4685 = vld [vmem:[%s4597 + $0x112] sm:$0xff]
      %v4686 = vld [vmem:[%s4597 + $0x122] sm:$0xff]
      %v4687 = vld [vmem:[%s4597 + $0x12a] sm:$0xff]
      %v4688 = vld [vmem:[%s4597 + $0x13a] sm:$0xff]
      %v4689 = vld [vmem:[%s4597 + $0x142] sm:$0xff]
      %v4690 = vld [vmem:[%s4597 + $0x152] sm:$0xff]
      %v4691 = vld [vmem:[%s4597 + $0x15a] sm:$0xff]
      %v4692 = vld [vmem:[%s4597 + $0x16a] sm:$0xff]
      %v4693 = vld [vmem:[%s4597 + $0x172] sm:$0xff]
      %4726 = vrot.lane.b32.xlu0 %v4437, 4
      %v4727 = vpop.permute.xlu0 %4726
      %4728 = vrot.lane.b32.xlu0 %v4438, 4
      %v4729 = vpop.permute.xlu0 %4728
      %4730 = vrot.lane.b32.xlu0 %v4439, 4
      %v4731 = vpop.permute.xlu0 %4730
      %4732 = vrot.lane.b32.xlu0 %v4440, 4
      %v4733 = vpop.permute.xlu0 %4732
      %4734 = vrot.lane.b32.xlu0 %v4441, 4
      %v4735 = vpop.permute.xlu0 %4734
      %4736 = vrot.lane.b32.xlu0 %v4442, 4
      %v4737 = vpop.permute.xlu0 %4736
      %4738 = vrot.lane.b32.xlu0 %v4443, 4
      %v4739 = vpop.permute.xlu0 %4738
      %4740 = vrot.lane.b32.xlu0 %v4444, 4
      %v4741 = vpop.permute.xlu0 %4740
      %4742 = vrot.lane.b32.xlu0 %v4445, 4
      %v4743 = vpop.permute.xlu0 %4742
      %4744 = vrot.lane.b32.xlu0 %v4446, 4
      %v4745 = vpop.permute.xlu0 %4744
      %4746 = vrot.lane.b32.xlu0 %v4447, 4
      %v4747 = vpop.permute.xlu0 %4746
      %4748 = vrot.lane.b32.xlu0 %v4448, 4
      %v4749 = vpop.permute.xlu0 %4748
      %4750 = vrot.lane.b32.xlu0 %v4449, 4
      %v4751 = vpop.permute.xlu0 %4750
      %4752 = vrot.lane.b32.xlu0 %v4450, 4
      %v4753 = vpop.permute.xlu0 %4752
      %4754 = vrot.lane.b32.xlu0 %v4451, 4
      %v4755 = vpop.permute.xlu0 %4754
      %4756 = vrot.lane.b32.xlu0 %v4452, 4
      %v4757 = vpop.permute.xlu0 %4756
      %4758 = vrot.lane.b32.xlu0 %v4453, 4
      %v4759 = vpop.permute.xlu0 %4758
      %4760 = vrot.lane.b32.xlu0 %v4454, 4
      %v4761 = vpop.permute.xlu0 %4760
      %4762 = vrot.lane.b32.xlu0 %v4455, 4
      %v4763 = vpop.permute.xlu0 %4762
      %4764 = vrot.lane.b32.xlu0 %v4456, 4
      %v4765 = vpop.permute.xlu0 %4764
      %4766 = vrot.lane.b32.xlu0 %v4457, 4
      %v4767 = vpop.permute.xlu0 %4766
      %4768 = vrot.lane.b32.xlu0 %v4458, 4
      %v4769 = vpop.permute.xlu0 %4768
      %4770 = vrot.lane.b32.xlu0 %v4459, 4
      %v4771 = vpop.permute.xlu0 %4770
      %4772 = vrot.lane.b32.xlu0 %v4460, 4
      %v4773 = vpop.permute.xlu0 %4772
      %4774 = vrot.lane.b32.xlu0 %v4461, 4
      %v4775 = vpop.permute.xlu0 %4774
      %4776 = vrot.lane.b32.xlu0 %v4462, 4
      %v4777 = vpop.permute.xlu0 %4776
      %4778 = vrot.lane.b32.xlu0 %v4463, 4
      %v4779 = vpop.permute.xlu0 %4778
      %4780 = vrot.lane.b32.xlu0 %v4464, 4
      %v4781 = vpop.permute.xlu0 %4780
      %4782 = vrot.lane.b32.xlu0 %v4465, 4
      %v4783 = vpop.permute.xlu0 %4782
      %4784 = vrot.lane.b32.xlu0 %v4466, 4
      %v4785 = vpop.permute.xlu0 %4784
      %4786 = vrot.lane.b32.xlu0 %v4467, 4
      %v4787 = vpop.permute.xlu0 %4786
      %4788 = vrot.lane.b32.xlu0 %v4468, 4
      %v4789 = vpop.permute.xlu0 %4788
      %4854 = vrot.lane.b32.xlu0 %v4469, 8
      %v4855 = vpop.permute.xlu0 %4854
      %4856 = vrot.lane.b32.xlu0 %v4470, 8
      %v4857 = vpop.permute.xlu0 %4856
      %4858 = vrot.lane.b32.xlu0 %v4471, 8
      %v4859 = vpop.permute.xlu0 %4858
      %4860 = vrot.lane.b32.xlu0 %v4472, 8
      %v4861 = vpop.permute.xlu0 %4860
      %4862 = vrot.lane.b32.xlu0 %v4473, 8
      %v4863 = vpop.permute.xlu0 %4862
      %4864 = vrot.lane.b32.xlu0 %v4474, 8
      %v4865 = vpop.permute.xlu0 %4864
      %4866 = vrot.lane.b32.xlu0 %v4475, 8
      %v4867 = vpop.permute.xlu0 %4866
      %4868 = vrot.lane.b32.xlu0 %v4476, 8
      %v4869 = vpop.permute.xlu0 %4868
      %4870 = vrot.lane.b32.xlu0 %v4477, 8
      %v4871 = vpop.permute.xlu0 %4870
      %4872 = vrot.lane.b32.xlu0 %v4478, 8
      %v4873 = vpop.permute.xlu0 %4872
      %4874 = vrot.lane.b32.xlu0 %v4479, 8
      %v4875 = vpop.permute.xlu0 %4874
      %4876 = vrot.lane.b32.xlu0 %v4480, 8
      %v4877 = vpop.permute.xlu0 %4876
      %4878 = vrot.lane.b32.xlu0 %v4481, 8
      %v4879 = vpop.permute.xlu0 %4878
      %4880 = vrot.lane.b32.xlu0 %v4482, 8
      %v4881 = vpop.permute.xlu0 %4880
      %4882 = vrot.lane.b32.xlu0 %v4483, 8
      %v4883 = vpop.permute.xlu0 %4882
      %4884 = vrot.lane.b32.xlu0 %v4484, 8
      %v4885 = vpop.permute.xlu0 %4884
      %4886 = vrot.lane.b32.xlu0 %v4485, 8
      %v4887 = vpop.permute.xlu0 %4886
      %4888 = vrot.lane.b32.xlu0 %v4486, 8
      %v4889 = vpop.permute.xlu0 %4888
      %4890 = vrot.lane.b32.xlu0 %v4487, 8
      %v4891 = vpop.permute.xlu0 %4890
      %4892 = vrot.lane.b32.xlu0 %v4488, 8
      %v4893 = vpop.permute.xlu0 %4892
      %4894 = vrot.lane.b32.xlu0 %v4489, 8
      %v4895 = vpop.permute.xlu0 %4894
      %4896 = vrot.lane.b32.xlu0 %v4490, 8
      %v4897 = vpop.permute.xlu0 %4896
      %4898 = vrot.lane.b32.xlu0 %v4491, 8
      %v4899 = vpop.permute.xlu0 %4898
      %4900 = vrot.lane.b32.xlu0 %v4492, 8
      %v4901 = vpop.permute.xlu0 %4900
      %4902 = vrot.lane.b32.xlu0 %v4493, 8
      %v4903 = vpop.permute.xlu0 %4902
      %4904 = vrot.lane.b32.xlu0 %v4494, 8
      %v4905 = vpop.permute.xlu0 %4904
      %4906 = vrot.lane.b32.xlu0 %v4495, 8
      %v4907 = vpop.permute.xlu0 %4906
      %4908 = vrot.lane.b32.xlu0 %v4496, 8
      %v4909 = vpop.permute.xlu0 %4908
      %4910 = vrot.lane.b32.xlu0 %v4497, 8
      %v4911 = vpop.permute.xlu0 %4910
      %4912 = vrot.lane.b32.xlu0 %v4498, 8
      %v4913 = vpop.permute.xlu0 %4912
      %4914 = vrot.lane.b32.xlu0 %v4499, 8
      %v4915 = vpop.permute.xlu0 %4914
      %4916 = vrot.lane.b32.xlu0 %v4500, 8
      %v4917 = vpop.permute.xlu0 %4916
      %4982 = vrot.lane.b32.xlu0 %v4501, 12
      %v4983 = vpop.permute.xlu0 %4982
      %4984 = vrot.lane.b32.xlu0 %v4502, 12
      %v4985 = vpop.permute.xlu0 %4984
      %4986 = vrot.lane.b32.xlu0 %v4503, 12
      %v4987 = vpop.permute.xlu0 %4986
      %4988 = vrot.lane.b32.xlu0 %v4504, 12
      %v4989 = vpop.permute.xlu0 %4988
      %4990 = vrot.lane.b32.xlu0 %v4505, 12
      %v4991 = vpop.permute.xlu0 %4990
      %4992 = vrot.lane.b32.xlu0 %v4506, 12
      %v4993 = vpop.permute.xlu0 %4992
      %4994 = vrot.lane.b32.xlu0 %v4507, 12
      %v4995 = vpop.permute.xlu0 %4994
      %4996 = vrot.lane.b32.xlu0 %v4508, 12
      %v4997 = vpop.permute.xlu0 %4996
      %4998 = vrot.lane.b32.xlu0 %v4509, 12
      %v4999 = vpop.permute.xlu0 %4998
      %5000 = vrot.lane.b32.xlu0 %v4510, 12
      %v5001 = vpop.permute.xlu0 %5000
      %5002 = vrot.lane.b32.xlu0 %v4511, 12
      %v5003 = vpop.permute.xlu0 %5002
      %5004 = vrot.lane.b32.xlu0 %v4512, 12
      %v5005 = vpop.permute.xlu0 %5004
      %5006 = vrot.lane.b32.xlu0 %v4513, 12
      %v5007 = vpop.permute.xlu0 %5006
      %5008 = vrot.lane.b32.xlu0 %v4514, 12
      %v5009 = vpop.permute.xlu0 %5008
      %5010 = vrot.lane.b32.xlu0 %v4515, 12
      %v5011 = vpop.permute.xlu0 %5010
      %5012 = vrot.lane.b32.xlu0 %v4516, 12
      %v5013 = vpop.permute.xlu0 %5012
      %5014 = vrot.lane.b32.xlu0 %v4517, 12
      %v5015 = vpop.permute.xlu0 %5014
      %5016 = vrot.lane.b32.xlu0 %v4518, 12
      %v5017 = vpop.permute.xlu0 %5016
      %5018 = vrot.lane.b32.xlu0 %v4519, 12
      %v5019 = vpop.permute.xlu0 %5018
      %5020 = vrot.lane.b32.xlu0 %v4520, 12
      %v5021 = vpop.permute.xlu0 %5020
      %5022 = vrot.lane.b32.xlu0 %v4521, 12
      %v5023 = vpop.permute.xlu0 %5022
      %5024 = vrot.lane.b32.xlu0 %v4522, 12
      %v5025 = vpop.permute.xlu0 %5024
      %5026 = vrot.lane.b32.xlu0 %v4523, 12
      %v5027 = vpop.permute.xlu0 %5026
      %5028 = vrot.lane.b32.xlu0 %v4524, 12
      %v5029 = vpop.permute.xlu0 %5028
      %5030 = vrot.lane.b32.xlu0 %v4525, 12
      %v5031 = vpop.permute.xlu0 %5030
      %5032 = vrot.lane.b32.xlu0 %v4526, 12
      %v5033 = vpop.permute.xlu0 %5032
      %5034 = vrot.lane.b32.xlu0 %v4527, 12
      %v5035 = vpop.permute.xlu0 %5034
      %5036 = vrot.lane.b32.xlu0 %v4528, 12
      %v5037 = vpop.permute.xlu0 %5036
      %5038 = vrot.lane.b32.xlu0 %v4529, 12
      %v5039 = vpop.permute.xlu0 %5038
      %5040 = vrot.lane.b32.xlu0 %v4530, 12
      %v5041 = vpop.permute.xlu0 %5040
      %5042 = vrot.lane.b32.xlu0 %v4531, 12
      %v5043 = vpop.permute.xlu0 %5042
      %5044 = vrot.lane.b32.xlu0 %v4532, 12
      %v5045 = vpop.permute.xlu0 %5044
      %5110 = vrot.lane.b32.xlu0 %v4533, 16
      %v5111 = vpop.permute.xlu0 %5110
      %5112 = vrot.lane.b32.xlu0 %v4534, 16
      %v5113 = vpop.permute.xlu0 %5112
      %5114 = vrot.lane.b32.xlu0 %v4535, 16
      %v5115 = vpop.permute.xlu0 %5114
      %5116 = vrot.lane.b32.xlu0 %v4536, 16
      %v5117 = vpop.permute.xlu0 %5116
      %5118 = vrot.lane.b32.xlu0 %v4537, 16
      %v5119 = vpop.permute.xlu0 %5118
      %5120 = vrot.lane.b32.xlu0 %v4538, 16
      %v5121 = vpop.permute.xlu0 %5120
      %5122 = vrot.lane.b32.xlu0 %v4539, 16
      %v5123 = vpop.permute.xlu0 %5122
      %5124 = vrot.lane.b32.xlu0 %v4540, 16
      %v5125 = vpop.permute.xlu0 %5124
      %5126 = vrot.lane.b32.xlu0 %v4541, 16
      %v5127 = vpop.permute.xlu0 %5126
      %5128 = vrot.lane.b32.xlu0 %v4542, 16
      %v5129 = vpop.permute.xlu0 %5128
      %5130 = vrot.lane.b32.xlu0 %v4543, 16
      %v5131 = vpop.permute.xlu0 %5130
      %5132 = vrot.lane.b32.xlu0 %v4544, 16
      %v5133 = vpop.permute.xlu0 %5132
      %5134 = vrot.lane.b32.xlu0 %v4545, 16
      %v5135 = vpop.permute.xlu0 %5134
      %5136 = vrot.lane.b32.xlu0 %v4546, 16
      %v5137 = vpop.permute.xlu0 %5136
      %5138 = vrot.lane.b32.xlu0 %v4547, 16
      %v5139 = vpop.permute.xlu0 %5138
      %5140 = vrot.lane.b32.xlu0 %v4548, 16
      %v5141 = vpop.permute.xlu0 %5140
      %5142 = vrot.lane.b32.xlu0 %v4549, 16
      %v5143 = vpop.permute.xlu0 %5142
      %5144 = vrot.lane.b32.xlu0 %v4550, 16
      %v5145 = vpop.permute.xlu0 %5144
      %5146 = vrot.lane.b32.xlu0 %v4551, 16
      %v5147 = vpop.permute.xlu0 %5146
      %5148 = vrot.lane.b32.xlu0 %v4552, 16
      %v5149 = vpop.permute.xlu0 %5148
      %5150 = vrot.lane.b32.xlu0 %v4553, 16
      %v5151 = vpop.permute.xlu0 %5150
      %5152 = vrot.lane.b32.xlu0 %v4554, 16
      %v5153 = vpop.permute.xlu0 %5152
      %5154 = vrot.lane.b32.xlu0 %v4555, 16
      %v5155 = vpop.permute.xlu0 %5154
      %5156 = vrot.lane.b32.xlu0 %v4556, 16
      %v5157 = vpop.permute.xlu0 %5156
      %5158 = vrot.lane.b32.xlu0 %v4557, 16
      %v5159 = vpop.permute.xlu0 %5158
      %5160 = vrot.lane.b32.xlu0 %v4558, 16
      %v5161 = vpop.permute.xlu0 %5160
      %5162 = vrot.lane.b32.xlu0 %v4559, 16
      %v5163 = vpop.permute.xlu0 %5162
      %5164 = vrot.lane.b32.xlu0 %v4560, 16
      %v5165 = vpop.permute.xlu0 %5164
      %5166 = vrot.lane.b32.xlu0 %v4561, 16
      %v5167 = vpop.permute.xlu0 %5166
      %5168 = vrot.lane.b32.xlu0 %v4562, 16
      %v5169 = vpop.permute.xlu0 %5168
      %5170 = vrot.lane.b32.xlu0 %v4563, 16
      %v5171 = vpop.permute.xlu0 %5170
      %5172 = vrot.lane.b32.xlu0 %v4564, 16
      %v5173 = vpop.permute.xlu0 %5172
      %5238 = vrot.lane.b32.xlu0 %v4565, 20
      %v5239 = vpop.permute.xlu0 %5238
      %5240 = vrot.lane.b32.xlu0 %v4566, 20
      %v5241 = vpop.permute.xlu0 %5240
      %5242 = vrot.lane.b32.xlu0 %v4567, 20
      %v5243 = vpop.permute.xlu0 %5242
      %5244 = vrot.lane.b32.xlu0 %v4568, 20
      %v5245 = vpop.permute.xlu0 %5244
      %5246 = vrot.lane.b32.xlu0 %v4569, 20
      %v5247 = vpop.permute.xlu0 %5246
      %5248 = vrot.lane.b32.xlu0 %v4570, 20
      %v5249 = vpop.permute.xlu0 %5248
      %5250 = vrot.lane.b32.xlu0 %v4571, 20
      %v5251 = vpop.permute.xlu0 %5250
      %5252 = vrot.lane.b32.xlu0 %v4572, 20
      %v5253 = vpop.permute.xlu0 %5252
      %5254 = vrot.lane.b32.xlu0 %v4573, 20
      %v5255 = vpop.permute.xlu0 %5254
      %5256 = vrot.lane.b32.xlu0 %v4574, 20
      %v5257 = vpop.permute.xlu0 %5256
      %5258 = vrot.lane.b32.xlu0 %v4575, 20
      %v5259 = vpop.permute.xlu0 %5258
      %5260 = vrot.lane.b32.xlu0 %v4576, 20
      %v5261 = vpop.permute.xlu0 %5260
      %5262 = vrot.lane.b32.xlu0 %v4577, 20
      %v5263 = vpop.permute.xlu0 %5262
      %5264 = vrot.lane.b32.xlu0 %v4578, 20
      %v5265 = vpop.permute.xlu0 %5264
      %5266 = vrot.lane.b32.xlu0 %v4579, 20
      %v5267 = vpop.permute.xlu0 %5266
      %5268 = vrot.lane.b32.xlu0 %v4580, 20
      %v5269 = vpop.permute.xlu0 %5268
      %5270 = vrot.lane.b32.xlu0 %v4581, 20
      %v5271 = vpop.permute.xlu0 %5270
      %5272 = vrot.lane.b32.xlu0 %v4582, 20
      %v5273 = vpop.permute.xlu0 %5272
      %5274 = vrot.lane.b32.xlu0 %v4583, 20
      %v5275 = vpop.permute.xlu0 %5274
      %5276 = vrot.lane.b32.xlu0 %v4584, 20
      %v5277 = vpop.permute.xlu0 %5276
      %5278 = vrot.lane.b32.xlu0 %v4585, 20
      %v5279 = vpop.permute.xlu0 %5278
      %5280 = vrot.lane.b32.xlu0 %v4586, 20
      %v5281 = vpop.permute.xlu0 %5280
      %5282 = vrot.lane.b32.xlu0 %v4587, 20
      %v5283 = vpop.permute.xlu0 %5282
      %5284 = vrot.lane.b32.xlu0 %v4588, 20
      %v5285 = vpop.permute.xlu0 %5284
      %5286 = vrot.lane.b32.xlu0 %v4589, 20
      %v5287 = vpop.permute.xlu0 %5286
      %5288 = vrot.lane.b32.xlu0 %v4590, 20
      %v5289 = vpop.permute.xlu0 %5288
      %5290 = vrot.lane.b32.xlu0 %v4591, 20
      %v5291 = vpop.permute.xlu0 %5290
      %5292 = vrot.lane.b32.xlu0 %v4592, 20
      %v5293 = vpop.permute.xlu0 %5292
      %5294 = vrot.lane.b32.xlu0 %v4593, 20
      %v5295 = vpop.permute.xlu0 %5294
      %5296 = vrot.lane.b32.xlu0 %v4594, 20
      %v5297 = vpop.permute.xlu0 %5296
      %5298 = vrot.lane.b32.xlu0 %v4595, 20
      %v5299 = vpop.permute.xlu0 %5298
      %5300 = vrot.lane.b32.xlu0 %v4596, 20
      %v5301 = vpop.permute.xlu0 %5300
      %5366 = vrot.lane.b32.xlu0 %v4598, 24
      %v5367 = vpop.permute.xlu0 %5366
      %5368 = vrot.lane.b32.xlu0 %v4599, 24
      %v5369 = vpop.permute.xlu0 %5368
      %5370 = vrot.lane.b32.xlu0 %v4600, 24
      %v5371 = vpop.permute.xlu0 %5370
      %5372 = vrot.lane.b32.xlu0 %v4601, 24
      %v5373 = vpop.permute.xlu0 %5372
      %5374 = vrot.lane.b32.xlu0 %v4602, 24
      %v5375 = vpop.permute.xlu0 %5374
      %5376 = vrot.lane.b32.xlu0 %v4603, 24
      %v5377 = vpop.permute.xlu0 %5376
      %5378 = vrot.lane.b32.xlu0 %v4604, 24
      %v5379 = vpop.permute.xlu0 %5378
      %5380 = vrot.lane.b32.xlu0 %v4605, 24
      %v5381 = vpop.permute.xlu0 %5380
      %5382 = vrot.lane.b32.xlu0 %v4606, 24
      %v5383 = vpop.permute.xlu0 %5382
      %5384 = vrot.lane.b32.xlu0 %v4607, 24
      %v5385 = vpop.permute.xlu0 %5384
      %5386 = vrot.lane.b32.xlu0 %v4608, 24
      %v5387 = vpop.permute.xlu0 %5386
      %5388 = vrot.lane.b32.xlu0 %v4609, 24
      %v5389 = vpop.permute.xlu0 %5388
      %5390 = vrot.lane.b32.xlu0 %v4610, 24
      %v5391 = vpop.permute.xlu0 %5390
      %5392 = vrot.lane.b32.xlu0 %v4611, 24
      %v5393 = vpop.permute.xlu0 %5392
      %5394 = vrot.lane.b32.xlu0 %v4612, 24
      %v5395 = vpop.permute.xlu0 %5394
      %5396 = vrot.lane.b32.xlu0 %v4613, 24
      %v5397 = vpop.permute.xlu0 %5396
      %5398 = vrot.lane.b32.xlu0 %v4614, 24
      %v5399 = vpop.permute.xlu0 %5398
      %5400 = vrot.lane.b32.xlu0 %v4615, 24
      %v5401 = vpop.permute.xlu0 %5400
      %5402 = vrot.lane.b32.xlu0 %v4616, 24
      %v5403 = vpop.permute.xlu0 %5402
      %5404 = vrot.lane.b32.xlu0 %v4617, 24
      %v5405 = vpop.permute.xlu0 %5404
      %5406 = vrot.lane.b32.xlu0 %v4618, 24
      %v5407 = vpop.permute.xlu0 %5406
      %5408 = vrot.lane.b32.xlu0 %v4619, 24
      %v5409 = vpop.permute.xlu0 %5408
      %5410 = vrot.lane.b32.xlu0 %v4620, 24
      %v5411 = vpop.permute.xlu0 %5410
      %5412 = vrot.lane.b32.xlu0 %v4621, 24
      %v5413 = vpop.permute.xlu0 %5412
      %5414 = vrot.lane.b32.xlu0 %v4622, 24
      %v5415 = vpop.permute.xlu0 %5414
      %5416 = vrot.lane.b32.xlu0 %v4623, 24
      %v5417 = vpop.permute.xlu0 %5416
      %5418 = vrot.lane.b32.xlu0 %v4624, 24
      %v5419 = vpop.permute.xlu0 %5418
      %5420 = vrot.lane.b32.xlu0 %v4625, 24
      %v5421 = vpop.permute.xlu0 %5420
      %5422 = vrot.lane.b32.xlu0 %v4626, 24
      %v5423 = vpop.permute.xlu0 %5422
      %5424 = vrot.lane.b32.xlu0 %v4627, 24
      %v5425 = vpop.permute.xlu0 %5424
      %5426 = vrot.lane.b32.xlu0 %v4628, 24
      %v5427 = vpop.permute.xlu0 %5426
      %5428 = vrot.lane.b32.xlu0 %v4629, 24
      %v5429 = vpop.permute.xlu0 %5428
      %5494 = vrot.lane.b32.xlu0 %v4630, 28
      %v5495 = vpop.permute.xlu0 %5494
      %5496 = vrot.lane.b32.xlu0 %v4631, 28
      %v5497 = vpop.permute.xlu0 %5496
      %5498 = vrot.lane.b32.xlu0 %v4632, 28
      %v5499 = vpop.permute.xlu0 %5498
      %5500 = vrot.lane.b32.xlu0 %v4633, 28
      %v5501 = vpop.permute.xlu0 %5500
      %5502 = vrot.lane.b32.xlu0 %v4634, 28
      %v5503 = vpop.permute.xlu0 %5502
      %5504 = vrot.lane.b32.xlu0 %v4635, 28
      %v5505 = vpop.permute.xlu0 %5504
      %5506 = vrot.lane.b32.xlu0 %v4636, 28
      %v5507 = vpop.permute.xlu0 %5506
      %5508 = vrot.lane.b32.xlu0 %v4637, 28
      %v5509 = vpop.permute.xlu0 %5508
      %5510 = vrot.lane.b32.xlu0 %v4638, 28
      %v5511 = vpop.permute.xlu0 %5510
      %5512 = vrot.lane.b32.xlu0 %v4639, 28
      %v5513 = vpop.permute.xlu0 %5512
      %5514 = vrot.lane.b32.xlu0 %v4640, 28
      %v5515 = vpop.permute.xlu0 %5514
      %5516 = vrot.lane.b32.xlu0 %v4641, 28
      %v5517 = vpop.permute.xlu0 %5516
      %5518 = vrot.lane.b32.xlu0 %v4642, 28
      %v5519 = vpop.permute.xlu0 %5518
      %5520 = vrot.lane.b32.xlu0 %v4643, 28
      %v5521 = vpop.permute.xlu0 %5520
      %5522 = vrot.lane.b32.xlu0 %v4644, 28
      %v5523 = vpop.permute.xlu0 %5522
      %5524 = vrot.lane.b32.xlu0 %v4645, 28
      %v5525 = vpop.permute.xlu0 %5524
      %5526 = vrot.lane.b32.xlu0 %v4646, 28
      %v5527 = vpop.permute.xlu0 %5526
      %5528 = vrot.lane.b32.xlu0 %v4647, 28
      %v5529 = vpop.permute.xlu0 %5528
      %5530 = vrot.lane.b32.xlu0 %v4648, 28
      %v5531 = vpop.permute.xlu0 %5530
      %5532 = vrot.lane.b32.xlu0 %v4649, 28
      %v5533 = vpop.permute.xlu0 %5532
      %5534 = vrot.lane.b32.xlu0 %v4650, 28
      %v5535 = vpop.permute.xlu0 %5534
      %5536 = vrot.lane.b32.xlu0 %v4651, 28
      %v5537 = vpop.permute.xlu0 %5536
      %5538 = vrot.lane.b32.xlu0 %v4652, 28
      %v5539 = vpop.permute.xlu0 %5538
      %5540 = vrot.lane.b32.xlu0 %v4653, 28
      %v5541 = vpop.permute.xlu0 %5540
      %5542 = vrot.lane.b32.xlu0 %v4654, 28
      %v5543 = vpop.permute.xlu0 %5542
      %5544 = vrot.lane.b32.xlu0 %v4655, 28
      %v5545 = vpop.permute.xlu0 %5544
      %5546 = vrot.lane.b32.xlu0 %v4656, 28
      %v5547 = vpop.permute.xlu0 %5546
      %5548 = vrot.lane.b32.xlu0 %v4657, 28
      %v5549 = vpop.permute.xlu0 %5548
      %5550 = vrot.lane.b32.xlu0 %v4658, 28
      %v5551 = vpop.permute.xlu0 %5550
      %5552 = vrot.lane.b32.xlu0 %v4659, 28
      %v5553 = vpop.permute.xlu0 %5552
      %5554 = vrot.lane.b32.xlu0 %v4660, 28
      %v5555 = vpop.permute.xlu0 %5554
      %5556 = vrot.lane.b32.xlu0 %v4661, 28
      %v5557 = vpop.permute.xlu0 %5556
      %5622 = vrot.lane.b32.xlu0 %v4662, 32
      %v5623 = vpop.permute.xlu0 %5622
      %5624 = vrot.lane.b32.xlu0 %v4663, 32
      %v5625 = vpop.permute.xlu0 %5624
      %5626 = vrot.lane.b32.xlu0 %v4664, 32
      %v5627 = vpop.permute.xlu0 %5626
      %5628 = vrot.lane.b32.xlu0 %v4665, 32
      %v5629 = vpop.permute.xlu0 %5628
      %5630 = vrot.lane.b32.xlu0 %v4666, 32
      %v5631 = vpop.permute.xlu0 %5630
      %5632 = vrot.lane.b32.xlu0 %v4667, 32
      %v5633 = vpop.permute.xlu0 %5632
      %5634 = vrot.lane.b32.xlu0 %v4668, 32
      %v5635 = vpop.permute.xlu0 %5634
      %5636 = vrot.lane.b32.xlu0 %v4669, 32
      %v5637 = vpop.permute.xlu0 %5636
      %5638 = vrot.lane.b32.xlu0 %v4670, 32
      %v5639 = vpop.permute.xlu0 %5638
      %5640 = vrot.lane.b32.xlu0 %v4671, 32
      %v5641 = vpop.permute.xlu0 %5640
      %5642 = vrot.lane.b32.xlu0 %v4672, 32
      %v5643 = vpop.permute.xlu0 %5642
      %5644 = vrot.lane.b32.xlu0 %v4673, 32
      %v5645 = vpop.permute.xlu0 %5644
      %5646 = vrot.lane.b32.xlu0 %v4674, 32
      %v5647 = vpop.permute.xlu0 %5646
      %5648 = vrot.lane.b32.xlu0 %v4675, 32
      %v5649 = vpop.permute.xlu0 %5648
      %5650 = vrot.lane.b32.xlu0 %v4676, 32
      %v5651 = vpop.permute.xlu0 %5650
      %5652 = vrot.lane.b32.xlu0 %v4677, 32
      %v5653 = vpop.permute.xlu0 %5652
      %5654 = vrot.lane.b32.xlu0 %v4678, 32
      %v5655 = vpop.permute.xlu0 %5654
      %5656 = vrot.lane.b32.xlu0 %v4679, 32
      %v5657 = vpop.permute.xlu0 %5656
      %5658 = vrot.lane.b32.xlu0 %v4680, 32
      %v5659 = vpop.permute.xlu0 %5658
      %5660 = vrot.lane.b32.xlu0 %v4681, 32
      %v5661 = vpop.permute.xlu0 %5660
      %5662 = vrot.lane.b32.xlu0 %v4682, 32
      %v5663 = vpop.permute.xlu0 %5662
      %5664 = vrot.lane.b32.xlu0 %v4683, 32
      %v5665 = vpop.permute.xlu0 %5664
      %5666 = vrot.lane.b32.xlu0 %v4684, 32
      %v5667 = vpop.permute.xlu0 %5666
      %5668 = vrot.lane.b32.xlu0 %v4685, 32
      %v5669 = vpop.permute.xlu0 %5668
      %5670 = vrot.lane.b32.xlu0 %v4686, 32
      %v5671 = vpop.permute.xlu0 %5670
      %5672 = vrot.lane.b32.xlu0 %v4687, 32
      %v5673 = vpop.permute.xlu0 %5672
      %5674 = vrot.lane.b32.xlu0 %v4688, 32
      %v5675 = vpop.permute.xlu0 %5674
      %5676 = vrot.lane.b32.xlu0 %v4689, 32
      %v5677 = vpop.permute.xlu0 %5676
      %5678 = vrot.lane.b32.xlu0 %v4690, 32
      %v5679 = vpop.permute.xlu0 %5678
      %5680 = vrot.lane.b32.xlu0 %v4691, 32
      %v5681 = vpop.permute.xlu0 %5680
      %5682 = vrot.lane.b32.xlu0 %v4692, 32
      %v5683 = vpop.permute.xlu0 %5682
      %5684 = vrot.lane.b32.xlu0 %v4693, 32
      %v5685 = vpop.permute.xlu0 %5684
      %v5718 = vsel %vm300, %v4405, %v4727
      %v5719 = vsel %vm300, %v4406, %v4729
      %v5720 = vsel %vm300, %v4407, %v4731
      %v5721 = vsel %vm300, %v4408, %v4733
      %v5722 = vsel %vm300, %v4409, %v4735
      %v5723 = vsel %vm300, %v4410, %v4737
      %v5724 = vsel %vm300, %v4411, %v4739
      %v5725 = vsel %vm300, %v4412, %v4741
      %v5726 = vsel %vm300, %v4413, %v4743
      %v5727 = vsel %vm300, %v4414, %v4745
      %v5728 = vsel %vm300, %v4415, %v4747
      %v5729 = vsel %vm300, %v4416, %v4749
      %v5730 = vsel %vm300, %v4417, %v4751
      %v5731 = vsel %vm300, %v4418, %v4753
      %v5732 = vsel %vm300, %v4419, %v4755
      %v5733 = vsel %vm300, %v4420, %v4757
      %v5734 = vsel %vm300, %v4421, %v4759
      %v5735 = vsel %vm300, %v4422, %v4761
      %v5736 = vsel %vm300, %v4423, %v4763
      %v5737 = vsel %vm300, %v4424, %v4765
      %v5738 = vsel %vm300, %v4425, %v4767
      %v5739 = vsel %vm300, %v4426, %v4769
      %v5740 = vsel %vm300, %v4427, %v4771
      %v5741 = vsel %vm300, %v4428, %v4773
      %v5742 = vsel %vm300, %v4429, %v4775
      %v5743 = vsel %vm300, %v4430, %v4777
      %v5744 = vsel %vm300, %v4431, %v4779
      %v5745 = vsel %vm300, %v4432, %v4781
      %v5746 = vsel %vm300, %v4433, %v4783
      %v5747 = vsel %vm300, %v4434, %v4785
      %v5748 = vsel %vm300, %v4435, %v4787
      %v5749 = vsel %vm300, %v4436, %v4789
      %v5750 = vsel %vm2003, %v5718, %v4855
      %v5751 = vsel %vm2003, %v5719, %v4857
      %v5752 = vsel %vm2003, %v5720, %v4859
      %v5753 = vsel %vm2003, %v5721, %v4861
      %v5754 = vsel %vm2003, %v5722, %v4863
      %v5755 = vsel %vm2003, %v5723, %v4865
      %v5756 = vsel %vm2003, %v5724, %v4867
      %v5757 = vsel %vm2003, %v5725, %v4869
      %v5758 = vsel %vm2003, %v5726, %v4871
      %v5759 = vsel %vm2003, %v5727, %v4873
      %v5760 = vsel %vm2003, %v5728, %v4875
      %v5761 = vsel %vm2003, %v5729, %v4877
      %v5762 = vsel %vm2003, %v5730, %v4879
      %v5763 = vsel %vm2003, %v5731, %v4881
      %v5764 = vsel %vm2003, %v5732, %v4883
      %v5765 = vsel %vm2003, %v5733, %v4885
      %v5766 = vsel %vm2003, %v5734, %v4887
      %v5767 = vsel %vm2003, %v5735, %v4889
      %v5768 = vsel %vm2003, %v5736, %v4891
      %v5769 = vsel %vm2003, %v5737, %v4893
      %v5770 = vsel %vm2003, %v5738, %v4895
      %v5771 = vsel %vm2003, %v5739, %v4897
      %v5772 = vsel %vm2003, %v5740, %v4899
      %v5773 = vsel %vm2003, %v5741, %v4901
      %v5774 = vsel %vm2003, %v5742, %v4903
      %v5775 = vsel %vm2003, %v5743, %v4905
      %v5776 = vsel %vm2003, %v5744, %v4907
      %v5777 = vsel %vm2003, %v5745, %v4909
      %v5778 = vsel %vm2003, %v5746, %v4911
      %v5779 = vsel %vm2003, %v5747, %v4913
      %v5780 = vsel %vm2003, %v5748, %v4915
      %v5781 = vsel %vm2003, %v5749, %v4917
      %v5782 = vsel %vm2036, %v5750, %v4983
      %v5783 = vsel %vm2036, %v5751, %v4985
      %v5784 = vsel %vm2036, %v5752, %v4987
      %v5785 = vsel %vm2036, %v5753, %v4989
      %v5786 = vsel %vm2036, %v5754, %v4991
      %v5787 = vsel %vm2036, %v5755, %v4993
      %v5788 = vsel %vm2036, %v5756, %v4995
      %v5789 = vsel %vm2036, %v5757, %v4997
      %v5790 = vsel %vm2036, %v5758, %v4999
      %v5791 = vsel %vm2036, %v5759, %v5001
      %v5792 = vsel %vm2036, %v5760, %v5003
      %v5793 = vsel %vm2036, %v5761, %v5005
      %v5794 = vsel %vm2036, %v5762, %v5007
      %v5795 = vsel %vm2036, %v5763, %v5009
      %v5796 = vsel %vm2036, %v5764, %v5011
      %v5797 = vsel %vm2036, %v5765, %v5013
      %v5798 = vsel %vm2036, %v5766, %v5015
      %v5799 = vsel %vm2036, %v5767, %v5017
      %v5800 = vsel %vm2036, %v5768, %v5019
      %v5801 = vsel %vm2036, %v5769, %v5021
      %v5802 = vsel %vm2036, %v5770, %v5023
      %v5803 = vsel %vm2036, %v5771, %v5025
      %v5804 = vsel %vm2036, %v5772, %v5027
      %v5805 = vsel %vm2036, %v5773, %v5029
      %v5806 = vsel %vm2036, %v5774, %v5031
      %v5807 = vsel %vm2036, %v5775, %v5033
      %v5808 = vsel %vm2036, %v5776, %v5035
      %v5809 = vsel %vm2036, %v5777, %v5037
      %v5810 = vsel %vm2036, %v5778, %v5039
      %v5811 = vsel %vm2036, %v5779, %v5041
      %v5812 = vsel %vm2036, %v5780, %v5043
      %v5813 = vsel %vm2036, %v5781, %v5045
      %v5814 = vsel %vm2069, %v5782, %v5111
      %v5815 = vsel %vm2069, %v5783, %v5113
      %v5816 = vsel %vm2069, %v5784, %v5115
      %v5817 = vsel %vm2069, %v5785, %v5117
      %v5818 = vsel %vm2069, %v5786, %v5119
      %v5819 = vsel %vm2069, %v5787, %v5121
      %v5820 = vsel %vm2069, %v5788, %v5123
      %v5821 = vsel %vm2069, %v5789, %v5125
      %v5822 = vsel %vm2069, %v5790, %v5127
      %v5823 = vsel %vm2069, %v5791, %v5129
      %v5824 = vsel %vm2069, %v5792, %v5131
      %v5825 = vsel %vm2069, %v5793, %v5133
      %v5826 = vsel %vm2069, %v5794, %v5135
      %v5827 = vsel %vm2069, %v5795, %v5137
      %v5828 = vsel %vm2069, %v5796, %v5139
      %v5829 = vsel %vm2069, %v5797, %v5141
      %v5830 = vsel %vm2069, %v5798, %v5143
      %v5831 = vsel %vm2069, %v5799, %v5145
      %v5832 = vsel %vm2069, %v5800, %v5147
      %v5833 = vsel %vm2069, %v5801, %v5149
      %v5834 = vsel %vm2069, %v5802, %v5151
      %v5835 = vsel %vm2069, %v5803, %v5153
      %v5836 = vsel %vm2069, %v5804, %v5155
      %v5837 = vsel %vm2069, %v5805, %v5157
      %v5838 = vsel %vm2069, %v5806, %v5159
      %v5839 = vsel %vm2069, %v5807, %v5161
      %v5840 = vsel %vm2069, %v5808, %v5163
      %v5841 = vsel %vm2069, %v5809, %v5165
      %v5842 = vsel %vm2069, %v5810, %v5167
      %v5843 = vsel %vm2069, %v5811, %v5169
      %v5844 = vsel %vm2069, %v5812, %v5171
      %v5845 = vsel %vm2069, %v5813, %v5173
      %v5846 = vsel %vm2102, %v5814, %v5239
      %v5847 = vsel %vm2102, %v5815, %v5241
      %v5848 = vsel %vm2102, %v5816, %v5243
      %v5849 = vsel %vm2102, %v5817, %v5245
      %v5850 = vsel %vm2102, %v5818, %v5247
      %v5851 = vsel %vm2102, %v5819, %v5249
      %v5852 = vsel %vm2102, %v5820, %v5251
      %v5853 = vsel %vm2102, %v5821, %v5253
      %v5854 = vsel %vm2102, %v5822, %v5255
      %v5855 = vsel %vm2102, %v5823, %v5257
      %v5856 = vsel %vm2102, %v5824, %v5259
      %v5857 = vsel %vm2102, %v5825, %v5261
      %v5858 = vsel %vm2102, %v5826, %v5263
      %v5859 = vsel %vm2102, %v5827, %v5265
      %v5860 = vsel %vm2102, %v5828, %v5267
      %v5861 = vsel %vm2102, %v5829, %v5269
      %v5862 = vsel %vm2102, %v5830, %v5271
      %v5863 = vsel %vm2102, %v5831, %v5273
      %v5864 = vsel %vm2102, %v5832, %v5275
      %v5865 = vsel %vm2102, %v5833, %v5277
      %v5866 = vsel %vm2102, %v5834, %v5279
      %v5867 = vsel %vm2102, %v5835, %v5281
      %v5868 = vsel %vm2102, %v5836, %v5283
      %v5869 = vsel %vm2102, %v5837, %v5285
      %v5870 = vsel %vm2102, %v5838, %v5287
      %v5871 = vsel %vm2102, %v5839, %v5289
      %v5872 = vsel %vm2102, %v5840, %v5291
      %v5873 = vsel %vm2102, %v5841, %v5293
      %v5874 = vsel %vm2102, %v5842, %v5295
      %v5875 = vsel %vm2102, %v5843, %v5297
      %v5876 = vsel %vm2102, %v5844, %v5299
      %v5877 = vsel %vm2102, %v5845, %v5301
      %v5878 = vsel %vm2135, %v5846, %v5367
      %v5879 = vsel %vm2135, %v5847, %v5369
      %v5880 = vsel %vm2135, %v5848, %v5371
      %v5881 = vsel %vm2135, %v5849, %v5373
      %v5882 = vsel %vm2135, %v5850, %v5375
      %v5883 = vsel %vm2135, %v5851, %v5377
      %v5884 = vsel %vm2135, %v5852, %v5379
      %v5885 = vsel %vm2135, %v5853, %v5381
      %v5886 = vsel %vm2135, %v5854, %v5383
      %v5887 = vsel %vm2135, %v5855, %v5385
      %v5888 = vsel %vm2135, %v5856, %v5387
      %v5889 = vsel %vm2135, %v5857, %v5389
      %v5890 = vsel %vm2135, %v5858, %v5391
      %v5891 = vsel %vm2135, %v5859, %v5393
      %v5892 = vsel %vm2135, %v5860, %v5395
      %v5893 = vsel %vm2135, %v5861, %v5397
      %v5894 = vsel %vm2135, %v5862, %v5399
      %v5895 = vsel %vm2135, %v5863, %v5401
      %v5896 = vsel %vm2135, %v5864, %v5403
      %v5897 = vsel %vm2135, %v5865, %v5405
      %v5898 = vsel %vm2135, %v5866, %v5407
      %v5899 = vsel %vm2135, %v5867, %v5409
      %v5900 = vsel %vm2135, %v5868, %v5411
      %v5901 = vsel %vm2135, %v5869, %v5413
      %v5902 = vsel %vm2135, %v5870, %v5415
      %v5903 = vsel %vm2135, %v5871, %v5417
      %v5904 = vsel %vm2135, %v5872, %v5419
      %v5905 = vsel %vm2135, %v5873, %v5421
      %v5906 = vsel %vm2135, %v5874, %v5423
      %v5907 = vsel %vm2135, %v5875, %v5425
      %v5908 = vsel %vm2135, %v5876, %v5427
      %v5909 = vsel %vm2135, %v5877, %v5429
      %v5910 = vsel %vm2168, %v5878, %v5495
      %v5911 = vsel %vm2168, %v5879, %v5497
      %v5912 = vsel %vm2168, %v5880, %v5499
      %v5913 = vsel %vm2168, %v5881, %v5501
      %v5914 = vsel %vm2168, %v5882, %v5503
      %v5915 = vsel %vm2168, %v5883, %v5505
      %v5916 = vsel %vm2168, %v5884, %v5507
      %v5917 = vsel %vm2168, %v5885, %v5509
      %v5918 = vsel %vm2168, %v5886, %v5511
      %v5919 = vsel %vm2168, %v5887, %v5513
      %v5920 = vsel %vm2168, %v5888, %v5515
      %v5921 = vsel %vm2168, %v5889, %v5517
      %v5922 = vsel %vm2168, %v5890, %v5519
      %v5923 = vsel %vm2168, %v5891, %v5521
      %v5924 = vsel %vm2168, %v5892, %v5523
      %v5925 = vsel %vm2168, %v5893, %v5525
      %v5926 = vsel %vm2168, %v5894, %v5527
      %v5927 = vsel %vm2168, %v5895, %v5529
      %v5928 = vsel %vm2168, %v5896, %v5531
      %v5929 = vsel %vm2168, %v5897, %v5533
      %v5930 = vsel %vm2168, %v5898, %v5535
      %v5931 = vsel %vm2168, %v5899, %v5537
      %v5932 = vsel %vm2168, %v5900, %v5539
      %v5933 = vsel %vm2168, %v5901, %v5541
      %v5934 = vsel %vm2168, %v5902, %v5543
      %v5935 = vsel %vm2168, %v5903, %v5545
      %v5936 = vsel %vm2168, %v5904, %v5547
      %v5937 = vsel %vm2168, %v5905, %v5549
      %v5938 = vsel %vm2168, %v5906, %v5551
      %v5939 = vsel %vm2168, %v5907, %v5553
      %v5940 = vsel %vm2168, %v5908, %v5555
      %v5941 = vsel %vm2168, %v5909, %v5557
      %v5942 = vsel %vm2201, %v5910, %v5623
      %v5943 = vsel %vm2201, %v5911, %v5625
      %v5944 = vsel %vm2201, %v5912, %v5627
      %v5945 = vsel %vm2201, %v5913, %v5629
      %v5946 = vsel %vm2201, %v5914, %v5631
      %v5947 = vsel %vm2201, %v5915, %v5633
      %v5948 = vsel %vm2201, %v5916, %v5635
      %v5949 = vsel %vm2201, %v5917, %v5637
      %v5950 = vsel %vm2201, %v5918, %v5639
      %v5951 = vsel %vm2201, %v5919, %v5641
      %v5952 = vsel %vm2201, %v5920, %v5643
      %v5953 = vsel %vm2201, %v5921, %v5645
      %v5954 = vsel %vm2201, %v5922, %v5647
      %v5955 = vsel %vm2201, %v5923, %v5649
      %v5956 = vsel %vm2201, %v5924, %v5651
      %v5957 = vsel %vm2201, %v5925, %v5653
      %v5958 = vsel %vm2201, %v5926, %v5655
      %v5959 = vsel %vm2201, %v5927, %v5657
      %v5960 = vsel %vm2201, %v5928, %v5659
      %v5961 = vsel %vm2201, %v5929, %v5661
      %v5962 = vsel %vm2201, %v5930, %v5663
      %v5963 = vsel %vm2201, %v5931, %v5665
      %v5964 = vsel %vm2201, %v5932, %v5667
      %v5965 = vsel %vm2201, %v5933, %v5669
      %v5966 = vsel %vm2201, %v5934, %v5671
      %v5967 = vsel %vm2201, %v5935, %v5673
      %v5968 = vsel %vm2201, %v5936, %v5675
      %v5969 = vsel %vm2201, %v5937, %v5677
      %v5970 = vsel %vm2201, %v5938, %v5679
      %v5971 = vsel %vm2201, %v5939, %v5681
      %v5972 = vsel %vm2201, %v5940, %v5683
      %v5973 = vsel %vm2201, %v5941, %v5685
      %v5974 = vpack.c.bf16 %v5943, %v5942
      %v5975 = vpack.c.bf16 %v5945, %v5944
      %v5976 = vpack.c.bf16 %v5947, %v5946
      %v5977 = vpack.c.bf16 %v5949, %v5948
      %v5978 = vpack.c.bf16 %v5951, %v5950
      %v5979 = vpack.c.bf16 %v5953, %v5952
      %v5980 = vpack.c.bf16 %v5955, %v5954
      %v5981 = vpack.c.bf16 %v5957, %v5956
      %v5982 = vpack.c.bf16 %v5959, %v5958
      %v5983 = vpack.c.bf16 %v5961, %v5960
      %v5984 = vpack.c.bf16 %v5963, %v5962
      %v5985 = vpack.c.bf16 %v5965, %v5964
      %v5986 = vpack.c.bf16 %v5967, %v5966
      %v5987 = vpack.c.bf16 %v5969, %v5968
      %v5988 = vpack.c.bf16 %v5971, %v5970
      %v5989 = vpack.c.bf16 %v5973, %v5972
      %v5990 = vld [vmem:[%s5] sm:$0xf]
      %v5991 = vld [vmem:[%s5 + $0x4] sm:$0xf]
      %v5992 = vld [vmem:[%s5 + $0x8] sm:$0xf]
      %v5993 = vld [vmem:[%s5 + $0xc] sm:$0xf]
      %v5994 = vld [vmem:[%s5 + $0x10] sm:$0x3]
      %v5995 = vld [vmem:[%s6] sm:$0x1]
      %v5997 = vlaneseq
      %v5998 = vshrl.u32 %v5997, 7
      %v5999 = vsub.s32 0, %v5998
      %v6000 = vrot.slane %v5995, %v5999
      %v6007 = vunpack.c.l.b16 %v5990
      %v6008 = vunpack.c.l.b16 %v5991
      %v6009 = vunpack.c.l.b16 %v5992
      %v6010 = vunpack.c.l.b16 %v5993
      %v6011 = vunpack.c.l.b16 %v5994
      %v6012 = vpack.c.b16 %v6008, %v6007
      %v6013 = vpack.c.b16 %v6010, %v6009
      %v6014 = vpack.c.b16 %v6011, %v6011
      %v6018 = vsel %vm3860, %v5974, 0
      %v6021 = vsel %vm3860, %v5975, 0
      %v6024 = vsel %vm3860, %v5976, 0
      %v6027 = vsel %vm3860, %v5977, 0
      %v6030 = vsel %vm3860, %v5978, 0
      %v6033 = vsel %vm3860, %v5979, 0
      %v6036 = vsel %vm3860, %v5980, 0
      %v6039 = vsel %vm3860, %v5981, 0
      %v6042 = vsel %vm3860, %v5982, 0
      %v6045 = vsel %vm3860, %v5983, 0
      %v6048 = vsel %vm3860, %v5984, 0
      %v6051 = vsel %vm3860, %v5985, 0
      %v6054 = vsel %vm3860, %v5986, 0
      %v6057 = vsel %vm3860, %v5987, 0
      %v6060 = vsel %vm3860, %v5988, 0
      %v6063 = vsel %vm3860, %v5989, 0
      %v6066 = vsel %vm3909, %v6014, 0
      %6068 = vmatprep.subr.bf16.mxu0 0
      %6069 = vmatpush1.bf16.msra.mxu0 0
      %6070 = vmatprep.subr.bf16.mxu0 0
      %6071 = vmatpush1.bf16.msra.mxu0 0
      %6072 = vmatprep.subr.bf16.mxu0 0
      %6073 = vmatpush1.bf16.msra.mxu0 0
      %6074 = vmatprep.subr.bf16.mxu0 0
      %6075 = vmatpush1.bf16.msra.mxu0 0
      %6076 = vmatprep.subr.bf16.mxu0 0
      %6077 = vmatpush1.bf16.msra.mxu0 0
      %6078 = vmatprep.subr.bf16.mxu0 0
      %6079 = vmatpush1.bf16.msra.mxu0 %v6066
      %6080 = vmatprep.subr.bf16.mxu0 0
      %6081 = vmatpush1.bf16.msra.mxu0 %v6013
      %6082 = vmatprep.subr.bf16.mxu0 0
      %6083 = vmatpush1.bf16.msra.mxu0 %v6012
      %6084 = vmatprep.subr.bf16.mxu0 0
      %6085 = vmatpush2.bf16.msra.mxu0 0
      %6086 = vmatprep.subr.bf16.mxu0 0
      %6087 = vmatpush2.bf16.msra.mxu0 0
      %6088 = vmatprep.subr.bf16.mxu0 0
      %6089 = vmatpush2.bf16.msra.mxu0 0
      %6090 = vmatprep.subr.bf16.mxu0 0
      %6091 = vmatpush2.bf16.msra.mxu0 0
      %6092 = vmatprep.subr.bf16.mxu0 0
      %6093 = vmatpush2.bf16.msra.mxu0 0
      %6094 = vmatprep.subr.bf16.mxu0 0
      %6095 = vmatpush2.bf16.msra.mxu0 0
      %6096 = vmatprep.subr.bf16.mxu0 0
      %6097 = vmatpush2.bf16.msra.mxu0 0
      %6098 = vmatprep.subr.bf16.mxu0 0
      %6099 = vmatpush2.bf16.msra.mxu0 0
      %6100 = vmatprep.mubr.bf16.mxu0 0
      %6101 = vmatmul.mubr.bf16.gmra.mxu0 %v6018
      %v6102 = vpop.f32.mrf.mxu0
      %v6103 = vadd.f32 %v6000, %v6102
      %v6104 = vpop.f32.mrf.mxu0
      %v6105 = vpop.f32.mrf.mxu0
      %v6106 = vadd.f32 %v6000, %v6105
      %v6107 = vpop.f32.mrf.mxu0
      %6108 = vmatprep.mubr.bf16.mxu0 0
      %6109 = vmatmul.mubr.bf16.gmra.mxu0 %v6021
      %v6110 = vpop.f32.mrf.mxu0
      %v6111 = vadd.f32 %v6000, %v6110
      %v6112 = vpop.f32.mrf.mxu0
      %v6113 = vpop.f32.mrf.mxu0
      %v6114 = vadd.f32 %v6000, %v6113
      %v6115 = vpop.f32.mrf.mxu0
      %6116 = vmatprep.mubr.bf16.mxu0 0
      %6117 = vmatmul.mubr.bf16.gmra.mxu0 %v6024
      %v6118 = vpop.f32.mrf.mxu0
      %v6119 = vadd.f32 %v6000, %v6118
      %v6120 = vpop.f32.mrf.mxu0
      %v6121 = vpop.f32.mrf.mxu0
      %v6122 = vadd.f32 %v6000, %v6121
      %v6123 = vpop.f32.mrf.mxu0
      %6124 = vmatprep.mubr.bf16.mxu0 0
      %6125 = vmatmul.mubr.bf16.gmra.mxu0 %v6027
      %v6126 = vpop.f32.mrf.mxu0
      %v6127 = vadd.f32 %v6000, %v6126
      %v6128 = vpop.f32.mrf.mxu0
      %v6129 = vpop.f32.mrf.mxu0
      %v6130 = vadd.f32 %v6000, %v6129
      %v6131 = vpop.f32.mrf.mxu0
      %6132 = vmatprep.mubr.bf16.mxu0 0
      %6133 = vmatmul.mubr.bf16.gmra.mxu0 %v6030
      %v6134 = vpop.f32.mrf.mxu0
      %v6135 = vadd.f32 %v6000, %v6134
      %v6136 = vpop.f32.mrf.mxu0
      %v6137 = vpop.f32.mrf.mxu0
      %v6138 = vadd.f32 %v6000, %v6137
      %v6139 = vpop.f32.mrf.mxu0
      %6140 = vmatprep.mubr.bf16.mxu0 0
      %6141 = vmatmul.mubr.bf16.gmra.mxu0 %v6033
      %v6142 = vpop.f32.mrf.mxu0
      %v6143 = vadd.f32 %v6000, %v6142
      %v6144 = vpop.f32.mrf.mxu0
      %v6145 = vpop.f32.mrf.mxu0
      %v6146 = vadd.f32 %v6000, %v6145
      %v6147 = vpop.f32.mrf.mxu0
      %6148 = vmatprep.mubr.bf16.mxu0 0
      %6149 = vmatmul.mubr.bf16.gmra.mxu0 %v6036
      %v6150 = vpop.f32.mrf.mxu0
      %v6151 = vadd.f32 %v6000, %v6150
      %v6152 = vpop.f32.mrf.mxu0
      %v6153 = vpop.f32.mrf.mxu0
      %v6154 = vadd.f32 %v6000, %v6153
      %v6155 = vpop.f32.mrf.mxu0
      %6156 = vmatprep.mubr.bf16.mxu0 0
      %6157 = vmatmul.mubr.bf16.gmra.mxu0 %v6039
      %v6158 = vpop.f32.mrf.mxu0
      %v6159 = vadd.f32 %v6000, %v6158
      %v6160 = vpop.f32.mrf.mxu0
      %v6161 = vpop.f32.mrf.mxu0
      %v6162 = vadd.f32 %v6000, %v6161
      %v6163 = vpop.f32.mrf.mxu0
      %6164 = vmatprep.mubr.bf16.mxu0 0
      %6165 = vmatmul.mubr.bf16.gmra.mxu0 %v6042
      %v6166 = vpop.f32.mrf.mxu0
      %v6167 = vadd.f32 %v6000, %v6166
      %v6168 = vpop.f32.mrf.mxu0
      %v6169 = vpop.f32.mrf.mxu0
      %v6170 = vadd.f32 %v6000, %v6169
      %v6171 = vpop.f32.mrf.mxu0
      %6172 = vmatprep.mubr.bf16.mxu0 0
      %6173 = vmatmul.mubr.bf16.gmra.mxu0 %v6045
      %v6174 = vpop.f32.mrf.mxu0
      %v6175 = vadd.f32 %v6000, %v6174
      %v6176 = vpop.f32.mrf.mxu0
      %v6177 = vpop.f32.mrf.mxu0
      %v6178 = vadd.f32 %v6000, %v6177
      %v6179 = vpop.f32.mrf.mxu0
      %6180 = vmatprep.mubr.bf16.mxu0 0
      %6181 = vmatmul.mubr.bf16.gmra.mxu0 %v6048
      %v6182 = vpop.f32.mrf.mxu0
      %v6183 = vadd.f32 %v6000, %v6182
      %v6184 = vpop.f32.mrf.mxu0
      %v6185 = vpop.f32.mrf.mxu0
      %v6186 = vadd.f32 %v6000, %v6185
      %v6187 = vpop.f32.mrf.mxu0
      %6188 = vmatprep.mubr.bf16.mxu0 0
      %6189 = vmatmul.mubr.bf16.gmra.mxu0 %v6051
      %v6190 = vpop.f32.mrf.mxu0
      %v6191 = vadd.f32 %v6000, %v6190
      %v6192 = vpop.f32.mrf.mxu0
      %v6193 = vpop.f32.mrf.mxu0
      %v6194 = vadd.f32 %v6000, %v6193
      %v6195 = vpop.f32.mrf.mxu0
      %6196 = vmatprep.mubr.bf16.mxu0 0
      %6197 = vmatmul.mubr.bf16.gmra.mxu0 %v6054
      %v6198 = vpop.f32.mrf.mxu0
      %v6199 = vadd.f32 %v6000, %v6198
      %v6200 = vpop.f32.mrf.mxu0
      %v6201 = vpop.f32.mrf.mxu0
      %v6202 = vadd.f32 %v6000, %v6201
      %v6203 = vpop.f32.mrf.mxu0
      %6204 = vmatprep.mubr.bf16.mxu0 0
      %6205 = vmatmul.mubr.bf16.gmra.mxu0 %v6057
      %v6206 = vpop.f32.mrf.mxu0
      %v6207 = vadd.f32 %v6000, %v6206
      %v6208 = vpop.f32.mrf.mxu0
      %v6209 = vpop.f32.mrf.mxu0
      %v6210 = vadd.f32 %v6000, %v6209
      %v6211 = vpop.f32.mrf.mxu0
      %6212 = vmatprep.mubr.bf16.mxu0 0
      %6213 = vmatmul.mubr.bf16.gmra.mxu0 %v6060
      %v6214 = vpop.f32.mrf.mxu0
      %v6215 = vadd.f32 %v6000, %v6214
      %v6216 = vpop.f32.mrf.mxu0
      %v6217 = vpop.f32.mrf.mxu0
      %v6218 = vadd.f32 %v6000, %v6217
      %v6219 = vpop.f32.mrf.mxu0
      %6220 = vmatprep.mubr.bf16.mxu0 0
      %6221 = vmatmul.mubr.bf16.gmra.mxu0 %v6063
      %v6222 = vpop.f32.mrf.mxu0
      %v6223 = vadd.f32 %v6000, %v6222
      %v6224 = vpop.f32.mrf.mxu0
      %v6225 = vpop.f32.mrf.mxu0
      %v6226 = vadd.f32 %v6000, %v6225
      %v6227 = vpop.f32.mrf.mxu0
      %6228 = vdwg.mxu0
      %v6229 = vmax.f32 %v6103, 0.0
      %v6230 = vmax.f32 %v6106, 0.0
      %v6231 = vmax.f32 %v6111, 0.0
      %v6232 = vmax.f32 %v6114, 0.0
      %v6233 = vmax.f32 %v6119, 0.0
      %v6234 = vmax.f32 %v6122, 0.0
      %v6235 = vmax.f32 %v6127, 0.0
      %v6236 = vmax.f32 %v6130, 0.0
      %v6237 = vmax.f32 %v6135, 0.0
      %v6238 = vmax.f32 %v6138, 0.0
      %v6239 = vmax.f32 %v6143, 0.0
      %v6240 = vmax.f32 %v6146, 0.0
      %v6241 = vmax.f32 %v6151, 0.0
      %v6242 = vmax.f32 %v6154, 0.0
      %v6243 = vmax.f32 %v6159, 0.0
      %v6244 = vmax.f32 %v6162, 0.0
      %v6245 = vmax.f32 %v6167, 0.0
      %v6246 = vmax.f32 %v6170, 0.0
      %v6247 = vmax.f32 %v6175, 0.0
      %v6248 = vmax.f32 %v6178, 0.0
      %v6249 = vmax.f32 %v6183, 0.0
      %v6250 = vmax.f32 %v6186, 0.0
      %v6251 = vmax.f32 %v6191, 0.0
      %v6252 = vmax.f32 %v6194, 0.0
      %v6253 = vmax.f32 %v6199, 0.0
      %v6254 = vmax.f32 %v6202, 0.0
      %v6255 = vmax.f32 %v6207, 0.0
      %v6256 = vmax.f32 %v6210, 0.0
      %v6257 = vmax.f32 %v6215, 0.0
      %v6258 = vmax.f32 %v6218, 0.0
      %v6259 = vmax.f32 %v6223, 0.0
      %v6260 = vmax.f32 %v6226, 0.0
      %6261 = vst.msk [vmem:[%s298] sm:$0xff] %vm300, %v6229
      %6262 = vst.msk [vmem:[%s298 + $0x8] sm:$0xff] %vm300, %v6230
      %6263 = vst.msk [vmem:[%s298 + $0x10] sm:$0xff] %vm300, %v6231
      %6264 = vst.msk [vmem:[%s298 + $0x18] sm:$0xff] %vm300, %v6232
      %6265 = vst.msk [vmem:[%s298 + $0x20] sm:$0xff] %vm300, %v6233
      %6266 = vst.msk [vmem:[%s298 + $0x28] sm:$0xff] %vm300, %v6234
      %6267 = vst.msk [vmem:[%s298 + $0x30] sm:$0xff] %vm300, %v6235
      %6268 = vst.msk [vmem:[%s298 + $0x38] sm:$0xff] %vm300, %v6236
      %6269 = vst.msk [vmem:[%s298 + $0x40] sm:$0xff] %vm300, %v6237
      %6270 = vst.msk [vmem:[%s298 + $0x48] sm:$0xff] %vm300, %v6238
      %6271 = vst.msk [vmem:[%s298 + $0x50] sm:$0xff] %vm300, %v6239
      %6272 = vst.msk [vmem:[%s298 + $0x58] sm:$0xff] %vm300, %v6240
      %6273 = vst.msk [vmem:[%s298 + $0x60] sm:$0xff] %vm300, %v6241
      %6274 = vst.msk [vmem:[%s298 + $0x68] sm:$0xff] %vm300, %v6242
      %6275 = vst.msk [vmem:[%s298 + $0x70] sm:$0xff] %vm300, %v6243
      %6276 = vst.msk [vmem:[%s298 + $0x78] sm:$0xff] %vm300, %v6244
      %6277 = vst.msk [vmem:[%s298 + $0x80] sm:$0xff] %vm300, %v6245
      %6278 = vst.msk [vmem:[%s298 + $0x88] sm:$0xff] %vm300, %v6246
      %6279 = vst.msk [vmem:[%s298 + $0x90] sm:$0xff] %vm300, %v6247
      %6280 = vst.msk [vmem:[%s298 + $0x98] sm:$0xff] %vm300, %v6248
      %6281 = vst.msk [vmem:[%s298 + $0xa0] sm:$0xff] %vm300, %v6249
      %6282 = vst.msk [vmem:[%s298 + $0xa8] sm:$0xff] %vm300, %v6250
      %6283 = vst.msk [vmem:[%s298 + $0xb0] sm:$0xff] %vm300, %v6251
      %6284 = vst.msk [vmem:[%s298 + $0xb8] sm:$0xff] %vm300, %v6252
      %6285 = vst.msk [vmem:[%s298 + $0xc0] sm:$0xff] %vm300, %v6253
      %6286 = vst.msk [vmem:[%s298 + $0xc8] sm:$0xff] %vm300, %v6254
      %6287 = vst.msk [vmem:[%s298 + $0xd0] sm:$0xff] %vm300, %v6255
      %6288 = vst.msk [vmem:[%s298 + $0xd8] sm:$0xff] %vm300, %v6256
      %6289 = vst.msk [vmem:[%s298 + $0xe0] sm:$0xff] %vm300, %v6257
      %6290 = vst.msk [vmem:[%s298 + $0xe8] sm:$0xff] %vm300, %v6258
      %6291 = vst.msk [vmem:[%s298 + $0xf0] sm:$0xff] %vm300, %v6259
      %6292 = vst.msk [vmem:[%s298 + $0xf8] sm:$0xff] %vm300, %v6260
      %p6293 = scmp.lt.s32.totalorder %s18, 1
      %s6294 = scalar_select %p6293, %s18, 1
      %s6295 = smul.addr %s6294, 32
      %s6296 = smul.addr %s6295, 8
      %s6297 = scalar_lea.vmem %s7, %s6296
      // Predicated region
      $region49: #{up_layers_forward.3} parent=47 // pred_check
        %p6298 = pneg %p193
      $region50: #{up_layers_forward.3} parent=47 // pred_check_branch
        %6300 = sbr.rel (%p6298) target = $region52
      $region51: #{up_layers_forward.3} parent=47 // pred_region
        _
      $region52: #{up_layers_forward.3} parent=47 // pred_fallthru
        _
    $region48: #{up_layers_forward.3} parent=5 // pred_fallthru
      _
    %p6301 = scmp.le.s32.totalorder 2, %s13
    // Predicated region
    $region53: #{up_layers_forward.3} parent=5 // pred_check
      %p6302 = pneg %p6301
    $region54: #{up_layers_forward.3} parent=5 // pred_check_branch
      %6304 = sbr.rel (%p6302) target = $region56
    $region55: #{up_layers_forward.3} parent=5 // pred_region
      %s6305 = ssub.s32 %s13, 2
      // Predicated region
      $region57: #{up_layers_forward.3} parent=55 // pred_check
        %p6306 = pneg %p199
      $region58: #{up_layers_forward.3} parent=55 // pred_check_branch
        %6308 = sbr.rel (%p6306) target = $region60
      $region59: #{up_layers_forward.3} parent=55 // pred_region
        %p6309 = scmp.lt.s32.totalorder %s19, 1
        %s6310 = scalar_select %p6309, %s19, 1
        %s6311 = smul.addr %s6310, 32
        %s6312 = smul.addr %s6311, 8
        %s6313 = scalar_lea.vmem %s7, %s6312
      $region60: #{up_layers_forward.3} parent=55 // pred_fallthru
        _
    $region56: #{up_layers_forward.3} parent=5 // pred_fallthru
      _
  $region6: #{up_layers_forward.3} parent=0 // loop_footer
    %s17 = sadd.s32 1, %s13
  $region7: #{up_layers_forward.3} parent=0 // loop_footer_branch
    %12 = sbr.rel target = $region3
  $region8: #{up_layers_forward.3} parent=0 // loop_exit
    _

</llo_original>
